<compile_context>
chip_gen: v7x
topology: tpu7x:2x2x1
jax: 0.10.0
libtpu: 0.0.40
codegen_flags: <defaults>
</compile_context>

<pallas_src>
import jax
import jax.numpy as jnp
from jax.experimental import pallas as pl
from jax.experimental.pallas import tpu as pltpu


_COL0 = 8  # sublane-aligned column offset of the image inside the padded scratch


# ------------------------------ in-kernel ops -------------------------------

def _conv3x3_bn_relu(xp_ref, x, w_ref, scale_ref, shift_ref):
    """3x3 'same' conv + folded BatchNorm + ReLU for one image.

    x:        (H, W, Cin) f32 value
    xp_ref:   (H+2, W+16, Cin) f32 VMEM scratch (zero halo, image at (1, 8))
    w_ref:    (9*Cin, Cout) bf16 im2col weights (row order ky, kx, ci)
    scale/shift: (1, Cout) f32 folded BN
    returns:  (H*W, Cout) f32
    """
    H, W, Cin = x.shape
    # Zero halo; image stored at row offset 1 (leading dim) and column offset 8
    # (sublane-aligned) so the interior store is an aligned full-tile store.
    xp_ref[...] = jnp.zeros(xp_ref.shape, xp_ref.dtype)
    xp_ref[1:H + 1, _COL0:_COL0 + W, :] = x
    # im2col: build one (H*W, 9*Cin) patch matrix -> a single MXU matmul.
    cols = [
        xp_ref[ky:ky + H, _COL0 - 1 + kx:_COL0 - 1 + kx + W, :].reshape(H * W, Cin)
        for ky in range(3) for kx in range(3)
    ]
    patches = jnp.concatenate(cols, axis=-1).astype(jnp.bfloat16)   # (H*W, 9*Cin)
    acc = jnp.dot(patches, w_ref[...], preferred_element_type=jnp.float32)
    return jnp.maximum(acc * scale_ref[...] + shift_ref[...], 0.0)  # (H*W, Cout)


def _maxpool2x2(y, H, W, C):
    """MaxPool2d(kernel=2, stride=2), fused conv epilogue.
    y: (H*W, C) f32  ->  (H//2, W//2, C) f32 (lane dim C preserved by reshape)."""
    y = y.reshape(H // 2, 2, W // 2, 2, C)
    return jnp.maximum(jnp.maximum(y[:, 0, :, 0, :], y[:, 0, :, 1, :]),
                       jnp.maximum(y[:, 1, :, 0, :], y[:, 1, :, 1, :]))


def _make_fused_kernel(plan):
    n_conv = len(plan)

    def kernel(*refs):
        # inputs: x, mean, istd, (w, scale, shift) per conv, wc, bc
        # outputs: o_ref ; scratch: one padded VMEM buffer per conv layer
        x_ref, mean_ref, istd_ref = refs[0], refs[1], refs[2]
        conv_refs = [refs[3 + 3 * i: 6 + 3 * i] for i in range(n_conv)]
        base = 3 + 3 * n_conv
        wc_ref, bc_ref, o_ref = refs[base], refs[base + 1], refs[base + 2]
        xp_refs = refs[base + 3: base + 3 + n_conv]

        # (x - mean) / std, fused (no separate kernel / HBM round trip).
        a = (x_ref[0] - mean_ref[...]) * istd_ref[...]          # (H, W, Cin) f32

        for lp, (w_ref, s_ref, b_ref), xp_ref in zip(plan, conv_refs, xp_refs):
            H, W, Cout = lp['h'], lp['w'], lp['cout']
            y = _conv3x3_bn_relu(xp_ref, a, w_ref, s_ref, b_ref)  # (H*W, Cout)
            if lp['pool']:
                a = _maxpool2x2(y, H, W, Cout)                    # (H/2, W/2, Cout)
            else:
                a = y.reshape(H, W, Cout)

        # Head: F.avg_pool2d(x, x.shape[2]) reduces spatial to 1x1, flatten,
        # then Linear(512, num_classes)  ==  spatial mean + matmul (exact).
        Hf, Wf, Cf = a.shape
        pooled = jnp.sum(a.reshape(Hf * Wf, Cf), axis=0, keepdims=True) \
            * (1.0 / (Hf * Wf))                                   # (1, Cf) f32
        o_ref[0] = jnp.dot(pooled, wc_ref[...],
                           preferred_element_type=jnp.float32) + bc_ref[...]

    return kernel


# -------------------------------- wrapper ------------------------------------

def build_plan(cfg, in_ch, height, width):
    plan = []
    c, h, w = in_ch, height, width
    for v in cfg:
        if v == 'M':
            assert plan and not plan[-1]['pool'] and h % 2 == 0 and w % 2 == 0
            plan[-1]['pool'] = True
            h //= 2
            w //= 2
        else:
            plan.append(dict(cin=c, cout=v, h=h, w=w, pool=False))
            c = v
    return plan


def make_vgg_ifd_forward(plan, num_classes, batch, height, width, in_ch):
    n_conv = len(plan)
    final_c = plan[-1]['cout']

    in_specs = [
        pl.BlockSpec((1, height, width, in_ch), lambda n: (n, 0, 0, 0)),  # x
        pl.BlockSpec((1, in_ch), lambda n: (0, 0)),                       # mean
        pl.BlockSpec((1, in_ch), lambda n: (0, 0)),                       # 1/std
    ]
    for lp in plan:
        in_specs += [
            pl.BlockSpec((9 * lp['cin'], lp['cout']), lambda n: (0, 0)),  # W (bf16)
            pl.BlockSpec((1, lp['cout']), lambda n: (0, 0)),              # BN scale
            pl.BlockSpec((1, lp['cout']), lambda n: (0, 0)),              # BN shift
        ]
    in_specs += [
        pl.BlockSpec((final_c, num_classes), lambda n: (0, 0)),           # classifier W
        pl.BlockSpec((1, num_classes), lambda n: (0, 0)),                 # classifier b
    ]

    # Padded halo scratch per conv layer; width rounded so the image sits at a
    # sublane-aligned column offset.  Everything is tiny (<< VMEM).
    scratch_shapes = [
        pltpu.VMEM((lp['h'] + 2, lp['w'] + 2 * _COL0, lp['cin']), jnp.float32)
        for lp in plan
    ]

    fused = pl.pallas_call(
        _make_fused_kernel(plan),
        out_shape=jax.ShapeDtypeStruct((batch, 1, num_classes), jnp.float32),
        grid=(batch,),
        in_specs=in_specs,
        out_specs=pl.BlockSpec((1, 1, num_classes), lambda n: (n, 0, 0)),
        scratch_shapes=scratch_shapes,
        compiler_params=pltpu.CompilerParams(
            dimension_semantics=("parallel",)),
    )

    def forward(x_nchw, mean, std, conv_params, clf_params):
        x = jnp.transpose(x_nchw, (0, 2, 3, 1)).astype(jnp.float32)  # NCHW -> NHWC
        mean2 = jnp.asarray(mean, jnp.float32).reshape(1, in_ch)
        istd2 = (1.0 / jnp.asarray(std, jnp.float32)).reshape(1, in_ch)
        args = [x, mean2, istd2]
        for w2d, scale, shift in conv_params:
            args += [w2d, scale, shift]
        wc, bc = clf_params
        args += [wc, bc]
        out = fused(*args)
        return out[:, 0, :]                                          # (N, classes)

    return jax.jit(forward)


# --------------------------- parameter building -----------------------------

def init_params(key, plan, num_classes):
    """Mirrors VGG._initialize_weights (eval-mode BatchNorm folded):
       Conv2d: kaiming_normal_(fan_out, relu), bias=0
       BatchNorm2d: weight=1, bias=0, running_mean=0, running_var=1, eps=1e-5
       Linear: normal(0, 0.01), bias=0."""
    eps = 1e-5
    conv_params = []
    for lp in plan:
        key, k1 = jax.random.split(key)
        cin, cout = lp['cin'], lp['cout']
        fan_out = cout * 9
        w = jax.random.normal(k1, (3, 3, cin, cout), jnp.float32) * jnp.sqrt(2.0 / fan_out)
        bias = jnp.zeros((cout,), jnp.float32)
        gamma = jnp.ones((cout,), jnp.float32)
        beta = jnp.zeros((cout,), jnp.float32)
        running_mean = jnp.zeros((cout,), jnp.float32)
        running_var = jnp.ones((cout,), jnp.float32)
        scale = gamma / jnp.sqrt(running_var + eps)
        shift = (bias - running_mean) * scale + beta
        conv_params.append((
            w.reshape(9 * cin, cout).astype(jnp.bfloat16),   # im2col layout, bf16
            scale.reshape(1, cout),
            shift.reshape(1, cout),
        ))
    key, k2 = jax.random.split(key)
    final_c = plan[-1]['cout']
    wc = jax.random.normal(k2, (final_c, num_classes), jnp.float32) * 0.01
    bc = jnp.zeros((1, num_classes), jnp.float32)
    return conv_params, (wc, bc)


# ---------------------------------- main -------------------------------------

if __name__ == "__main__":
    key = jax.random.PRNGKey(0)
    kx, kp = jax.random.split(key)

    N, C, H, W = 2, 3, 16, 16
    num_classes = 10
    x = jax.random.normal(kx, (N, C, H, W), jnp.float32)      # NCHW like PyTorch

    # per-channel normalization constants (CIFAR-style)
    mean = jnp.array([0.4914, 0.4822, 0.4465], jnp.float32)
    std = jnp.array([0.2470, 0.2435, 0.2616], jnp.float32)

    # small synthetic VGG-with-BN feature config ending in 512 channels so the
    # classifier nn.Linear(512, num_classes) matches the module exactly.
    cfg = [8, 'M', 16, 'M', 512, 'M']
    plan = build_plan(cfg, in_ch=C, height=H, width=W)
    conv_params, clf_params = init_params(kp, plan, num_classes)

    forward = make_vgg_ifd_forward(plan, num_classes, N, H, W, C)
    logits = forward(x, mean, std, conv_params, clf_params)
    logits = jax.block_until_ready(logits)
    assert logits.shape == (N, num_classes)
    assert logits.dtype == jnp.float32
    print("KERNEL_OK")
</pallas_src>

<mosaic_0001>
module attributes {stable_mosaic.version = 11 : i64} {
  func.func @kernel(%arg0: i32, %arg1: memref<1x16x16x3xf32, #tpu.memory_space<vmem>>, %arg2: memref<1x3xf32, #tpu.memory_space<vmem>>, %arg3: memref<1x3xf32, #tpu.memory_space<vmem>>, %arg4: memref<27x8xbf16, #tpu.memory_space<vmem>>, %arg5: memref<1x8xf32, #tpu.memory_space<vmem>>, %arg6: memref<1x8xf32, #tpu.memory_space<vmem>>, %arg7: memref<72x16xbf16, #tpu.memory_space<vmem>>, %arg8: memref<1x16xf32, #tpu.memory_space<vmem>>, %arg9: memref<1x16xf32, #tpu.memory_space<vmem>>, %arg10: memref<144x512xbf16, #tpu.memory_space<vmem>>, %arg11: memref<1x512xf32, #tpu.memory_space<vmem>>, %arg12: memref<1x512xf32, #tpu.memory_space<vmem>>, %arg13: memref<512x10xf32, #tpu.memory_space<vmem>>, %arg14: memref<1x10xf32, #tpu.memory_space<vmem>>, %arg15: memref<1x1x10xf32, #tpu.memory_space<vmem>>, %arg16: memref<18x32x3xf32, #tpu.memory_space<vmem>>, %arg17: memref<10x24x8xf32, #tpu.memory_space<vmem>>, %arg18: memref<6x20x16xf32, #tpu.memory_space<vmem>>) attributes {dimension_semantics = [#tpu.dimension_semantics<parallel>], iteration_bounds = array<i64: 2>, scalar_prefetch = 0 : i64, scratch_operands = 3 : i64, tpu.core_type = #tpu.core_type<tc>, window_params = [{transform_indices = @transform_0, window_bounds = array<i64: 1, 16, 16, 3>}, {pipeline_mode = #tpu.pipeline_mode<synchronous>, transform_indices = @transform_1, window_bounds = array<i64: 1, 3>}, {pipeline_mode = #tpu.pipeline_mode<synchronous>, transform_indices = @transform_2, window_bounds = array<i64: 1, 3>}, {pipeline_mode = #tpu.pipeline_mode<synchronous>, transform_indices = @transform_3, window_bounds = array<i64: 27, 8>}, {pipeline_mode = #tpu.pipeline_mode<synchronous>, transform_indices = @transform_4, window_bounds = array<i64: 1, 8>}, {pipeline_mode = #tpu.pipeline_mode<synchronous>, transform_indices = @transform_5, window_bounds = array<i64: 1, 8>}, {pipeline_mode = #tpu.pipeline_mode<synchronous>, transform_indices = @transform_6, window_bounds = array<i64: 72, 16>}, {pipeline_mode = #tpu.pipeline_mode<synchronous>, transform_indices = @transform_7, window_bounds = array<i64: 1, 16>}, {pipeline_mode = #tpu.pipeline_mode<synchronous>, transform_indices = @transform_8, window_bounds = array<i64: 1, 16>}, {pipeline_mode = #tpu.pipeline_mode<synchronous>, transform_indices = @transform_9, window_bounds = array<i64: 144, 512>}, {pipeline_mode = #tpu.pipeline_mode<synchronous>, transform_indices = @transform_10, window_bounds = array<i64: 1, 512>}, {pipeline_mode = #tpu.pipeline_mode<synchronous>, transform_indices = @transform_11, window_bounds = array<i64: 1, 512>}, {pipeline_mode = #tpu.pipeline_mode<synchronous>, transform_indices = @transform_12, window_bounds = array<i64: 512, 10>}, {pipeline_mode = #tpu.pipeline_mode<synchronous>, transform_indices = @transform_13, window_bounds = array<i64: 1, 10>}, {transform_indices = @transform_14, window_bounds = array<i64: 1, 1, 10>}]} {
    %c0 = arith.constant 0 : index
    %c0_0 = arith.constant 0 : index
    %c0_1 = arith.constant 0 : index
    %c0_2 = arith.constant 0 : index
    %0 = vector.load %arg1[%c0, %c0_0, %c0_1, %c0_2] : memref<1x16x16x3xf32, #tpu.memory_space<vmem>>, vector<1x16x16x3xf32>
    %1 = vector.shape_cast %0 : vector<1x16x16x3xf32> to vector<16x16x3xf32>
    %c0_3 = arith.constant 0 : index
    %c0_4 = arith.constant 0 : index
    %2 = vector.load %arg2[%c0_3, %c0_4] : memref<1x3xf32, #tpu.memory_space<vmem>>, vector<1x3xf32>
    %3 = vector.shape_cast %2 : vector<1x3xf32> to vector<1x1x3xf32>
    %4 = vector.broadcast %3 : vector<1x1x3xf32> to vector<16x16x3xf32>
    %5 = arith.subf %1, %4 : vector<16x16x3xf32>
    %c0_5 = arith.constant 0 : index
    %c0_6 = arith.constant 0 : index
    %6 = vector.load %arg3[%c0_5, %c0_6] : memref<1x3xf32, #tpu.memory_space<vmem>>, vector<1x3xf32>
    %7 = vector.shape_cast %6 : vector<1x3xf32> to vector<1x1x3xf32>
    %8 = vector.broadcast %7 : vector<1x1x3xf32> to vector<16x16x3xf32>
    %9 = arith.mulf %5, %8 : vector<16x16x3xf32>
    %cst = arith.constant 0.000000e+00 : f32
    %10 = vector.broadcast %cst : f32 to vector<18x32x3xf32>
    %c0_7 = arith.constant 0 : index
    %c0_8 = arith.constant 0 : index
    %c0_9 = arith.constant 0 : index
    %11 = vector.load %arg16[%c0_7, %c0_8, %c0_9] : memref<18x32x3xf32, #tpu.memory_space<vmem>>, vector<18x32x3xf32>
    tpu.vector_store %arg16[%c0_7, %c0_8, %c0_9], %10 {strides = array<i32>} : memref<18x32x3xf32, #tpu.memory_space<vmem>>, vector<18x32x3xf32>,
    %c1 = arith.constant 1 : index
    %c8 = arith.constant 8 : index
    %c0_10 = arith.constant 0 : index
    %12 = vector.load %arg16[%c1, %c8, %c0_10] : memref<18x32x3xf32, #tpu.memory_space<vmem>>, vector<16x16x3xf32>
    tpu.vector_store %arg16[%c1, %c8, %c0_10], %9 {strides = array<i32>} : memref<18x32x3xf32, #tpu.memory_space<vmem>>, vector<16x16x3xf32>,
    %c0_11 = arith.constant 0 : index
    %c7 = arith.constant 7 : index
    %c0_12 = arith.constant 0 : index
    %13 = vector.load %arg16[%c0_11, %c7, %c0_12] : memref<18x32x3xf32, #tpu.memory_space<vmem>>, vector<16x16x3xf32>
    %14 = vector.shape_cast %13 : vector<16x16x3xf32> to vector<256x3xf32>
    %c0_13 = arith.constant 0 : index
    %c8_14 = arith.constant 8 : index
    %c0_15 = arith.constant 0 : index
    %15 = vector.load %arg16[%c0_13, %c8_14, %c0_15] : memref<18x32x3xf32, #tpu.memory_space<vmem>>, vector<16x16x3xf32>
    %16 = vector.shape_cast %15 : vector<16x16x3xf32> to vector<256x3xf32>
    %c0_16 = arith.constant 0 : index
    %c9 = arith.constant 9 : index
    %c0_17 = arith.constant 0 : index
    %17 = vector.load %arg16[%c0_16, %c9, %c0_17] : memref<18x32x3xf32, #tpu.memory_space<vmem>>, vector<16x16x3xf32>
    %18 = vector.shape_cast %17 : vector<16x16x3xf32> to vector<256x3xf32>
    %c1_18 = arith.constant 1 : index
    %c7_19 = arith.constant 7 : index
    %c0_20 = arith.constant 0 : index
    %19 = vector.load %arg16[%c1_18, %c7_19, %c0_20] : memref<18x32x3xf32, #tpu.memory_space<vmem>>, vector<16x16x3xf32>
    %20 = vector.shape_cast %19 : vector<16x16x3xf32> to vector<256x3xf32>
    %c1_21 = arith.constant 1 : index
    %c8_22 = arith.constant 8 : index
    %c0_23 = arith.constant 0 : index
    %21 = vector.load %arg16[%c1_21, %c8_22, %c0_23] : memref<18x32x3xf32, #tpu.memory_space<vmem>>, vector<16x16x3xf32>
    %22 = vector.shape_cast %21 : vector<16x16x3xf32> to vector<256x3xf32>
    %c1_24 = arith.constant 1 : index
    %c9_25 = arith.constant 9 : index
    %c0_26 = arith.constant 0 : index
    %23 = vector.load %arg16[%c1_24, %c9_25, %c0_26] : memref<18x32x3xf32, #tpu.memory_space<vmem>>, vector<16x16x3xf32>
    %24 = vector.shape_cast %23 : vector<16x16x3xf32> to vector<256x3xf32>
    %c2 = arith.constant 2 : index
    %c7_27 = arith.constant 7 : index
    %c0_28 = arith.constant 0 : index
    %25 = vector.load %arg16[%c2, %c7_27, %c0_28] : memref<18x32x3xf32, #tpu.memory_space<vmem>>, vector<16x16x3xf32>
    %26 = vector.shape_cast %25 : vector<16x16x3xf32> to vector<256x3xf32>
    %c2_29 = arith.constant 2 : index
    %c8_30 = arith.constant 8 : index
    %c0_31 = arith.constant 0 : index
    %27 = vector.load %arg16[%c2_29, %c8_30, %c0_31] : memref<18x32x3xf32, #tpu.memory_space<vmem>>, vector<16x16x3xf32>
    %28 = vector.shape_cast %27 : vector<16x16x3xf32> to vector<256x3xf32>
    %c2_32 = arith.constant 2 : index
    %c9_33 = arith.constant 9 : index
    %c0_34 = arith.constant 0 : index
    %29 = vector.load %arg16[%c2_32, %c9_33, %c0_34] : memref<18x32x3xf32, #tpu.memory_space<vmem>>, vector<16x16x3xf32>
    %30 = vector.shape_cast %29 : vector<16x16x3xf32> to vector<256x3xf32>
    %31 = tpu.concatenate %14, %16, %18, %20, %22, %24, %26, %28, %30 in 1 : vector<256x3xf32>, vector<256x3xf32>, vector<256x3xf32>, vector<256x3xf32>, vector<256x3xf32>, vector<256x3xf32>, vector<256x3xf32>, vector<256x3xf32>, vector<256x3xf32> -> vector<256x27xf32>
    %32 = arith.truncf %31 : vector<256x27xf32> to vector<256x27xbf16>
    %c0_35 = arith.constant 0 : index
    %c0_36 = arith.constant 0 : index
    %33 = vector.load %arg4[%c0_35, %c0_36] : memref<27x8xbf16, #tpu.memory_space<vmem>>, vector<27x8xbf16>
    %cst_37 = arith.constant dense<0.000000e+00> : vector<256x8xf32>
    %34 = tpu.matmul %32, %33, %cst_37 {dimension_numbers = #tpu.dot_dimension_numbers<[1], [0], [0], [1], [0, 0, 1, 1], [], []>} : vector<256x27xbf16>, vector<27x8xbf16>, vector<256x8xf32> -> vector<256x8xf32>
    %c0_38 = arith.constant 0 : index
    %c0_39 = arith.constant 0 : index
    %35 = vector.load %arg5[%c0_38, %c0_39] : memref<1x8xf32, #tpu.memory_space<vmem>>, vector<1x8xf32>
    %36 = vector.broadcast %35 : vector<1x8xf32> to vector<256x8xf32>
    %37 = arith.mulf %34, %36 : vector<256x8xf32>
    %c0_40 = arith.constant 0 : index
    %c0_41 = arith.constant 0 : index
    %38 = vector.load %arg6[%c0_40, %c0_41] : memref<1x8xf32, #tpu.memory_space<vmem>>, vector<1x8xf32>
    %39 = vector.broadcast %38 : vector<1x8xf32> to vector<256x8xf32>
    %40 = arith.addf %37, %39 : vector<256x8xf32>
    %cst_42 = arith.constant 0.000000e+00 : f32
    %41 = vector.broadcast %cst_42 : f32 to vector<256x8xf32>
    %42 = arith.maximumf %40, %41 : vector<256x8xf32>
    %43 = vector.shape_cast %42 : vector<256x8xf32> to vector<8x2x8x2x8xf32>
    %44 = vector.extract_strided_slice %43 {offsets = [0, 0, 0, 0, 0], sizes = [8, 1, 8, 1, 8], strides = [1, 1, 1, 1, 1]} : vector<8x2x8x2x8xf32> to vector<8x1x8x1x8xf32>
    %45 = vector.shape_cast %44 : vector<8x1x8x1x8xf32> to vector<8x8x8xf32>
    %46 = vector.extract_strided_slice %43 {offsets = [0, 0, 0, 1, 0], sizes = [8, 1, 8, 1, 8], strides = [1, 1, 1, 1, 1]} : vector<8x2x8x2x8xf32> to vector<8x1x8x1x8xf32>
    %47 = vector.shape_cast %46 : vector<8x1x8x1x8xf32> to vector<8x8x8xf32>
    %48 = arith.maximumf %45, %47 : vector<8x8x8xf32>
    %49 = vector.extract_strided_slice %43 {offsets = [0, 1, 0, 0, 0], sizes = [8, 1, 8, 1, 8], strides = [1, 1, 1, 1, 1]} : vector<8x2x8x2x8xf32> to vector<8x1x8x1x8xf32>
    %50 = vector.shape_cast %49 : vector<8x1x8x1x8xf32> to vector<8x8x8xf32>
    %51 = vector.extract_strided_slice %43 {offsets = [0, 1, 0, 1, 0], sizes = [8, 1, 8, 1, 8], strides = [1, 1, 1, 1, 1]} : vector<8x2x8x2x8xf32> to vector<8x1x8x1x8xf32>
    %52 = vector.shape_cast %51 : vector<8x1x8x1x8xf32> to vector<8x8x8xf32>
    %53 = arith.maximumf %50, %52 : vector<8x8x8xf32>
    %54 = arith.maximumf %48, %53 : vector<8x8x8xf32>
    %cst_43 = arith.constant 0.000000e+00 : f32
    %55 = vector.broadcast %cst_43 : f32 to vector<10x24x8xf32>
    %c0_44 = arith.constant 0 : index
    %c0_45 = arith.constant 0 : index
    %c0_46 = arith.constant 0 : index
    %56 = vector.load %arg17[%c0_44, %c0_45, %c0_46] : memref<10x24x8xf32, #tpu.memory_space<vmem>>, vector<10x24x8xf32>
    tpu.vector_store %arg17[%c0_44, %c0_45, %c0_46], %55 {strides = array<i32>} : memref<10x24x8xf32, #tpu.memory_space<vmem>>, vector<10x24x8xf32>,
    %c1_47 = arith.constant 1 : index
    %c8_48 = arith.constant 8 : index
    %c0_49 = arith.constant 0 : index
    %57 = vector.load %arg17[%c1_47, %c8_48, %c0_49] : memref<10x24x8xf32, #tpu.memory_space<vmem>>, vector<8x8x8xf32>
    tpu.vector_store %arg17[%c1_47, %c8_48, %c0_49], %54 {strides = array<i32>} : memref<10x24x8xf32, #tpu.memory_space<vmem>>, vector<8x8x8xf32>,
    %c0_50 = arith.constant 0 : index
    %c7_51 = arith.constant 7 : index
    %c0_52 = arith.constant 0 : index
    %58 = vector.load %arg17[%c0_50, %c7_51, %c0_52] : memref<10x24x8xf32, #tpu.memory_space<vmem>>, vector<8x8x8xf32>
    %59 = vector.shape_cast %58 : vector<8x8x8xf32> to vector<64x8xf32>
    %c0_53 = arith.constant 0 : index
    %c8_54 = arith.constant 8 : index
    %c0_55 = arith.constant 0 : index
    %60 = vector.load %arg17[%c0_53, %c8_54, %c0_55] : memref<10x24x8xf32, #tpu.memory_space<vmem>>, vector<8x8x8xf32>
    %61 = vector.shape_cast %60 : vector<8x8x8xf32> to vector<64x8xf32>
    %c0_56 = arith.constant 0 : index
    %c9_57 = arith.constant 9 : index
    %c0_58 = arith.constant 0 : index
    %62 = vector.load %arg17[%c0_56, %c9_57, %c0_58] : memref<10x24x8xf32, #tpu.memory_space<vmem>>, vector<8x8x8xf32>
    %63 = vector.shape_cast %62 : vector<8x8x8xf32> to vector<64x8xf32>
    %c1_59 = arith.constant 1 : index
    %c7_60 = arith.constant 7 : index
    %c0_61 = arith.constant 0 : index
    %64 = vector.load %arg17[%c1_59, %c7_60, %c0_61] : memref<10x24x8xf32, #tpu.memory_space<vmem>>, vector<8x8x8xf32>
    %65 = vector.shape_cast %64 : vector<8x8x8xf32> to vector<64x8xf32>
    %c1_62 = arith.constant 1 : index
    %c8_63 = arith.constant 8 : index
    %c0_64 = arith.constant 0 : index
    %66 = vector.load %arg17[%c1_62, %c8_63, %c0_64] : memref<10x24x8xf32, #tpu.memory_space<vmem>>, vector<8x8x8xf32>
    %67 = vector.shape_cast %66 : vector<8x8x8xf32> to vector<64x8xf32>
    %c1_65 = arith.constant 1 : index
    %c9_66 = arith.constant 9 : index
    %c0_67 = arith.constant 0 : index
    %68 = vector.load %arg17[%c1_65, %c9_66, %c0_67] : memref<10x24x8xf32, #tpu.memory_space<vmem>>, vector<8x8x8xf32>
    %69 = vector.shape_cast %68 : vector<8x8x8xf32> to vector<64x8xf32>
    %c2_68 = arith.constant 2 : index
    %c7_69 = arith.constant 7 : index
    %c0_70 = arith.constant 0 : index
    %70 = vector.load %arg17[%c2_68, %c7_69, %c0_70] : memref<10x24x8xf32, #tpu.memory_space<vmem>>, vector<8x8x8xf32>
    %71 = vector.shape_cast %70 : vector<8x8x8xf32> to vector<64x8xf32>
    %c2_71 = arith.constant 2 : index
    %c8_72 = arith.constant 8 : index
    %c0_73 = arith.constant 0 : index
    %72 = vector.load %arg17[%c2_71, %c8_72, %c0_73] : memref<10x24x8xf32, #tpu.memory_space<vmem>>, vector<8x8x8xf32>
    %73 = vector.shape_cast %72 : vector<8x8x8xf32> to vector<64x8xf32>
    %c2_74 = arith.constant 2 : index
    %c9_75 = arith.constant 9 : index
    %c0_76 = arith.constant 0 : index
    %74 = vector.load %arg17[%c2_74, %c9_75, %c0_76] : memref<10x24x8xf32, #tpu.memory_space<vmem>>, vector<8x8x8xf32>
    %75 = vector.shape_cast %74 : vector<8x8x8xf32> to vector<64x8xf32>
    %76 = tpu.concatenate %59, %61, %63, %65, %67, %69, %71, %73, %75 in 1 : vector<64x8xf32>, vector<64x8xf32>, vector<64x8xf32>, vector<64x8xf32>, vector<64x8xf32>, vector<64x8xf32>, vector<64x8xf32>, vector<64x8xf32>, vector<64x8xf32> -> vector<64x72xf32>
    %77 = arith.truncf %76 : vector<64x72xf32> to vector<64x72xbf16>
    %c0_77 = arith.constant 0 : index
    %c0_78 = arith.constant 0 : index
    %78 = vector.load %arg7[%c0_77, %c0_78] : memref<72x16xbf16, #tpu.memory_space<vmem>>, vector<72x16xbf16>
    %cst_79 = arith.constant dense<0.000000e+00> : vector<64x16xf32>
    %79 = tpu.matmul %77, %78, %cst_79 {dimension_numbers = #tpu.dot_dimension_numbers<[1], [0], [0], [1], [0, 0, 1, 1], [], []>} : vector<64x72xbf16>, vector<72x16xbf16>, vector<64x16xf32> -> vector<64x16xf32>
    %c0_80 = arith.constant 0 : index
    %c0_81 = arith.constant 0 : index
    %80 = vector.load %arg8[%c0_80, %c0_81] : memref<1x16xf32, #tpu.memory_space<vmem>>, vector<1x16xf32>
    %81 = vector.broadcast %80 : vector<1x16xf32> to vector<64x16xf32>
    %82 = arith.mulf %79, %81 : vector<64x16xf32>
    %c0_82 = arith.constant 0 : index
    %c0_83 = arith.constant 0 : index
    %83 = vector.load %arg9[%c0_82, %c0_83] : memref<1x16xf32, #tpu.memory_space<vmem>>, vector<1x16xf32>
    %84 = vector.broadcast %83 : vector<1x16xf32> to vector<64x16xf32>
    %85 = arith.addf %82, %84 : vector<64x16xf32>
    %cst_84 = arith.constant 0.000000e+00 : f32
    %86 = vector.broadcast %cst_84 : f32 to vector<64x16xf32>
    %87 = arith.maximumf %85, %86 : vector<64x16xf32>
    %88 = vector.shape_cast %87 : vector<64x16xf32> to vector<4x2x4x2x16xf32>
    %89 = vector.extract_strided_slice %88 {offsets = [0, 0, 0, 0, 0], sizes = [4, 1, 4, 1, 16], strides = [1, 1, 1, 1, 1]} : vector<4x2x4x2x16xf32> to vector<4x1x4x1x16xf32>
    %90 = vector.shape_cast %89 : vector<4x1x4x1x16xf32> to vector<4x4x16xf32>
    %91 = vector.extract_strided_slice %88 {offsets = [0, 0, 0, 1, 0], sizes = [4, 1, 4, 1, 16], strides = [1, 1, 1, 1, 1]} : vector<4x2x4x2x16xf32> to vector<4x1x4x1x16xf32>
    %92 = vector.shape_cast %91 : vector<4x1x4x1x16xf32> to vector<4x4x16xf32>
    %93 = arith.maximumf %90, %92 : vector<4x4x16xf32>
    %94 = vector.extract_strided_slice %88 {offsets = [0, 1, 0, 0, 0], sizes = [4, 1, 4, 1, 16], strides = [1, 1, 1, 1, 1]} : vector<4x2x4x2x16xf32> to vector<4x1x4x1x16xf32>
    %95 = vector.shape_cast %94 : vector<4x1x4x1x16xf32> to vector<4x4x16xf32>
    %96 = vector.extract_strided_slice %88 {offsets = [0, 1, 0, 1, 0], sizes = [4, 1, 4, 1, 16], strides = [1, 1, 1, 1, 1]} : vector<4x2x4x2x16xf32> to vector<4x1x4x1x16xf32>
    %97 = vector.shape_cast %96 : vector<4x1x4x1x16xf32> to vector<4x4x16xf32>
    %98 = arith.maximumf %95, %97 : vector<4x4x16xf32>
    %99 = arith.maximumf %93, %98 : vector<4x4x16xf32>
    %cst_85 = arith.constant 0.000000e+00 : f32
    %100 = vector.broadcast %cst_85 : f32 to vector<6x20x16xf32>
    %c0_86 = arith.constant 0 : index
    %c0_87 = arith.constant 0 : index
    %c0_88 = arith.constant 0 : index
    %101 = vector.load %arg18[%c0_86, %c0_87, %c0_88] : memref<6x20x16xf32, #tpu.memory_space<vmem>>, vector<6x20x16xf32>
    tpu.vector_store %arg18[%c0_86, %c0_87, %c0_88], %100 {strides = array<i32>} : memref<6x20x16xf32, #tpu.memory_space<vmem>>, vector<6x20x16xf32>,
    %c1_89 = arith.constant 1 : index
    %c8_90 = arith.constant 8 : index
    %c0_91 = arith.constant 0 : index
    %102 = vector.load %arg18[%c1_89, %c8_90, %c0_91] : memref<6x20x16xf32, #tpu.memory_space<vmem>>, vector<4x4x16xf32>
    tpu.vector_store %arg18[%c1_89, %c8_90, %c0_91], %99 {strides = array<i32>} : memref<6x20x16xf32, #tpu.memory_space<vmem>>, vector<4x4x16xf32>,
    %c0_92 = arith.constant 0 : index
    %c7_93 = arith.constant 7 : index
    %c0_94 = arith.constant 0 : index
    %103 = vector.load %arg18[%c0_92, %c7_93, %c0_94] : memref<6x20x16xf32, #tpu.memory_space<vmem>>, vector<4x4x16xf32>
    %104 = vector.shape_cast %103 : vector<4x4x16xf32> to vector<16x16xf32>
    %c0_95 = arith.constant 0 : index
    %c8_96 = arith.constant 8 : index
    %c0_97 = arith.constant 0 : index
    %105 = vector.load %arg18[%c0_95, %c8_96, %c0_97] : memref<6x20x16xf32, #tpu.memory_space<vmem>>, vector<4x4x16xf32>
    %106 = vector.shape_cast %105 : vector<4x4x16xf32> to vector<16x16xf32>
    %c0_98 = arith.constant 0 : index
    %c9_99 = arith.constant 9 : index
    %c0_100 = arith.constant 0 : index
    %107 = vector.load %arg18[%c0_98, %c9_99, %c0_100] : memref<6x20x16xf32, #tpu.memory_space<vmem>>, vector<4x4x16xf32>
    %108 = vector.shape_cast %107 : vector<4x4x16xf32> to vector<16x16xf32>
    %c1_101 = arith.constant 1 : index
    %c7_102 = arith.constant 7 : index
    %c0_103 = arith.constant 0 : index
    %109 = vector.load %arg18[%c1_101, %c7_102, %c0_103] : memref<6x20x16xf32, #tpu.memory_space<vmem>>, vector<4x4x16xf32>
    %110 = vector.shape_cast %109 : vector<4x4x16xf32> to vector<16x16xf32>
    %c1_104 = arith.constant 1 : index
    %c8_105 = arith.constant 8 : index
    %c0_106 = arith.constant 0 : index
    %111 = vector.load %arg18[%c1_104, %c8_105, %c0_106] : memref<6x20x16xf32, #tpu.memory_space<vmem>>, vector<4x4x16xf32>
    %112 = vector.shape_cast %111 : vector<4x4x16xf32> to vector<16x16xf32>
    %c1_107 = arith.constant 1 : index
    %c9_108 = arith.constant 9 : index
    %c0_109 = arith.constant 0 : index
    %113 = vector.load %arg18[%c1_107, %c9_108, %c0_109] : memref<6x20x16xf32, #tpu.memory_space<vmem>>, vector<4x4x16xf32>
    %114 = vector.shape_cast %113 : vector<4x4x16xf32> to vector<16x16xf32>
    %c2_110 = arith.constant 2 : index
    %c7_111 = arith.constant 7 : index
    %c0_112 = arith.constant 0 : index
    %115 = vector.load %arg18[%c2_110, %c7_111, %c0_112] : memref<6x20x16xf32, #tpu.memory_space<vmem>>, vector<4x4x16xf32>
    %116 = vector.shape_cast %115 : vector<4x4x16xf32> to vector<16x16xf32>
    %c2_113 = arith.constant 2 : index
    %c8_114 = arith.constant 8 : index
    %c0_115 = arith.constant 0 : index
    %117 = vector.load %arg18[%c2_113, %c8_114, %c0_115] : memref<6x20x16xf32, #tpu.memory_space<vmem>>, vector<4x4x16xf32>
    %118 = vector.shape_cast %117 : vector<4x4x16xf32> to vector<16x16xf32>
    %c2_116 = arith.constant 2 : index
    %c9_117 = arith.constant 9 : index
    %c0_118 = arith.constant 0 : index
    %119 = vector.load %arg18[%c2_116, %c9_117, %c0_118] : memref<6x20x16xf32, #tpu.memory_space<vmem>>, vector<4x4x16xf32>
    %120 = vector.shape_cast %119 : vector<4x4x16xf32> to vector<16x16xf32>
    %121 = tpu.concatenate %104, %106, %108, %110, %112, %114, %116, %118, %120 in 1 : vector<16x16xf32>, vector<16x16xf32>, vector<16x16xf32>, vector<16x16xf32>, vector<16x16xf32>, vector<16x16xf32>, vector<16x16xf32>, vector<16x16xf32>, vector<16x16xf32> -> vector<16x144xf32>
    %122 = arith.truncf %121 : vector<16x144xf32> to vector<16x144xbf16>
    %c0_119 = arith.constant 0 : index
    %c0_120 = arith.constant 0 : index
    %123 = vector.load %arg10[%c0_119, %c0_120] : memref<144x512xbf16, #tpu.memory_space<vmem>>, vector<144x512xbf16>
    %cst_121 = arith.constant dense<0.000000e+00> : vector<16x512xf32>
    %124 = tpu.matmul %122, %123, %cst_121 {dimension_numbers = #tpu.dot_dimension_numbers<[1], [0], [0], [1], [0, 0, 1, 1], [], []>} : vector<16x144xbf16>, vector<144x512xbf16>, vector<16x512xf32> -> vector<16x512xf32>
    %c0_122 = arith.constant 0 : index
    %c0_123 = arith.constant 0 : index
    %125 = vector.load %arg11[%c0_122, %c0_123] : memref<1x512xf32, #tpu.memory_space<vmem>>, vector<1x512xf32>
    %126 = vector.broadcast %125 : vector<1x512xf32> to vector<16x512xf32>
    %127 = arith.mulf %124, %126 : vector<16x512xf32>
    %c0_124 = arith.constant 0 : index
    %c0_125 = arith.constant 0 : index
    %128 = vector.load %arg12[%c0_124, %c0_125] : memref<1x512xf32, #tpu.memory_space<vmem>>, vector<1x512xf32>
    %129 = vector.broadcast %128 : vector<1x512xf32> to vector<16x512xf32>
    %130 = arith.addf %127, %129 : vector<16x512xf32>
    %cst_126 = arith.constant 0.000000e+00 : f32
    %131 = vector.broadcast %cst_126 : f32 to vector<16x512xf32>
    %132 = arith.maximumf %130, %131 : vector<16x512xf32>
    %133 = vector.shape_cast %132 : vector<16x512xf32> to vector<2x2x2x2x512xf32>
    %134 = vector.extract_strided_slice %133 {offsets = [0, 0, 0, 0, 0], sizes = [2, 1, 2, 1, 512], strides = [1, 1, 1, 1, 1]} : vector<2x2x2x2x512xf32> to vector<2x1x2x1x512xf32>
    %135 = vector.shape_cast %134 : vector<2x1x2x1x512xf32> to vector<2x2x512xf32>
    %136 = vector.extract_strided_slice %133 {offsets = [0, 0, 0, 1, 0], sizes = [2, 1, 2, 1, 512], strides = [1, 1, 1, 1, 1]} : vector<2x2x2x2x512xf32> to vector<2x1x2x1x512xf32>
    %137 = vector.shape_cast %136 : vector<2x1x2x1x512xf32> to vector<2x2x512xf32>
    %138 = arith.maximumf %135, %137 : vector<2x2x512xf32>
    %139 = vector.extract_strided_slice %133 {offsets = [0, 1, 0, 0, 0], sizes = [2, 1, 2, 1, 512], strides = [1, 1, 1, 1, 1]} : vector<2x2x2x2x512xf32> to vector<2x1x2x1x512xf32>
    %140 = vector.shape_cast %139 : vector<2x1x2x1x512xf32> to vector<2x2x512xf32>
    %141 = vector.extract_strided_slice %133 {offsets = [0, 1, 0, 1, 0], sizes = [2, 1, 2, 1, 512], strides = [1, 1, 1, 1, 1]} : vector<2x2x2x2x512xf32> to vector<2x1x2x1x512xf32>
    %142 = vector.shape_cast %141 : vector<2x1x2x1x512xf32> to vector<2x2x512xf32>
    %143 = arith.maximumf %140, %142 : vector<2x2x512xf32>
    %144 = arith.maximumf %138, %143 : vector<2x2x512xf32>
    %145 = vector.shape_cast %144 : vector<2x2x512xf32> to vector<4x512xf32>
    %cst_127 = arith.constant dense<0.000000e+00> : vector<512xf32>
    %146 = vector.multi_reduction <add>, %145, %cst_127 [0] : vector<4x512xf32> to vector<512xf32>
    %147 = vector.shape_cast %146 : vector<512xf32> to vector<1x512xf32>
    %cst_128 = arith.constant 2.500000e-01 : f32
    %148 = vector.broadcast %cst_128 : f32 to vector<1x512xf32>
    %149 = arith.mulf %147, %148 : vector<1x512xf32>
    %c0_129 = arith.constant 0 : index
    %c0_130 = arith.constant 0 : index
    %150 = vector.load %arg13[%c0_129, %c0_130] : memref<512x10xf32, #tpu.memory_space<vmem>>, vector<512x10xf32>
    %cst_131 = arith.constant dense<0.000000e+00> : vector<1x10xf32>
    %151 = tpu.matmul %149, %150, %cst_131 {dimension_numbers = #tpu.dot_dimension_numbers<[1], [0], [0], [1], [0, 0, 1, 1], [], []>} : vector<1x512xf32>, vector<512x10xf32>, vector<1x10xf32> -> vector<1x10xf32>
    %c0_132 = arith.constant 0 : index
    %c0_133 = arith.constant 0 : index
    %152 = vector.load %arg14[%c0_132, %c0_133] : memref<1x10xf32, #tpu.memory_space<vmem>>, vector<1x10xf32>
    %153 = arith.addf %151, %152 : vector<1x10xf32>
    %c0_134 = arith.constant 0 : index
    %c0_135 = arith.constant 0 : index
    %c0_136 = arith.constant 0 : index
    %154 = vector.load %arg15[%c0_134, %c0_135, %c0_136] : memref<1x1x10xf32, #tpu.memory_space<vmem>>, vector<1x1x10xf32>
    %155 = vector.shape_cast %154 : vector<1x1x10xf32> to vector<1x10xf32>
    %156 = vector.shape_cast %153 : vector<1x10xf32> to vector<1x1x10xf32>
    tpu.vector_store %arg15[%c0_134, %c0_135, %c0_136], %156 {strides = array<i32>} : memref<1x1x10xf32, #tpu.memory_space<vmem>>, vector<1x1x10xf32>,
    return
  }
  func.func @transform_0(%arg0: i32) -> (i32, i32, i32, i32) {
    %c0_i32 = arith.constant 0 : i32
    %c0_i32_0 = arith.constant 0 : i32
    %c0_i32_1 = arith.constant 0 : i32
    %c0_i32_2 = arith.constant 0 : i32
    return %arg0, %c0_i32, %c0_i32_0, %c0_i32_1 : i32, i32, i32, i32
  }
  func.func @transform_1(%arg0: i32) -> (i32, i32) {
    %c0_i32 = arith.constant 0 : i32
    %c0_i32_0 = arith.constant 0 : i32
    %c0_i32_1 = arith.constant 0 : i32
    return %c0_i32, %c0_i32_0 : i32, i32
  }
  func.func @transform_2(%arg0: i32) -> (i32, i32) {
    %c0_i32 = arith.constant 0 : i32
    %c0_i32_0 = arith.constant 0 : i32
    %c0_i32_1 = arith.constant 0 : i32
    return %c0_i32, %c0_i32_0 : i32, i32
  }
  func.func @transform_3(%arg0: i32) -> (i32, i32) {
    %c0_i32 = arith.constant 0 : i32
    %c0_i32_0 = arith.constant 0 : i32
    %c0_i32_1 = arith.constant 0 : i32
    return %c0_i32, %c0_i32_0 : i32, i32
  }
  func.func @transform_4(%arg0: i32) -> (i32, i32) {
    %c0_i32 = arith.constant 0 : i32
    %c0_i32_0 = arith.constant 0 : i32
    %c0_i32_1 = arith.constant 0 : i32
    return %c0_i32, %c0_i32_0 : i32, i32
  }
  func.func @transform_5(%arg0: i32) -> (i32, i32) {
    %c0_i32 = arith.constant 0 : i32
    %c0_i32_0 = arith.constant 0 : i32
    %c0_i32_1 = arith.constant 0 : i32
    return %c0_i32, %c0_i32_0 : i32, i32
  }
  func.func @transform_6(%arg0: i32) -> (i32, i32) {
    %c0_i32 = arith.constant 0 : i32
    %c0_i32_0 = arith.constant 0 : i32
    %c0_i32_1 = arith.constant 0 : i32
    return %c0_i32, %c0_i32_0 : i32, i32
  }
  func.func @transform_7(%arg0: i32) -> (i32, i32) {
    %c0_i32 = arith.constant 0 : i32
    %c0_i32_0 = arith.constant 0 : i32
    %c0_i32_1 = arith.constant 0 : i32
    return %c0_i32, %c0_i32_0 : i32, i32
  }
  func.func @transform_8(%arg0: i32) -> (i32, i32) {
    %c0_i32 = arith.constant 0 : i32
    %c0_i32_0 = arith.constant 0 : i32
    %c0_i32_1 = arith.constant 0 : i32
    return %c0_i32, %c0_i32_0 : i32, i32
  }
  func.func @transform_9(%arg0: i32) -> (i32, i32) {
    %c0_i32 = arith.constant 0 : i32
    %c0_i32_0 = arith.constant 0 : i32
    %c0_i32_1 = arith.constant 0 : i32
    return %c0_i32, %c0_i32_0 : i32, i32
  }
  func.func @transform_10(%arg0: i32) -> (i32, i32) {
    %c0_i32 = arith.constant 0 : i32
    %c0_i32_0 = arith.constant 0 : i32
    %c0_i32_1 = arith.constant 0 : i32
    return %c0_i32, %c0_i32_0 : i32, i32
  }
  func.func @transform_11(%arg0: i32) -> (i32, i32) {
    %c0_i32 = arith.constant 0 : i32
    %c0_i32_0 = arith.constant 0 : i32
    %c0_i32_1 = arith.constant 0 : i32
    return %c0_i32, %c0_i32_0 : i32, i32
  }
  func.func @transform_12(%arg0: i32) -> (i32, i32) {
    %c0_i32 = arith.constant 0 : i32
    %c0_i32_0 = arith.constant 0 : i32
    %c0_i32_1 = arith.constant 0 : i32
    return %c0_i32, %c0_i32_0 : i32, i32
  }
  func.func @transform_13(%arg0: i32) -> (i32, i32) {
    %c0_i32 = arith.constant 0 : i32
    %c0_i32_0 = arith.constant 0 : i32
    %c0_i32_1 = arith.constant 0 : i32
    return %c0_i32, %c0_i32_0 : i32, i32
  }
  func.func @transform_14(%arg0: i32) -> (i32, i32, i32) {
    %c0_i32 = arith.constant 0 : i32
    %c0_i32_0 = arith.constant 0 : i32
    %c0_i32_1 = arith.constant 0 : i32
    return %arg0, %c0_i32, %c0_i32_0 : i32, i32, i32
  }
}

</mosaic_0001>

<llo_original>
// kernel: forward.1
$region0: #{forward.1}
  #allocation0 [shape = 'u32[]', space=smem, size = 0x4, offset = 0x4, fixed_abs, tag = 'smem constant byte address 0x4 - core index']
  #allocation1 [shape = 'u32[144,128]{1,0:T(1,128)}', space=vmem, size = 0x12000, scoped, tag = 'internal scratch']
  #allocation2 [shape = 'f32[18,32,3]{2,1,0:T(8,128)}', space=vmem, size = 0x48000, scoped, tag = 'scratch operand']
  #allocation3 [shape = 'f32[10,24,8]{2,1,0:T(8,128)}', space=vmem, size = 0x1e000, scoped, tag = 'scratch operand']
  #allocation4 [shape = 'f32[6,20,16]{2,1,0:T(8,128)}', space=vmem, size = 0x12000, scoped, tag = 'scratch operand']
  %s0 = inlined_call_operand.vmem [shape: f32[2,16,16,3], index: 0, kind: input, shape index: {}]
  %s1 = inlined_call_operand.vmem [shape: f32[1,3], index: 1, kind: input, shape index: {}]
  %s2 = inlined_call_operand.vmem [shape: f32[1,3], index: 2, kind: input, shape index: {}]
  %s3 = inlined_call_operand.vmem [shape: bf16[27,8], index: 3, kind: input, shape index: {}]
  %s4 = inlined_call_operand.vmem [shape: f32[1,8], index: 4, kind: input, shape index: {}]
  %s5 = inlined_call_operand.vmem [shape: f32[1,8], index: 5, kind: input, shape index: {}]
  %s6 = inlined_call_operand.vmem [shape: bf16[72,16], index: 6, kind: input, shape index: {}]
  %s7 = inlined_call_operand.vmem [shape: f32[1,16], index: 7, kind: input, shape index: {}]
  %s8 = inlined_call_operand.vmem [shape: f32[1,16], index: 8, kind: input, shape index: {}]
  %s9 = inlined_call_operand.vmem [shape: bf16[144,512], index: 9, kind: input, shape index: {}]
  %s10 = inlined_call_operand.vmem [shape: f32[1,512], index: 10, kind: input, shape index: {}]
  %s11 = inlined_call_operand.vmem [shape: f32[1,512], index: 11, kind: input, shape index: {}]
  %s12 = inlined_call_operand.vmem [shape: f32[512,10], index: 12, kind: input, shape index: {}]
  %s13 = inlined_call_operand.vmem [shape: f32[1,10], index: 13, kind: input, shape index: {}]
  %s14 = inlined_call_operand.hbm [shape: f32[2,1,10], index: 14, kind: output, shape index: {}]
  %s15 = sld [smem:[#allocation0]]
  $region89: #{forward.1} parent=0
    _
  %s17 = ssub.s32 1, %s15
  %s18 = scalar_select 0, %s17, %s15
  $region1: #{forward.1} parent=0
    #allocation5 [shape = 'u8[1024]{0}', space=vmem, size = 0x400, scoped, tag = 'output window, operand 0']
    #allocation6 [shape = 's32[2]{0}', space=sflag, size = 0x8, scoped, tag = 'scoped memory for forward.1']
    %19 = vsyncpa [#allocation6], 0
    %s20 = scalar_lea.sflag [#allocation6], 1
    %21 = vsyncpa %s20, 0
    loop: start=0, step=1, limit=4
    $region2: #{forward.1} parent=1 // loop_pre_header
      _
    $region3: #{forward.1} parent=1 // loop_header
      %s23 = sphi 0, %s27
      %p24 = scmp.ge.s32.totalorder %s23, 4
      %s33 = sphi 0, %s35
      %s36 = sphi 0, %s33
      %s37 = sphi 0, %s36
      %s53 = sphi 0, %s37
      %s57 = sphi 0, %s57
      %s59 = sphi 0, %s57
      %s60 = sphi 0, %s59
      %s74 = sphi 0, %s60
      %s78 = sphi 0, %s78
      %s80 = sphi 0, %s78
      %s81 = sphi 0, %s80
      %s95 = sphi 0, %s81
      %s99 = sphi 0, %s99
      %s101 = sphi 0, %s99
      %s102 = sphi 0, %s101
      %s116 = sphi 0, %s102
      %s120 = sphi 0, %s120
      %s122 = sphi 0, %s120
      %s123 = sphi 0, %s122
      %s137 = sphi 0, %s123
      %s141 = sphi 0, %s141
      %s143 = sphi 0, %s141
      %s144 = sphi 0, %s143
      %s158 = sphi 0, %s144
      %s162 = sphi 0, %s162
      %s164 = sphi 0, %s162
      %s165 = sphi 0, %s164
      %s179 = sphi 0, %s165
      %s183 = sphi 0, %s183
      %s185 = sphi 0, %s183
      %s186 = sphi 0, %s185
      %s200 = sphi 0, %s186
      %s204 = sphi 0, %s204
      %s206 = sphi 0, %s204
      %s207 = sphi 0, %s206
      %s221 = sphi 0, %s207
      %s225 = sphi 0, %s225
      %s227 = sphi 0, %s225
      %s228 = sphi 0, %s227
      %s242 = sphi 0, %s228
      %s246 = sphi 0, %s246
      %s248 = sphi 0, %s246
      %s249 = sphi 0, %s248
      %s263 = sphi 0, %s249
      %s267 = sphi 0, %s267
      %s269 = sphi 0, %s267
      %s270 = sphi 0, %s269
      %s284 = sphi 0, %s270
      %s288 = sphi 0, %s288
      %s290 = sphi 0, %s288
      %s291 = sphi 0, %s290
      %s305 = sphi 0, %s291
      %s309 = sphi 0, %s309
      %s311 = sphi 0, %s309
      %s312 = sphi 0, %s311
      %s326 = sphi 0, %s312
      %s332 = sphi 0, %s334
      %s335 = sphi 0, %s332
      %s336 = sphi 0, %s335
      %s352 = sphi 0, %s336
    $region4: #{forward.1} parent=1 // loop_header_branch
      %26 = sbr.rel (%p24) target = $region8
    $region5: #{forward.1} parent=1 // loop_body
      %s28 = ssub.s32 %s23, 1
      %s29 = ssub.s32 %s23, 2
      %s30 = sadd.s32 %s23, 1
      %s31 = ssub.s32 %s23, %s30
      %p32 = scmp.eq.s32.totalorder %s31, 0
      %s34 = sadd.s32 %s33, 1
      %s35 = scalar_select %p32, %s33, %s34
      %p38 = pneg %p32
      %p39 = scmp.eq.s32.totalorder %s23, 1
      %p40 = por %p38, %p39
      %p41 = scmp.ne.s32.totalorder %s33, %s36
      %p42 = scmp.eq.s32.totalorder %s23, 0
      %p43 = por %p41, %p42
      %p44 = scmp.ne.s32.totalorder %s33, %s36
      %p45 = scmp.eq.s32.totalorder %s28, 1
      %p46 = por %p44, %p45
      %p47 = scmp.ne.s32.totalorder %s36, %s37
      %p48 = scmp.eq.s32.totalorder %s28, 0
      %p49 = por %p47, %p48
      %p50 = scmp.ne.s32.totalorder %s36, %s37
      %p51 = scmp.eq.s32.totalorder %s29, 1
      %p52 = por %p50, %p51
      %p54 = scmp.ne.s32.totalorder %s37, %s53
      %p55 = scmp.eq.s32.totalorder %s29, 0
      %p56 = por %p54, %p55
      %s58 = sadd.s32 %s57, 1
      %p61 = scmp.eq.s32.totalorder %s23, 1
      %p62 = scmp.ne.s32.totalorder %s57, %s59
      %p63 = scmp.eq.s32.totalorder %s23, 0
      %p64 = por %p62, %p63
      %p65 = scmp.ne.s32.totalorder %s57, %s59
      %p66 = scmp.eq.s32.totalorder %s28, 1
      %p67 = por %p65, %p66
      %p68 = scmp.ne.s32.totalorder %s59, %s60
      %p69 = scmp.eq.s32.totalorder %s28, 0
      %p70 = por %p68, %p69
      %p71 = scmp.ne.s32.totalorder %s59, %s60
      %p72 = scmp.eq.s32.totalorder %s29, 1
      %p73 = por %p71, %p72
      %p75 = scmp.ne.s32.totalorder %s60, %s74
      %p76 = scmp.eq.s32.totalorder %s29, 0
      %p77 = por %p75, %p76
      %s79 = sadd.s32 %s78, 1
      %p82 = scmp.eq.s32.totalorder %s23, 1
      %p83 = scmp.ne.s32.totalorder %s78, %s80
      %p84 = scmp.eq.s32.totalorder %s23, 0
      %p85 = por %p83, %p84
      %p86 = scmp.ne.s32.totalorder %s78, %s80
      %p87 = scmp.eq.s32.totalorder %s28, 1
      %p88 = por %p86, %p87
      %p89 = scmp.ne.s32.totalorder %s80, %s81
      %p90 = scmp.eq.s32.totalorder %s28, 0
      %p91 = por %p89, %p90
      %p92 = scmp.ne.s32.totalorder %s80, %s81
      %p93 = scmp.eq.s32.totalorder %s29, 1
      %p94 = por %p92, %p93
      %p96 = scmp.ne.s32.totalorder %s81, %s95
      %p97 = scmp.eq.s32.totalorder %s29, 0
      %p98 = por %p96, %p97
      %s100 = sadd.s32 %s99, 1
      %p103 = scmp.eq.s32.totalorder %s23, 1
      %p104 = scmp.ne.s32.totalorder %s99, %s101
      %p105 = scmp.eq.s32.totalorder %s23, 0
      %p106 = por %p104, %p105
      %p107 = scmp.ne.s32.totalorder %s99, %s101
      %p108 = scmp.eq.s32.totalorder %s28, 1
      %p109 = por %p107, %p108
      %p110 = scmp.ne.s32.totalorder %s101, %s102
      %p111 = scmp.eq.s32.totalorder %s28, 0
      %p112 = por %p110, %p111
      %p113 = scmp.ne.s32.totalorder %s101, %s102
      %p114 = scmp.eq.s32.totalorder %s29, 1
      %p115 = por %p113, %p114
      %p117 = scmp.ne.s32.totalorder %s102, %s116
      %p118 = scmp.eq.s32.totalorder %s29, 0
      %p119 = por %p117, %p118
      %s121 = sadd.s32 %s120, 1
      %p124 = scmp.eq.s32.totalorder %s23, 1
      %p125 = scmp.ne.s32.totalorder %s120, %s122
      %p126 = scmp.eq.s32.totalorder %s23, 0
      %p127 = por %p125, %p126
      %p128 = scmp.ne.s32.totalorder %s120, %s122
      %p129 = scmp.eq.s32.totalorder %s28, 1
      %p130 = por %p128, %p129
      %p131 = scmp.ne.s32.totalorder %s122, %s123
      %p132 = scmp.eq.s32.totalorder %s28, 0
      %p133 = por %p131, %p132
      %p134 = scmp.ne.s32.totalorder %s122, %s123
      %p135 = scmp.eq.s32.totalorder %s29, 1
      %p136 = por %p134, %p135
      %p138 = scmp.ne.s32.totalorder %s123, %s137
      %p139 = scmp.eq.s32.totalorder %s29, 0
      %p140 = por %p138, %p139
      %s142 = sadd.s32 %s141, 1
      %p145 = scmp.eq.s32.totalorder %s23, 1
      %p146 = scmp.ne.s32.totalorder %s141, %s143
      %p147 = scmp.eq.s32.totalorder %s23, 0
      %p148 = por %p146, %p147
      %p149 = scmp.ne.s32.totalorder %s141, %s143
      %p150 = scmp.eq.s32.totalorder %s28, 1
      %p151 = por %p149, %p150
      %p152 = scmp.ne.s32.totalorder %s143, %s144
      %p153 = scmp.eq.s32.totalorder %s28, 0
      %p154 = por %p152, %p153
      %p155 = scmp.ne.s32.totalorder %s143, %s144
      %p156 = scmp.eq.s32.totalorder %s29, 1
      %p157 = por %p155, %p156
      %p159 = scmp.ne.s32.totalorder %s144, %s158
      %p160 = scmp.eq.s32.totalorder %s29, 0
      %p161 = por %p159, %p160
      %s163 = sadd.s32 %s162, 1
      %p166 = scmp.eq.s32.totalorder %s23, 1
      %p167 = scmp.ne.s32.totalorder %s162, %s164
      %p168 = scmp.eq.s32.totalorder %s23, 0
      %p169 = por %p167, %p168
      %p170 = scmp.ne.s32.totalorder %s162, %s164
      %p171 = scmp.eq.s32.totalorder %s28, 1
      %p172 = por %p170, %p171
      %p173 = scmp.ne.s32.totalorder %s164, %s165
      %p174 = scmp.eq.s32.totalorder %s28, 0
      %p175 = por %p173, %p174
      %p176 = scmp.ne.s32.totalorder %s164, %s165
      %p177 = scmp.eq.s32.totalorder %s29, 1
      %p178 = por %p176, %p177
      %p180 = scmp.ne.s32.totalorder %s165, %s179
      %p181 = scmp.eq.s32.totalorder %s29, 0
      %p182 = por %p180, %p181
      %s184 = sadd.s32 %s183, 1
      %p187 = scmp.eq.s32.totalorder %s23, 1
      %p188 = scmp.ne.s32.totalorder %s183, %s185
      %p189 = scmp.eq.s32.totalorder %s23, 0
      %p190 = por %p188, %p189
      %p191 = scmp.ne.s32.totalorder %s183, %s185
      %p192 = scmp.eq.s32.totalorder %s28, 1
      %p193 = por %p191, %p192
      %p194 = scmp.ne.s32.totalorder %s185, %s186
      %p195 = scmp.eq.s32.totalorder %s28, 0
      %p196 = por %p194, %p195
      %p197 = scmp.ne.s32.totalorder %s185, %s186
      %p198 = scmp.eq.s32.totalorder %s29, 1
      %p199 = por %p197, %p198
      %p201 = scmp.ne.s32.totalorder %s186, %s200
      %p202 = scmp.eq.s32.totalorder %s29, 0
      %p203 = por %p201, %p202
      %s205 = sadd.s32 %s204, 1
      %p208 = scmp.eq.s32.totalorder %s23, 1
      %p209 = scmp.ne.s32.totalorder %s204, %s206
      %p210 = scmp.eq.s32.totalorder %s23, 0
      %p211 = por %p209, %p210
      %p212 = scmp.ne.s32.totalorder %s204, %s206
      %p213 = scmp.eq.s32.totalorder %s28, 1
      %p214 = por %p212, %p213
      %p215 = scmp.ne.s32.totalorder %s206, %s207
      %p216 = scmp.eq.s32.totalorder %s28, 0
      %p217 = por %p215, %p216
      %p218 = scmp.ne.s32.totalorder %s206, %s207
      %p219 = scmp.eq.s32.totalorder %s29, 1
      %p220 = por %p218, %p219
      %p222 = scmp.ne.s32.totalorder %s207, %s221
      %p223 = scmp.eq.s32.totalorder %s29, 0
      %p224 = por %p222, %p223
      %s226 = sadd.s32 %s225, 1
      %p229 = scmp.eq.s32.totalorder %s23, 1
      %p230 = scmp.ne.s32.totalorder %s225, %s227
      %p231 = scmp.eq.s32.totalorder %s23, 0
      %p232 = por %p230, %p231
      %p233 = scmp.ne.s32.totalorder %s225, %s227
      %p234 = scmp.eq.s32.totalorder %s28, 1
      %p235 = por %p233, %p234
      %p236 = scmp.ne.s32.totalorder %s227, %s228
      %p237 = scmp.eq.s32.totalorder %s28, 0
      %p238 = por %p236, %p237
      %p239 = scmp.ne.s32.totalorder %s227, %s228
      %p240 = scmp.eq.s32.totalorder %s29, 1
      %p241 = por %p239, %p240
      %p243 = scmp.ne.s32.totalorder %s228, %s242
      %p244 = scmp.eq.s32.totalorder %s29, 0
      %p245 = por %p243, %p244
      %s247 = sadd.s32 %s246, 1
      %p250 = scmp.eq.s32.totalorder %s23, 1
      %p251 = scmp.ne.s32.totalorder %s246, %s248
      %p252 = scmp.eq.s32.totalorder %s23, 0
      %p253 = por %p251, %p252
      %p254 = scmp.ne.s32.totalorder %s246, %s248
      %p255 = scmp.eq.s32.totalorder %s28, 1
      %p256 = por %p254, %p255
      %p257 = scmp.ne.s32.totalorder %s248, %s249
      %p258 = scmp.eq.s32.totalorder %s28, 0
      %p259 = por %p257, %p258
      %p260 = scmp.ne.s32.totalorder %s248, %s249
      %p261 = scmp.eq.s32.totalorder %s29, 1
      %p262 = por %p260, %p261
      %p264 = scmp.ne.s32.totalorder %s249, %s263
      %p265 = scmp.eq.s32.totalorder %s29, 0
      %p266 = por %p264, %p265
      %s268 = sadd.s32 %s267, 1
      %p271 = scmp.eq.s32.totalorder %s23, 1
      %p272 = scmp.ne.s32.totalorder %s267, %s269
      %p273 = scmp.eq.s32.totalorder %s23, 0
      %p274 = por %p272, %p273
      %p275 = scmp.ne.s32.totalorder %s267, %s269
      %p276 = scmp.eq.s32.totalorder %s28, 1
      %p277 = por %p275, %p276
      %p278 = scmp.ne.s32.totalorder %s269, %s270
      %p279 = scmp.eq.s32.totalorder %s28, 0
      %p280 = por %p278, %p279
      %p281 = scmp.ne.s32.totalorder %s269, %s270
      %p282 = scmp.eq.s32.totalorder %s29, 1
      %p283 = por %p281, %p282
      %p285 = scmp.ne.s32.totalorder %s270, %s284
      %p286 = scmp.eq.s32.totalorder %s29, 0
      %p287 = por %p285, %p286
      %s289 = sadd.s32 %s288, 1
      %p292 = scmp.eq.s32.totalorder %s23, 1
      %p293 = scmp.ne.s32.totalorder %s288, %s290
      %p294 = scmp.eq.s32.totalorder %s23, 0
      %p295 = por %p293, %p294
      %p296 = scmp.ne.s32.totalorder %s288, %s290
      %p297 = scmp.eq.s32.totalorder %s28, 1
      %p298 = por %p296, %p297
      %p299 = scmp.ne.s32.totalorder %s290, %s291
      %p300 = scmp.eq.s32.totalorder %s28, 0
      %p301 = por %p299, %p300
      %p302 = scmp.ne.s32.totalorder %s290, %s291
      %p303 = scmp.eq.s32.totalorder %s29, 1
      %p304 = por %p302, %p303
      %p306 = scmp.ne.s32.totalorder %s291, %s305
      %p307 = scmp.eq.s32.totalorder %s29, 0
      %p308 = por %p306, %p307
      %s310 = sadd.s32 %s309, 1
      %p313 = scmp.eq.s32.totalorder %s23, 1
      %p314 = scmp.ne.s32.totalorder %s309, %s311
      %p315 = scmp.eq.s32.totalorder %s23, 0
      %p316 = por %p314, %p315
      %p317 = scmp.ne.s32.totalorder %s309, %s311
      %p318 = scmp.eq.s32.totalorder %s28, 1
      %p319 = por %p317, %p318
      %p320 = scmp.ne.s32.totalorder %s311, %s312
      %p321 = scmp.eq.s32.totalorder %s28, 0
      %p322 = por %p320, %p321
      %p323 = scmp.ne.s32.totalorder %s311, %s312
      %p324 = scmp.eq.s32.totalorder %s29, 1
      %p325 = por %p323, %p324
      %p327 = scmp.ne.s32.totalorder %s312, %s326
      %p328 = scmp.eq.s32.totalorder %s29, 0
      %p329 = por %p327, %p328
      %s330 = ssub.s32 %s23, %s30
      %p331 = scmp.eq.s32.totalorder %s330, 0
      %s333 = sadd.s32 %s332, 1
      %s334 = scalar_select %p331, %s332, %s333
      %p337 = pneg %p331
      %p338 = scmp.eq.s32.totalorder %s23, 1
      %p339 = por %p337, %p338
      %p340 = scmp.ne.s32.totalorder %s332, %s335
      %p341 = scmp.eq.s32.totalorder %s23, 0
      %p342 = por %p340, %p341
      %p343 = scmp.ne.s32.totalorder %s332, %s335
      %p344 = scmp.eq.s32.totalorder %s28, 1
      %p345 = por %p343, %p344
      %p346 = scmp.ne.s32.totalorder %s335, %s336
      %p347 = scmp.eq.s32.totalorder %s28, 0
      %p348 = por %p346, %p347
      %p349 = scmp.ne.s32.totalorder %s335, %s336
      %p350 = scmp.eq.s32.totalorder %s29, 1
      %p351 = por %p349, %p350
      %p353 = scmp.ne.s32.totalorder %s336, %s352
      %p354 = scmp.eq.s32.totalorder %s29, 0
      %p355 = por %p353, %p354
      %p356 = scmp.le.s32.totalorder 1, %s23
      %p357 = scmp.lt.s32.totalorder %s23, 3
      %p358 = pnand %p356, %p357
      %p359 = pneg %p358
      // Predicated region
      $region9: #{forward.1} parent=5 // pred_check
        _
      $region10: #{forward.1} parent=5 // pred_check_branch
        %361 = sbr.rel (%p358) target = $region12
      $region11: #{forward.1} parent=5 // pred_region
        %s362 = ssub.s32 %s23, 1
        // Predicated region
        $region13: #{forward.1} parent=11 // pred_check
          %p363 = pneg %p70
        $region14: #{forward.1} parent=11 // pred_check_branch
          %365 = sbr.rel (%p363) target = $region16
        $region15: #{forward.1} parent=11 // pred_region
          _
        $region16: #{forward.1} parent=11 // pred_fallthru
          _
        // Predicated region
        $region17: #{forward.1} parent=11 // pred_check
          %p366 = pneg %p91
        $region18: #{forward.1} parent=11 // pred_check_branch
          %368 = sbr.rel (%p366) target = $region20
        $region19: #{forward.1} parent=11 // pred_region
          _
        $region20: #{forward.1} parent=11 // pred_fallthru
          _
        // Predicated region
        $region21: #{forward.1} parent=11 // pred_check
          %p369 = pneg %p112
        $region22: #{forward.1} parent=11 // pred_check_branch
          %371 = sbr.rel (%p369) target = $region24
        $region23: #{forward.1} parent=11 // pred_region
          _
        $region24: #{forward.1} parent=11 // pred_fallthru
          _
        // Predicated region
        $region25: #{forward.1} parent=11 // pred_check
          %p372 = pneg %p133
        $region26: #{forward.1} parent=11 // pred_check_branch
          %374 = sbr.rel (%p372) target = $region28
        $region27: #{forward.1} parent=11 // pred_region
          _
        $region28: #{forward.1} parent=11 // pred_fallthru
          _
        // Predicated region
        $region29: #{forward.1} parent=11 // pred_check
          %p375 = pneg %p154
        $region30: #{forward.1} parent=11 // pred_check_branch
          %377 = sbr.rel (%p375) target = $region32
        $region31: #{forward.1} parent=11 // pred_region
          _
        $region32: #{forward.1} parent=11 // pred_fallthru
          _
        // Predicated region
        $region33: #{forward.1} parent=11 // pred_check
          %p378 = pneg %p175
        $region34: #{forward.1} parent=11 // pred_check_branch
          %380 = sbr.rel (%p378) target = $region36
        $region35: #{forward.1} parent=11 // pred_region
          _
        $region36: #{forward.1} parent=11 // pred_fallthru
          _
        // Predicated region
        $region37: #{forward.1} parent=11 // pred_check
          %p381 = pneg %p196
        $region38: #{forward.1} parent=11 // pred_check_branch
          %383 = sbr.rel (%p381) target = $region40
        $region39: #{forward.1} parent=11 // pred_region
          _
        $region40: #{forward.1} parent=11 // pred_fallthru
          _
        // Predicated region
        $region41: #{forward.1} parent=11 // pred_check
          %p384 = pneg %p217
        $region42: #{forward.1} parent=11 // pred_check_branch
          %386 = sbr.rel (%p384) target = $region44
        $region43: #{forward.1} parent=11 // pred_region
          _
        $region44: #{forward.1} parent=11 // pred_fallthru
          _
        // Predicated region
        $region45: #{forward.1} parent=11 // pred_check
          %p387 = pneg %p238
        $region46: #{forward.1} parent=11 // pred_check_branch
          %389 = sbr.rel (%p387) target = $region48
        $region47: #{forward.1} parent=11 // pred_region
          _
        $region48: #{forward.1} parent=11 // pred_fallthru
          _
        // Predicated region
        $region49: #{forward.1} parent=11 // pred_check
          %p390 = pneg %p259
        $region50: #{forward.1} parent=11 // pred_check_branch
          %392 = sbr.rel (%p390) target = $region52
        $region51: #{forward.1} parent=11 // pred_region
          _
        $region52: #{forward.1} parent=11 // pred_fallthru
          _
        // Predicated region
        $region53: #{forward.1} parent=11 // pred_check
          %p393 = pneg %p280
        $region54: #{forward.1} parent=11 // pred_check_branch
          %395 = sbr.rel (%p393) target = $region56
        $region55: #{forward.1} parent=11 // pred_region
          _
        $region56: #{forward.1} parent=11 // pred_fallthru
          _
        // Predicated region
        $region57: #{forward.1} parent=11 // pred_check
          %p396 = pneg %p301
        $region58: #{forward.1} parent=11 // pred_check_branch
          %398 = sbr.rel (%p396) target = $region60
        $region59: #{forward.1} parent=11 // pred_region
          _
        $region60: #{forward.1} parent=11 // pred_fallthru
          _
        // Predicated region
        $region61: #{forward.1} parent=11 // pred_check
          %p399 = pneg %p322
        $region62: #{forward.1} parent=11 // pred_check_branch
          %401 = sbr.rel (%p399) target = $region64
        $region63: #{forward.1} parent=11 // pred_region
          _
        $region64: #{forward.1} parent=11 // pred_fallthru
          _
      $region12: #{forward.1} parent=5 // pred_fallthru
        _
      %p402 = scmp.lt.s32.totalorder %s23, 2
      // Predicated region
      $region65: #{forward.1} parent=5 // pred_check
        %p403 = pneg %p402
      $region66: #{forward.1} parent=5 // pred_check_branch
        %405 = sbr.rel (%p403) target = $region68
      $region67: #{forward.1} parent=5 // pred_region
        // Predicated region
        $region69: #{forward.1} parent=67 // pred_check
          %p406 = pneg %p43
        $region70: #{forward.1} parent=67 // pred_check_branch
          %408 = sbr.rel (%p406) target = $region72
        $region71: #{forward.1} parent=67 // pred_region
          %p409 = scmp.lt.s32.totalorder %s23, 1
          %s410 = scalar_select %p409, %s23, 1
          %s411 = smul.addr %s410, 32
          %s412 = smul.addr %s411, 8
          %s413 = scalar_lea.vmem %s0, %s412
        $region72: #{forward.1} parent=67 // pred_fallthru
          _
      $region68: #{forward.1} parent=5 // pred_fallthru
        _
      %p414 = scmp.le.s32.totalorder 1, %s23
      %p415 = scmp.lt.s32.totalorder %s23, 3
      %p416 = pnand %p414, %p415
      %p417 = pneg %p416
      // Predicated region
      $region73: #{forward.1} parent=5 // pred_check
        _
      $region74: #{forward.1} parent=5 // pred_check_branch
        %419 = sbr.rel (%p416) target = $region76
      $region75: #{forward.1} parent=5 // pred_region
        %s420 = ssub.s32 %s23, 1
        %p421 = scmp.lt.s32.totalorder %s28, 1
        %s422 = scalar_select %p421, %s28, 1
        %s423 = smul.addr %s422, 32
        %s424 = smul.addr %s423, 8
        %s425 = scalar_lea.vmem %s0, %s424
        %p426 = pneg %p49
        %p427 = pneg %p46
        %p428 = pneg %p70
        %p429 = pneg %p67
        %p430 = pneg %p91
        %p431 = pneg %p88
        %p432 = pneg %p112
        %p433 = pneg %p109
        %p434 = pneg %p133
        %p435 = pneg %p130
        %p436 = pneg %p154
        %p437 = pneg %p151
        %p438 = pneg %p175
        %p439 = pneg %p172
        %p440 = pneg %p196
        %p441 = pneg %p193
        %p442 = pneg %p217
        %p443 = pneg %p214
        %p444 = pneg %p238
        %p445 = pneg %p235
        %p446 = pneg %p259
        %p447 = pneg %p256
        %p448 = pneg %p280
        %p449 = pneg %p277
        %p450 = pneg %p301
        %p451 = pneg %p298
        %p452 = pneg %p322
        %p453 = pneg %p319
        %p454 = pneg %p348
        %p455 = pneg %p345
        %s456 = sand.u32 %s335, 1
        %s457 = scalar_lea.sflag [#allocation6], %s456
        %s458 = sand.u32 %s335, 1
        %s459 = scalar_lea.vmem [#allocation5], %s458
        %p460 = scmp.lt.s32.totalorder %s28, 1
        %s461 = scalar_select %p460, %s28, 1
        %s462 = smul.addr %s461, 32
        %s463 = smul.addr %s462, 8
        %s464 = scalar_lea.vmem %s0, %s463
        %v466 = vld [vmem:[%s464] sm:$0xff]
        %v467 = vld [vmem:[%s464 + $0x8] sm:$0xff]
        %v468 = vld [vmem:[%s464 + $0x10] sm:$0xff]
        %v469 = vld [vmem:[%s464 + $0x18] sm:$0xff]
        %v470 = vld [vmem:[%s464 + $0x20] sm:$0xff]
        %v471 = vld [vmem:[%s464 + $0x28] sm:$0xff]
        %v472 = vld [vmem:[%s464 + $0x30] sm:$0xff]
        %v473 = vld [vmem:[%s464 + $0x38] sm:$0xff]
        %v474 = vld [vmem:[%s464 + $0x40] sm:$0xff]
        %v475 = vld [vmem:[%s464 + $0x48] sm:$0xff]
        %v476 = vld [vmem:[%s464 + $0x50] sm:$0xff]
        %v477 = vld [vmem:[%s464 + $0x58] sm:$0xff]
        %v478 = vld [vmem:[%s464 + $0x60] sm:$0xff]
        %v479 = vld [vmem:[%s464 + $0x68] sm:$0xff]
        %v480 = vld [vmem:[%s464 + $0x70] sm:$0xff]
        %v481 = vld [vmem:[%s464 + $0x78] sm:$0xff]
        %v482 = vld [vmem:[%s464 + $0x80] sm:$0xff]
        %v483 = vld [vmem:[%s464 + $0x88] sm:$0xff]
        %v484 = vld [vmem:[%s464 + $0x90] sm:$0xff]
        %v485 = vld [vmem:[%s464 + $0x98] sm:$0xff]
        %v486 = vld [vmem:[%s464 + $0xa0] sm:$0xff]
        %v487 = vld [vmem:[%s464 + $0xa8] sm:$0xff]
        %v488 = vld [vmem:[%s464 + $0xb0] sm:$0xff]
        %v489 = vld [vmem:[%s464 + $0xb8] sm:$0xff]
        %v490 = vld [vmem:[%s464 + $0xc0] sm:$0xff]
        %v491 = vld [vmem:[%s464 + $0xc8] sm:$0xff]
        %v492 = vld [vmem:[%s464 + $0xd0] sm:$0xff]
        %v493 = vld [vmem:[%s464 + $0xd8] sm:$0xff]
        %v494 = vld [vmem:[%s464 + $0xe0] sm:$0xff]
        %v495 = vld [vmem:[%s464 + $0xe8] sm:$0xff]
        %v496 = vld [vmem:[%s464 + $0xf0] sm:$0xff]
        %v497 = vld [vmem:[%s464 + $0xf8] sm:$0xff]
        %v498 = vld [vmem:[%s1] sm:$0x1]
        %v500 = vlaneseq
        %v501 = vshrl.u32 %v500, 7
        %v502 = vsub.s32 0, %v501
        %v503 = vrot.slane %v498, %v502
        %v505 = vsub.f32 %v466, %v503
        %v506 = vsub.f32 %v467, %v503
        %v507 = vsub.f32 %v468, %v503
        %v508 = vsub.f32 %v469, %v503
        %v509 = vsub.f32 %v470, %v503
        %v510 = vsub.f32 %v471, %v503
        %v511 = vsub.f32 %v472, %v503
        %v512 = vsub.f32 %v473, %v503
        %v513 = vsub.f32 %v474, %v503
        %v514 = vsub.f32 %v475, %v503
        %v515 = vsub.f32 %v476, %v503
        %v516 = vsub.f32 %v477, %v503
        %v517 = vsub.f32 %v478, %v503
        %v518 = vsub.f32 %v479, %v503
        %v519 = vsub.f32 %v480, %v503
        %v520 = vsub.f32 %v481, %v503
        %v521 = vsub.f32 %v482, %v503
        %v522 = vsub.f32 %v483, %v503
        %v523 = vsub.f32 %v484, %v503
        %v524 = vsub.f32 %v485, %v503
        %v525 = vsub.f32 %v486, %v503
        %v526 = vsub.f32 %v487, %v503
        %v527 = vsub.f32 %v488, %v503
        %v528 = vsub.f32 %v489, %v503
        %v529 = vsub.f32 %v490, %v503
        %v530 = vsub.f32 %v491, %v503
        %v531 = vsub.f32 %v492, %v503
        %v532 = vsub.f32 %v493, %v503
        %v533 = vsub.f32 %v494, %v503
        %v534 = vsub.f32 %v495, %v503
        %v535 = vsub.f32 %v496, %v503
        %v536 = vsub.f32 %v497, %v503
        %v537 = vld [vmem:[%s2] sm:$0x1]
        %v539 = vlaneseq
        %v540 = vshrl.u32 %v539, 7
        %v541 = vsub.s32 0, %v540
        %v542 = vrot.slane %v537, %v541
        %v544 = vmul.f32 %v505, %v542
        %v545 = vmul.f32 %v506, %v542
        %v546 = vmul.f32 %v507, %v542
        %v547 = vmul.f32 %v508, %v542
        %v548 = vmul.f32 %v509, %v542
        %v549 = vmul.f32 %v510, %v542
        %v550 = vmul.f32 %v511, %v542
        %v551 = vmul.f32 %v512, %v542
        %v552 = vmul.f32 %v513, %v542
        %v553 = vmul.f32 %v514, %v542
        %v554 = vmul.f32 %v515, %v542
        %v555 = vmul.f32 %v516, %v542
        %v556 = vmul.f32 %v517, %v542
        %v557 = vmul.f32 %v518, %v542
        %v558 = vmul.f32 %v519, %v542
        %v559 = vmul.f32 %v520, %v542
        %v560 = vmul.f32 %v521, %v542
        %v561 = vmul.f32 %v522, %v542
        %v562 = vmul.f32 %v523, %v542
        %v563 = vmul.f32 %v524, %v542
        %v564 = vmul.f32 %v525, %v542
        %v565 = vmul.f32 %v526, %v542
        %v566 = vmul.f32 %v527, %v542
        %v567 = vmul.f32 %v528, %v542
        %v568 = vmul.f32 %v529, %v542
        %v569 = vmul.f32 %v530, %v542
        %v570 = vmul.f32 %v531, %v542
        %v571 = vmul.f32 %v532, %v542
        %v572 = vmul.f32 %v533, %v542
        %v573 = vmul.f32 %v534, %v542
        %v574 = vmul.f32 %v535, %v542
        %v575 = vmul.f32 %v536, %v542
        %vm576 = vcmask 23552
        %577 = vst.msk [vmem:[#allocation2] sm:$0xff] %vm576, 0.0
        %578 = vst.msk [vmem:[#allocation2 + $0x8] sm:$0xff] %vm576, 0.0
        %579 = vst.msk [vmem:[#allocation2 + $0x10] sm:$0xff] %vm576, 0.0
        %580 = vst.msk [vmem:[#allocation2 + $0x18] sm:$0xff] %vm576, 0.0
        %581 = vst.msk [vmem:[#allocation2 + $0x20] sm:$0xff] %vm576, 0.0
        %582 = vst.msk [vmem:[#allocation2 + $0x28] sm:$0xff] %vm576, 0.0
        %583 = vst.msk [vmem:[#allocation2 + $0x30] sm:$0xff] %vm576, 0.0
        %584 = vst.msk [vmem:[#allocation2 + $0x38] sm:$0xff] %vm576, 0.0
        %585 = vst.msk [vmem:[#allocation2 + $0x40] sm:$0xff] %vm576, 0.0
        %586 = vst.msk [vmem:[#allocation2 + $0x48] sm:$0xff] %vm576, 0.0
        %587 = vst.msk [vmem:[#allocation2 + $0x50] sm:$0xff] %vm576, 0.0
        %588 = vst.msk [vmem:[#allocation2 + $0x58] sm:$0xff] %vm576, 0.0
        %589 = vst.msk [vmem:[#allocation2 + $0x60] sm:$0xff] %vm576, 0.0
        %590 = vst.msk [vmem:[#allocation2 + $0x68] sm:$0xff] %vm576, 0.0
        %591 = vst.msk [vmem:[#allocation2 + $0x70] sm:$0xff] %vm576, 0.0
        %592 = vst.msk [vmem:[#allocation2 + $0x78] sm:$0xff] %vm576, 0.0
        %593 = vst.msk [vmem:[#allocation2 + $0x80] sm:$0xff] %vm576, 0.0
        %594 = vst.msk [vmem:[#allocation2 + $0x88] sm:$0xff] %vm576, 0.0
        %595 = vst.msk [vmem:[#allocation2 + $0x90] sm:$0xff] %vm576, 0.0
        %596 = vst.msk [vmem:[#allocation2 + $0x98] sm:$0xff] %vm576, 0.0
        %597 = vst.msk [vmem:[#allocation2 + $0xa0] sm:$0xff] %vm576, 0.0
        %598 = vst.msk [vmem:[#allocation2 + $0xa8] sm:$0xff] %vm576, 0.0
        %599 = vst.msk [vmem:[#allocation2 + $0xb0] sm:$0xff] %vm576, 0.0
        %600 = vst.msk [vmem:[#allocation2 + $0xb8] sm:$0xff] %vm576, 0.0
        %601 = vst.msk [vmem:[#allocation2 + $0xc0] sm:$0xff] %vm576, 0.0
        %602 = vst.msk [vmem:[#allocation2 + $0xc8] sm:$0xff] %vm576, 0.0
        %603 = vst.msk [vmem:[#allocation2 + $0xd0] sm:$0xff] %vm576, 0.0
        %604 = vst.msk [vmem:[#allocation2 + $0xd8] sm:$0xff] %vm576, 0.0
        %605 = vst.msk [vmem:[#allocation2 + $0xe0] sm:$0xff] %vm576, 0.0
        %606 = vst.msk [vmem:[#allocation2 + $0xe8] sm:$0xff] %vm576, 0.0
        %607 = vst.msk [vmem:[#allocation2 + $0xf0] sm:$0xff] %vm576, 0.0
        %608 = vst.msk [vmem:[#allocation2 + $0xf8] sm:$0xff] %vm576, 0.0
        %609 = vst.msk [vmem:[#allocation2 + $0x100] sm:$0xff] %vm576, 0.0
        %610 = vst.msk [vmem:[#allocation2 + $0x108] sm:$0xff] %vm576, 0.0
        %611 = vst.msk [vmem:[#allocation2 + $0x110] sm:$0xff] %vm576, 0.0
        %612 = vst.msk [vmem:[#allocation2 + $0x118] sm:$0xff] %vm576, 0.0
        %613 = vst.msk [vmem:[#allocation2 + $0x120] sm:$0xff] %vm576, 0.0
        %614 = vst.msk [vmem:[#allocation2 + $0x128] sm:$0xff] %vm576, 0.0
        %615 = vst.msk [vmem:[#allocation2 + $0x130] sm:$0xff] %vm576, 0.0
        %616 = vst.msk [vmem:[#allocation2 + $0x138] sm:$0xff] %vm576, 0.0
        %617 = vst.msk [vmem:[#allocation2 + $0x140] sm:$0xff] %vm576, 0.0
        %618 = vst.msk [vmem:[#allocation2 + $0x148] sm:$0xff] %vm576, 0.0
        %619 = vst.msk [vmem:[#allocation2 + $0x150] sm:$0xff] %vm576, 0.0
        %620 = vst.msk [vmem:[#allocation2 + $0x158] sm:$0xff] %vm576, 0.0
        %621 = vst.msk [vmem:[#allocation2 + $0x160] sm:$0xff] %vm576, 0.0
        %622 = vst.msk [vmem:[#allocation2 + $0x168] sm:$0xff] %vm576, 0.0
        %623 = vst.msk [vmem:[#allocation2 + $0x170] sm:$0xff] %vm576, 0.0
        %624 = vst.msk [vmem:[#allocation2 + $0x178] sm:$0xff] %vm576, 0.0
        %625 = vst.msk [vmem:[#allocation2 + $0x180] sm:$0xff] %vm576, 0.0
        %626 = vst.msk [vmem:[#allocation2 + $0x188] sm:$0xff] %vm576, 0.0
        %627 = vst.msk [vmem:[#allocation2 + $0x190] sm:$0xff] %vm576, 0.0
        %628 = vst.msk [vmem:[#allocation2 + $0x198] sm:$0xff] %vm576, 0.0
        %629 = vst.msk [vmem:[#allocation2 + $0x1a0] sm:$0xff] %vm576, 0.0
        %630 = vst.msk [vmem:[#allocation2 + $0x1a8] sm:$0xff] %vm576, 0.0
        %631 = vst.msk [vmem:[#allocation2 + $0x1b0] sm:$0xff] %vm576, 0.0
        %632 = vst.msk [vmem:[#allocation2 + $0x1b8] sm:$0xff] %vm576, 0.0
        %633 = vst.msk [vmem:[#allocation2 + $0x1c0] sm:$0xff] %vm576, 0.0
        %634 = vst.msk [vmem:[#allocation2 + $0x1c8] sm:$0xff] %vm576, 0.0
        %635 = vst.msk [vmem:[#allocation2 + $0x1d0] sm:$0xff] %vm576, 0.0
        %636 = vst.msk [vmem:[#allocation2 + $0x1d8] sm:$0xff] %vm576, 0.0
        %637 = vst.msk [vmem:[#allocation2 + $0x1e0] sm:$0xff] %vm576, 0.0
        %638 = vst.msk [vmem:[#allocation2 + $0x1e8] sm:$0xff] %vm576, 0.0
        %639 = vst.msk [vmem:[#allocation2 + $0x1f0] sm:$0xff] %vm576, 0.0
        %640 = vst.msk [vmem:[#allocation2 + $0x1f8] sm:$0xff] %vm576, 0.0
        %641 = vst.msk [vmem:[#allocation2 + $0x200] sm:$0xff] %vm576, 0.0
        %642 = vst.msk [vmem:[#allocation2 + $0x208] sm:$0xff] %vm576, 0.0
        %643 = vst.msk [vmem:[#allocation2 + $0x210] sm:$0xff] %vm576, 0.0
        %644 = vst.msk [vmem:[#allocation2 + $0x218] sm:$0xff] %vm576, 0.0
        %645 = vst.msk [vmem:[#allocation2 + $0x220] sm:$0xff] %vm576, 0.0
        %646 = vst.msk [vmem:[#allocation2 + $0x228] sm:$0xff] %vm576, 0.0
        %647 = vst.msk [vmem:[#allocation2 + $0x230] sm:$0xff] %vm576, 0.0
        %648 = vst.msk [vmem:[#allocation2 + $0x238] sm:$0xff] %vm576, 0.0
        %s649 = scalar_lea.vmem [#allocation2], 32
        %650 = vst.msk [vmem:[%s649 + $0x8] sm:$0xff] %vm576, %v544
        %651 = vst.msk [vmem:[%s649 + $0x10] sm:$0xff] %vm576, %v545
        %652 = vst.msk [vmem:[%s649 + $0x28] sm:$0xff] %vm576, %v546
        %653 = vst.msk [vmem:[%s649 + $0x30] sm:$0xff] %vm576, %v547
        %654 = vst.msk [vmem:[%s649 + $0x48] sm:$0xff] %vm576, %v548
        %655 = vst.msk [vmem:[%s649 + $0x50] sm:$0xff] %vm576, %v549
        %656 = vst.msk [vmem:[%s649 + $0x68] sm:$0xff] %vm576, %v550
        %657 = vst.msk [vmem:[%s649 + $0x70] sm:$0xff] %vm576, %v551
        %658 = vst.msk [vmem:[%s649 + $0x88] sm:$0xff] %vm576, %v552
        %659 = vst.msk [vmem:[%s649 + $0x90] sm:$0xff] %vm576, %v553
        %660 = vst.msk [vmem:[%s649 + $0xa8] sm:$0xff] %vm576, %v554
        %661 = vst.msk [vmem:[%s649 + $0xb0] sm:$0xff] %vm576, %v555
        %662 = vst.msk [vmem:[%s649 + $0xc8] sm:$0xff] %vm576, %v556
        %663 = vst.msk [vmem:[%s649 + $0xd0] sm:$0xff] %vm576, %v557
        %664 = vst.msk [vmem:[%s649 + $0xe8] sm:$0xff] %vm576, %v558
        %665 = vst.msk [vmem:[%s649 + $0xf0] sm:$0xff] %vm576, %v559
        %666 = vst.msk [vmem:[%s649 + $0x108] sm:$0xff] %vm576, %v560
        %667 = vst.msk [vmem:[%s649 + $0x110] sm:$0xff] %vm576, %v561
        %668 = vst.msk [vmem:[%s649 + $0x128] sm:$0xff] %vm576, %v562
        %669 = vst.msk [vmem:[%s649 + $0x130] sm:$0xff] %vm576, %v563
        %670 = vst.msk [vmem:[%s649 + $0x148] sm:$0xff] %vm576, %v564
        %671 = vst.msk [vmem:[%s649 + $0x150] sm:$0xff] %vm576, %v565
        %672 = vst.msk [vmem:[%s649 + $0x168] sm:$0xff] %vm576, %v566
        %673 = vst.msk [vmem:[%s649 + $0x170] sm:$0xff] %vm576, %v567
        %674 = vst.msk [vmem:[%s649 + $0x188] sm:$0xff] %vm576, %v568
        %675 = vst.msk [vmem:[%s649 + $0x190] sm:$0xff] %vm576, %v569
        %676 = vst.msk [vmem:[%s649 + $0x1a8] sm:$0xff] %vm576, %v570
        %677 = vst.msk [vmem:[%s649 + $0x1b0] sm:$0xff] %vm576, %v571
        %678 = vst.msk [vmem:[%s649 + $0x1c8] sm:$0xff] %vm576, %v572
        %679 = vst.msk [vmem:[%s649 + $0x1d0] sm:$0xff] %vm576, %v573
        %680 = vst.msk [vmem:[%s649 + $0x1e8] sm:$0xff] %vm576, %v574
        %681 = vst.msk [vmem:[%s649 + $0x1f0] sm:$0xff] %vm576, %v575
        %v682 = vld [vmem:[#allocation2 + $0x7] sm:$0xff]
        %v683 = vld [vmem:[#allocation2 + $0xf] sm:$0xff]
        %v684 = vld [vmem:[#allocation2 + $0x27] sm:$0xff]
        %v685 = vld [vmem:[#allocation2 + $0x2f] sm:$0xff]
        %v686 = vld [vmem:[#allocation2 + $0x47] sm:$0xff]
        %v687 = vld [vmem:[#allocation2 + $0x4f] sm:$0xff]
        %v688 = vld [vmem:[#allocation2 + $0x67] sm:$0xff]
        %v689 = vld [vmem:[#allocation2 + $0x6f] sm:$0xff]
        %v690 = vld [vmem:[#allocation2 + $0x87] sm:$0xff]
        %v691 = vld [vmem:[#allocation2 + $0x8f] sm:$0xff]
        %v692 = vld [vmem:[#allocation2 + $0xa7] sm:$0xff]
        %v693 = vld [vmem:[#allocation2 + $0xaf] sm:$0xff]
        %v694 = vld [vmem:[#allocation2 + $0xc7] sm:$0xff]
        %v695 = vld [vmem:[#allocation2 + $0xcf] sm:$0xff]
        %v696 = vld [vmem:[#allocation2 + $0xe7] sm:$0xff]
        %v697 = vld [vmem:[#allocation2 + $0xef] sm:$0xff]
        %v698 = vld [vmem:[#allocation2 + $0x107] sm:$0xff]
        %v699 = vld [vmem:[#allocation2 + $0x10f] sm:$0xff]
        %v700 = vld [vmem:[#allocation2 + $0x127] sm:$0xff]
        %v701 = vld [vmem:[#allocation2 + $0x12f] sm:$0xff]
        %v702 = vld [vmem:[#allocation2 + $0x147] sm:$0xff]
        %v703 = vld [vmem:[#allocation2 + $0x14f] sm:$0xff]
        %v704 = vld [vmem:[#allocation2 + $0x167] sm:$0xff]
        %v705 = vld [vmem:[#allocation2 + $0x16f] sm:$0xff]
        %v706 = vld [vmem:[#allocation2 + $0x187] sm:$0xff]
        %v707 = vld [vmem:[#allocation2 + $0x18f] sm:$0xff]
        %v708 = vld [vmem:[#allocation2 + $0x1a7] sm:$0xff]
        %v709 = vld [vmem:[#allocation2 + $0x1af] sm:$0xff]
        %v710 = vld [vmem:[#allocation2 + $0x1c7] sm:$0xff]
        %v711 = vld [vmem:[#allocation2 + $0x1cf] sm:$0xff]
        %v712 = vld [vmem:[#allocation2 + $0x1e7] sm:$0xff]
        %v713 = vld [vmem:[#allocation2 + $0x1ef] sm:$0xff]
        %v714 = vld [vmem:[#allocation2 + $0x8] sm:$0xff]
        %v715 = vld [vmem:[#allocation2 + $0x10] sm:$0xff]
        %v716 = vld [vmem:[#allocation2 + $0x28] sm:$0xff]
        %v717 = vld [vmem:[#allocation2 + $0x30] sm:$0xff]
        %v718 = vld [vmem:[#allocation2 + $0x48] sm:$0xff]
        %v719 = vld [vmem:[#allocation2 + $0x50] sm:$0xff]
        %v720 = vld [vmem:[#allocation2 + $0x68] sm:$0xff]
        %v721 = vld [vmem:[#allocation2 + $0x70] sm:$0xff]
        %v722 = vld [vmem:[#allocation2 + $0x88] sm:$0xff]
        %v723 = vld [vmem:[#allocation2 + $0x90] sm:$0xff]
        %v724 = vld [vmem:[#allocation2 + $0xa8] sm:$0xff]
        %v725 = vld [vmem:[#allocation2 + $0xb0] sm:$0xff]
        %v726 = vld [vmem:[#allocation2 + $0xc8] sm:$0xff]
        %v727 = vld [vmem:[#allocation2 + $0xd0] sm:$0xff]
        %v728 = vld [vmem:[#allocation2 + $0xe8] sm:$0xff]
        %v729 = vld [vmem:[#allocation2 + $0xf0] sm:$0xff]
        %v730 = vld [vmem:[#allocation2 + $0x108] sm:$0xff]
        %v731 = vld [vmem:[#allocation2 + $0x110] sm:$0xff]
        %v732 = vld [vmem:[#allocation2 + $0x128] sm:$0xff]
        %v733 = vld [vmem:[#allocation2 + $0x130] sm:$0xff]
        %v734 = vld [vmem:[#allocation2 + $0x148] sm:$0xff]
        %v735 = vld [vmem:[#allocation2 + $0x150] sm:$0xff]
        %v736 = vld [vmem:[#allocation2 + $0x168] sm:$0xff]
        %v737 = vld [vmem:[#allocation2 + $0x170] sm:$0xff]
        %v738 = vld [vmem:[#allocation2 + $0x188] sm:$0xff]
        %v739 = vld [vmem:[#allocation2 + $0x190] sm:$0xff]
        %v740 = vld [vmem:[#allocation2 + $0x1a8] sm:$0xff]
        %v741 = vld [vmem:[#allocation2 + $0x1b0] sm:$0xff]
        %v742 = vld [vmem:[#allocation2 + $0x1c8] sm:$0xff]
        %v743 = vld [vmem:[#allocation2 + $0x1d0] sm:$0xff]
        %v744 = vld [vmem:[#allocation2 + $0x1e8] sm:$0xff]
        %v745 = vld [vmem:[#allocation2 + $0x1f0] sm:$0xff]
        %v746 = vld [vmem:[#allocation2 + $0x9] sm:$0xff]
        %v747 = vld [vmem:[#allocation2 + $0x11] sm:$0xff]
        %v748 = vld [vmem:[#allocation2 + $0x29] sm:$0xff]
        %v749 = vld [vmem:[#allocation2 + $0x31] sm:$0xff]
        %v750 = vld [vmem:[#allocation2 + $0x49] sm:$0xff]
        %v751 = vld [vmem:[#allocation2 + $0x51] sm:$0xff]
        %v752 = vld [vmem:[#allocation2 + $0x69] sm:$0xff]
        %v753 = vld [vmem:[#allocation2 + $0x71] sm:$0xff]
        %v754 = vld [vmem:[#allocation2 + $0x89] sm:$0xff]
        %v755 = vld [vmem:[#allocation2 + $0x91] sm:$0xff]
        %v756 = vld [vmem:[#allocation2 + $0xa9] sm:$0xff]
        %v757 = vld [vmem:[#allocation2 + $0xb1] sm:$0xff]
        %v758 = vld [vmem:[#allocation2 + $0xc9] sm:$0xff]
        %v759 = vld [vmem:[#allocation2 + $0xd1] sm:$0xff]
        %v760 = vld [vmem:[#allocation2 + $0xe9] sm:$0xff]
        %v761 = vld [vmem:[#allocation2 + $0xf1] sm:$0xff]
        %v762 = vld [vmem:[#allocation2 + $0x109] sm:$0xff]
        %v763 = vld [vmem:[#allocation2 + $0x111] sm:$0xff]
        %v764 = vld [vmem:[#allocation2 + $0x129] sm:$0xff]
        %v765 = vld [vmem:[#allocation2 + $0x131] sm:$0xff]
        %v766 = vld [vmem:[#allocation2 + $0x149] sm:$0xff]
        %v767 = vld [vmem:[#allocation2 + $0x151] sm:$0xff]
        %v768 = vld [vmem:[#allocation2 + $0x169] sm:$0xff]
        %v769 = vld [vmem:[#allocation2 + $0x171] sm:$0xff]
        %v770 = vld [vmem:[#allocation2 + $0x189] sm:$0xff]
        %v771 = vld [vmem:[#allocation2 + $0x191] sm:$0xff]
        %v772 = vld [vmem:[#allocation2 + $0x1a9] sm:$0xff]
        %v773 = vld [vmem:[#allocation2 + $0x1b1] sm:$0xff]
        %v774 = vld [vmem:[#allocation2 + $0x1c9] sm:$0xff]
        %v775 = vld [vmem:[#allocation2 + $0x1d1] sm:$0xff]
        %v776 = vld [vmem:[#allocation2 + $0x1e9] sm:$0xff]
        %v777 = vld [vmem:[#allocation2 + $0x1f1] sm:$0xff]
        %v778 = vld [vmem:[%s649 + $0x7] sm:$0xff]
        %v779 = vld [vmem:[%s649 + $0xf] sm:$0xff]
        %v780 = vld [vmem:[%s649 + $0x27] sm:$0xff]
        %v781 = vld [vmem:[%s649 + $0x2f] sm:$0xff]
        %v782 = vld [vmem:[%s649 + $0x47] sm:$0xff]
        %v783 = vld [vmem:[%s649 + $0x4f] sm:$0xff]
        %v784 = vld [vmem:[%s649 + $0x67] sm:$0xff]
        %v785 = vld [vmem:[%s649 + $0x6f] sm:$0xff]
        %v786 = vld [vmem:[%s649 + $0x87] sm:$0xff]
        %v787 = vld [vmem:[%s649 + $0x8f] sm:$0xff]
        %v788 = vld [vmem:[%s649 + $0xa7] sm:$0xff]
        %v789 = vld [vmem:[%s649 + $0xaf] sm:$0xff]
        %v790 = vld [vmem:[%s649 + $0xc7] sm:$0xff]
        %v791 = vld [vmem:[%s649 + $0xcf] sm:$0xff]
        %v792 = vld [vmem:[%s649 + $0xe7] sm:$0xff]
        %v793 = vld [vmem:[%s649 + $0xef] sm:$0xff]
        %v794 = vld [vmem:[%s649 + $0x107] sm:$0xff]
        %v795 = vld [vmem:[%s649 + $0x10f] sm:$0xff]
        %v796 = vld [vmem:[%s649 + $0x127] sm:$0xff]
        %v797 = vld [vmem:[%s649 + $0x12f] sm:$0xff]
        %v798 = vld [vmem:[%s649 + $0x147] sm:$0xff]
        %v799 = vld [vmem:[%s649 + $0x14f] sm:$0xff]
        %v800 = vld [vmem:[%s649 + $0x167] sm:$0xff]
        %v801 = vld [vmem:[%s649 + $0x16f] sm:$0xff]
        %v802 = vld [vmem:[%s649 + $0x187] sm:$0xff]
        %v803 = vld [vmem:[%s649 + $0x18f] sm:$0xff]
        %v804 = vld [vmem:[%s649 + $0x1a7] sm:$0xff]
        %v805 = vld [vmem:[%s649 + $0x1af] sm:$0xff]
        %v806 = vld [vmem:[%s649 + $0x1c7] sm:$0xff]
        %v807 = vld [vmem:[%s649 + $0x1cf] sm:$0xff]
        %v808 = vld [vmem:[%s649 + $0x1e7] sm:$0xff]
        %v809 = vld [vmem:[%s649 + $0x1ef] sm:$0xff]
        %v810 = vld [vmem:[%s649 + $0x8] sm:$0xff]
        %v811 = vld [vmem:[%s649 + $0x10] sm:$0xff]
        %v812 = vld [vmem:[%s649 + $0x28] sm:$0xff]
        %v813 = vld [vmem:[%s649 + $0x30] sm:$0xff]
        %v814 = vld [vmem:[%s649 + $0x48] sm:$0xff]
        %v815 = vld [vmem:[%s649 + $0x50] sm:$0xff]
        %v816 = vld [vmem:[%s649 + $0x68] sm:$0xff]
        %v817 = vld [vmem:[%s649 + $0x70] sm:$0xff]
        %v818 = vld [vmem:[%s649 + $0x88] sm:$0xff]
        %v819 = vld [vmem:[%s649 + $0x90] sm:$0xff]
        %v820 = vld [vmem:[%s649 + $0xa8] sm:$0xff]
        %v821 = vld [vmem:[%s649 + $0xb0] sm:$0xff]
        %v822 = vld [vmem:[%s649 + $0xc8] sm:$0xff]
        %v823 = vld [vmem:[%s649 + $0xd0] sm:$0xff]
        %v824 = vld [vmem:[%s649 + $0xe8] sm:$0xff]
        %v825 = vld [vmem:[%s649 + $0xf0] sm:$0xff]
        %v826 = vld [vmem:[%s649 + $0x108] sm:$0xff]
        %v827 = vld [vmem:[%s649 + $0x110] sm:$0xff]
        %v828 = vld [vmem:[%s649 + $0x128] sm:$0xff]
        %v829 = vld [vmem:[%s649 + $0x130] sm:$0xff]
        %v830 = vld [vmem:[%s649 + $0x148] sm:$0xff]
        %v831 = vld [vmem:[%s649 + $0x150] sm:$0xff]
        %v832 = vld [vmem:[%s649 + $0x168] sm:$0xff]
        %v833 = vld [vmem:[%s649 + $0x170] sm:$0xff]
        %v834 = vld [vmem:[%s649 + $0x188] sm:$0xff]
        %v835 = vld [vmem:[%s649 + $0x190] sm:$0xff]
        %v836 = vld [vmem:[%s649 + $0x1a8] sm:$0xff]
        %v837 = vld [vmem:[%s649 + $0x1b0] sm:$0xff]
        %v838 = vld [vmem:[%s649 + $0x1c8] sm:$0xff]
        %v839 = vld [vmem:[%s649 + $0x1d0] sm:$0xff]
        %v840 = vld [vmem:[%s649 + $0x1e8] sm:$0xff]
        %v841 = vld [vmem:[%s649 + $0x1f0] sm:$0xff]
        %v842 = vld [vmem:[%s649 + $0x9] sm:$0xff]
        %v843 = vld [vmem:[%s649 + $0x11] sm:$0xff]
        %v844 = vld [vmem:[%s649 + $0x29] sm:$0xff]
        %v845 = vld [vmem:[%s649 + $0x31] sm:$0xff]
        %v846 = vld [vmem:[%s649 + $0x49] sm:$0xff]
        %v847 = vld [vmem:[%s649 + $0x51] sm:$0xff]
        %v848 = vld [vmem:[%s649 + $0x69] sm:$0xff]
        %v849 = vld [vmem:[%s649 + $0x71] sm:$0xff]
        %v850 = vld [vmem:[%s649 + $0x89] sm:$0xff]
        %v851 = vld [vmem:[%s649 + $0x91] sm:$0xff]
        %v852 = vld [vmem:[%s649 + $0xa9] sm:$0xff]
        %v853 = vld [vmem:[%s649 + $0xb1] sm:$0xff]
        %v854 = vld [vmem:[%s649 + $0xc9] sm:$0xff]
        %v855 = vld [vmem:[%s649 + $0xd1] sm:$0xff]
        %v856 = vld [vmem:[%s649 + $0xe9] sm:$0xff]
        %v857 = vld [vmem:[%s649 + $0xf1] sm:$0xff]
        %v858 = vld [vmem:[%s649 + $0x109] sm:$0xff]
        %v859 = vld [vmem:[%s649 + $0x111] sm:$0xff]
        %v860 = vld [vmem:[%s649 + $0x129] sm:$0xff]
        %v861 = vld [vmem:[%s649 + $0x131] sm:$0xff]
        %v862 = vld [vmem:[%s649 + $0x149] sm:$0xff]
        %v863 = vld [vmem:[%s649 + $0x151] sm:$0xff]
        %v864 = vld [vmem:[%s649 + $0x169] sm:$0xff]
        %v865 = vld [vmem:[%s649 + $0x171] sm:$0xff]
        %v866 = vld [vmem:[%s649 + $0x189] sm:$0xff]
        %v867 = vld [vmem:[%s649 + $0x191] sm:$0xff]
        %v868 = vld [vmem:[%s649 + $0x1a9] sm:$0xff]
        %v869 = vld [vmem:[%s649 + $0x1b1] sm:$0xff]
        %v870 = vld [vmem:[%s649 + $0x1c9] sm:$0xff]
        %v871 = vld [vmem:[%s649 + $0x1d1] sm:$0xff]
        %v872 = vld [vmem:[%s649 + $0x1e9] sm:$0xff]
        %v873 = vld [vmem:[%s649 + $0x1f1] sm:$0xff]
        %s874 = scalar_lea.vmem [#allocation2], 64
        %v875 = vld [vmem:[%s874 + $0x7] sm:$0xff]
        %v876 = vld [vmem:[%s874 + $0xf] sm:$0xff]
        %v877 = vld [vmem:[%s874 + $0x27] sm:$0xff]
        %v878 = vld [vmem:[%s874 + $0x2f] sm:$0xff]
        %v879 = vld [vmem:[%s874 + $0x47] sm:$0xff]
        %v880 = vld [vmem:[%s874 + $0x4f] sm:$0xff]
        %v881 = vld [vmem:[%s874 + $0x67] sm:$0xff]
        %v882 = vld [vmem:[%s874 + $0x6f] sm:$0xff]
        %v883 = vld [vmem:[%s874 + $0x87] sm:$0xff]
        %v884 = vld [vmem:[%s874 + $0x8f] sm:$0xff]
        %v885 = vld [vmem:[%s874 + $0xa7] sm:$0xff]
        %v886 = vld [vmem:[%s874 + $0xaf] sm:$0xff]
        %v887 = vld [vmem:[%s874 + $0xc7] sm:$0xff]
        %v888 = vld [vmem:[%s874 + $0xcf] sm:$0xff]
        %v889 = vld [vmem:[%s874 + $0xe7] sm:$0xff]
        %v890 = vld [vmem:[%s874 + $0xef] sm:$0xff]
        %v891 = vld [vmem:[%s874 + $0x107] sm:$0xff]
        %v892 = vld [vmem:[%s874 + $0x10f] sm:$0xff]
        %v893 = vld [vmem:[%s874 + $0x127] sm:$0xff]
        %v894 = vld [vmem:[%s874 + $0x12f] sm:$0xff]
        %v895 = vld [vmem:[%s874 + $0x147] sm:$0xff]
        %v896 = vld [vmem:[%s874 + $0x14f] sm:$0xff]
        %v897 = vld [vmem:[%s874 + $0x167] sm:$0xff]
        %v898 = vld [vmem:[%s874 + $0x16f] sm:$0xff]
        %v899 = vld [vmem:[%s874 + $0x187] sm:$0xff]
        %v900 = vld [vmem:[%s874 + $0x18f] sm:$0xff]
        %v901 = vld [vmem:[%s874 + $0x1a7] sm:$0xff]
        %v902 = vld [vmem:[%s874 + $0x1af] sm:$0xff]
        %v903 = vld [vmem:[%s874 + $0x1c7] sm:$0xff]
        %v904 = vld [vmem:[%s874 + $0x1cf] sm:$0xff]
        %v905 = vld [vmem:[%s874 + $0x1e7] sm:$0xff]
        %v906 = vld [vmem:[%s874 + $0x1ef] sm:$0xff]
        %v907 = vld [vmem:[%s874 + $0x8] sm:$0xff]
        %v908 = vld [vmem:[%s874 + $0x10] sm:$0xff]
        %v909 = vld [vmem:[%s874 + $0x28] sm:$0xff]
        %v910 = vld [vmem:[%s874 + $0x30] sm:$0xff]
        %v911 = vld [vmem:[%s874 + $0x48] sm:$0xff]
        %v912 = vld [vmem:[%s874 + $0x50] sm:$0xff]
        %v913 = vld [vmem:[%s874 + $0x68] sm:$0xff]
        %v914 = vld [vmem:[%s874 + $0x70] sm:$0xff]
        %v915 = vld [vmem:[%s874 + $0x88] sm:$0xff]
        %v916 = vld [vmem:[%s874 + $0x90] sm:$0xff]
        %v917 = vld [vmem:[%s874 + $0xa8] sm:$0xff]
        %v918 = vld [vmem:[%s874 + $0xb0] sm:$0xff]
        %v919 = vld [vmem:[%s874 + $0xc8] sm:$0xff]
        %v920 = vld [vmem:[%s874 + $0xd0] sm:$0xff]
        %v921 = vld [vmem:[%s874 + $0xe8] sm:$0xff]
        %v922 = vld [vmem:[%s874 + $0xf0] sm:$0xff]
        %v923 = vld [vmem:[%s874 + $0x108] sm:$0xff]
        %v924 = vld [vmem:[%s874 + $0x110] sm:$0xff]
        %v925 = vld [vmem:[%s874 + $0x128] sm:$0xff]
        %v926 = vld [vmem:[%s874 + $0x130] sm:$0xff]
        %v927 = vld [vmem:[%s874 + $0x148] sm:$0xff]
        %v928 = vld [vmem:[%s874 + $0x150] sm:$0xff]
        %v929 = vld [vmem:[%s874 + $0x168] sm:$0xff]
        %v930 = vld [vmem:[%s874 + $0x170] sm:$0xff]
        %v931 = vld [vmem:[%s874 + $0x188] sm:$0xff]
        %v932 = vld [vmem:[%s874 + $0x190] sm:$0xff]
        %v933 = vld [vmem:[%s874 + $0x1a8] sm:$0xff]
        %v934 = vld [vmem:[%s874 + $0x1b0] sm:$0xff]
        %v935 = vld [vmem:[%s874 + $0x1c8] sm:$0xff]
        %v936 = vld [vmem:[%s874 + $0x1d0] sm:$0xff]
        %v937 = vld [vmem:[%s874 + $0x1e8] sm:$0xff]
        %v938 = vld [vmem:[%s874 + $0x1f0] sm:$0xff]
        %v939 = vld [vmem:[%s874 + $0x9] sm:$0xff]
        %v940 = vld [vmem:[%s874 + $0x11] sm:$0xff]
        %v941 = vld [vmem:[%s874 + $0x29] sm:$0xff]
        %v942 = vld [vmem:[%s874 + $0x31] sm:$0xff]
        %v943 = vld [vmem:[%s874 + $0x49] sm:$0xff]
        %v944 = vld [vmem:[%s874 + $0x51] sm:$0xff]
        %v945 = vld [vmem:[%s874 + $0x69] sm:$0xff]
        %v946 = vld [vmem:[%s874 + $0x71] sm:$0xff]
        %v947 = vld [vmem:[%s874 + $0x89] sm:$0xff]
        %v948 = vld [vmem:[%s874 + $0x91] sm:$0xff]
        %v949 = vld [vmem:[%s874 + $0xa9] sm:$0xff]
        %v950 = vld [vmem:[%s874 + $0xb1] sm:$0xff]
        %v951 = vld [vmem:[%s874 + $0xc9] sm:$0xff]
        %v952 = vld [vmem:[%s874 + $0xd1] sm:$0xff]
        %v953 = vld [vmem:[%s874 + $0xe9] sm:$0xff]
        %v954 = vld [vmem:[%s874 + $0xf1] sm:$0xff]
        %v955 = vld [vmem:[%s874 + $0x109] sm:$0xff]
        %v956 = vld [vmem:[%s874 + $0x111] sm:$0xff]
        %v957 = vld [vmem:[%s874 + $0x129] sm:$0xff]
        %v958 = vld [vmem:[%s874 + $0x131] sm:$0xff]
        %v959 = vld [vmem:[%s874 + $0x149] sm:$0xff]
        %v960 = vld [vmem:[%s874 + $0x151] sm:$0xff]
        %v961 = vld [vmem:[%s874 + $0x169] sm:$0xff]
        %v962 = vld [vmem:[%s874 + $0x171] sm:$0xff]
        %v963 = vld [vmem:[%s874 + $0x189] sm:$0xff]
        %v964 = vld [vmem:[%s874 + $0x191] sm:$0xff]
        %v965 = vld [vmem:[%s874 + $0x1a9] sm:$0xff]
        %v966 = vld [vmem:[%s874 + $0x1b1] sm:$0xff]
        %v967 = vld [vmem:[%s874 + $0x1c9] sm:$0xff]
        %v968 = vld [vmem:[%s874 + $0x1d1] sm:$0xff]
        %v969 = vld [vmem:[%s874 + $0x1e9] sm:$0xff]
        %v970 = vld [vmem:[%s874 + $0x1f1] sm:$0xff]
        %1003 = vrot.lane.b32.xlu0 %v714, 3
        %v1004 = vpop.permute.xlu0 %1003
        %1005 = vrot.lane.b32.xlu0 %v715, 3
        %v1006 = vpop.permute.xlu0 %1005
        %1007 = vrot.lane.b32.xlu0 %v716, 3
        %v1008 = vpop.permute.xlu0 %1007
        %1009 = vrot.lane.b32.xlu0 %v717, 3
        %v1010 = vpop.permute.xlu0 %1009
        %1011 = vrot.lane.b32.xlu0 %v718, 3
        %v1012 = vpop.permute.xlu0 %1011
        %1013 = vrot.lane.b32.xlu0 %v719, 3
        %v1014 = vpop.permute.xlu0 %1013
        %1015 = vrot.lane.b32.xlu0 %v720, 3
        %v1016 = vpop.permute.xlu0 %1015
        %1017 = vrot.lane.b32.xlu0 %v721, 3
        %v1018 = vpop.permute.xlu0 %1017
        %1019 = vrot.lane.b32.xlu0 %v722, 3
        %v1020 = vpop.permute.xlu0 %1019
        %1021 = vrot.lane.b32.xlu0 %v723, 3
        %v1022 = vpop.permute.xlu0 %1021
        %1023 = vrot.lane.b32.xlu0 %v724, 3
        %v1024 = vpop.permute.xlu0 %1023
        %1025 = vrot.lane.b32.xlu0 %v725, 3
        %v1026 = vpop.permute.xlu0 %1025
        %1027 = vrot.lane.b32.xlu0 %v726, 3
        %v1028 = vpop.permute.xlu0 %1027
        %1029 = vrot.lane.b32.xlu0 %v727, 3
        %v1030 = vpop.permute.xlu0 %1029
        %1031 = vrot.lane.b32.xlu0 %v728, 3
        %v1032 = vpop.permute.xlu0 %1031
        %1033 = vrot.lane.b32.xlu0 %v729, 3
        %v1034 = vpop.permute.xlu0 %1033
        %1035 = vrot.lane.b32.xlu0 %v730, 3
        %v1036 = vpop.permute.xlu0 %1035
        %1037 = vrot.lane.b32.xlu0 %v731, 3
        %v1038 = vpop.permute.xlu0 %1037
        %1039 = vrot.lane.b32.xlu0 %v732, 3
        %v1040 = vpop.permute.xlu0 %1039
        %1041 = vrot.lane.b32.xlu0 %v733, 3
        %v1042 = vpop.permute.xlu0 %1041
        %1043 = vrot.lane.b32.xlu0 %v734, 3
        %v1044 = vpop.permute.xlu0 %1043
        %1045 = vrot.lane.b32.xlu0 %v735, 3
        %v1046 = vpop.permute.xlu0 %1045
        %1047 = vrot.lane.b32.xlu0 %v736, 3
        %v1048 = vpop.permute.xlu0 %1047
        %1049 = vrot.lane.b32.xlu0 %v737, 3
        %v1050 = vpop.permute.xlu0 %1049
        %1051 = vrot.lane.b32.xlu0 %v738, 3
        %v1052 = vpop.permute.xlu0 %1051
        %1053 = vrot.lane.b32.xlu0 %v739, 3
        %v1054 = vpop.permute.xlu0 %1053
        %1055 = vrot.lane.b32.xlu0 %v740, 3
        %v1056 = vpop.permute.xlu0 %1055
        %1057 = vrot.lane.b32.xlu0 %v741, 3
        %v1058 = vpop.permute.xlu0 %1057
        %1059 = vrot.lane.b32.xlu0 %v742, 3
        %v1060 = vpop.permute.xlu0 %1059
        %1061 = vrot.lane.b32.xlu0 %v743, 3
        %v1062 = vpop.permute.xlu0 %1061
        %1063 = vrot.lane.b32.xlu0 %v744, 3
        %v1064 = vpop.permute.xlu0 %1063
        %1065 = vrot.lane.b32.xlu0 %v745, 3
        %v1066 = vpop.permute.xlu0 %1065
        %1131 = vrot.lane.b32.xlu0 %v746, 6
        %v1132 = vpop.permute.xlu0 %1131
        %1133 = vrot.lane.b32.xlu0 %v747, 6
        %v1134 = vpop.permute.xlu0 %1133
        %1135 = vrot.lane.b32.xlu0 %v748, 6
        %v1136 = vpop.permute.xlu0 %1135
        %1137 = vrot.lane.b32.xlu0 %v749, 6
        %v1138 = vpop.permute.xlu0 %1137
        %1139 = vrot.lane.b32.xlu0 %v750, 6
        %v1140 = vpop.permute.xlu0 %1139
        %1141 = vrot.lane.b32.xlu0 %v751, 6
        %v1142 = vpop.permute.xlu0 %1141
        %1143 = vrot.lane.b32.xlu0 %v752, 6
        %v1144 = vpop.permute.xlu0 %1143
        %1145 = vrot.lane.b32.xlu0 %v753, 6
        %v1146 = vpop.permute.xlu0 %1145
        %1147 = vrot.lane.b32.xlu0 %v754, 6
        %v1148 = vpop.permute.xlu0 %1147
        %1149 = vrot.lane.b32.xlu0 %v755, 6
        %v1150 = vpop.permute.xlu0 %1149
        %1151 = vrot.lane.b32.xlu0 %v756, 6
        %v1152 = vpop.permute.xlu0 %1151
        %1153 = vrot.lane.b32.xlu0 %v757, 6
        %v1154 = vpop.permute.xlu0 %1153
        %1155 = vrot.lane.b32.xlu0 %v758, 6
        %v1156 = vpop.permute.xlu0 %1155
        %1157 = vrot.lane.b32.xlu0 %v759, 6
        %v1158 = vpop.permute.xlu0 %1157
        %1159 = vrot.lane.b32.xlu0 %v760, 6
        %v1160 = vpop.permute.xlu0 %1159
        %1161 = vrot.lane.b32.xlu0 %v761, 6
        %v1162 = vpop.permute.xlu0 %1161
        %1163 = vrot.lane.b32.xlu0 %v762, 6
        %v1164 = vpop.permute.xlu0 %1163
        %1165 = vrot.lane.b32.xlu0 %v763, 6
        %v1166 = vpop.permute.xlu0 %1165
        %1167 = vrot.lane.b32.xlu0 %v764, 6
        %v1168 = vpop.permute.xlu0 %1167
        %1169 = vrot.lane.b32.xlu0 %v765, 6
        %v1170 = vpop.permute.xlu0 %1169
        %1171 = vrot.lane.b32.xlu0 %v766, 6
        %v1172 = vpop.permute.xlu0 %1171
        %1173 = vrot.lane.b32.xlu0 %v767, 6
        %v1174 = vpop.permute.xlu0 %1173
        %1175 = vrot.lane.b32.xlu0 %v768, 6
        %v1176 = vpop.permute.xlu0 %1175
        %1177 = vrot.lane.b32.xlu0 %v769, 6
        %v1178 = vpop.permute.xlu0 %1177
        %1179 = vrot.lane.b32.xlu0 %v770, 6
        %v1180 = vpop.permute.xlu0 %1179
        %1181 = vrot.lane.b32.xlu0 %v771, 6
        %v1182 = vpop.permute.xlu0 %1181
        %1183 = vrot.lane.b32.xlu0 %v772, 6
        %v1184 = vpop.permute.xlu0 %1183
        %1185 = vrot.lane.b32.xlu0 %v773, 6
        %v1186 = vpop.permute.xlu0 %1185
        %1187 = vrot.lane.b32.xlu0 %v774, 6
        %v1188 = vpop.permute.xlu0 %1187
        %1189 = vrot.lane.b32.xlu0 %v775, 6
        %v1190 = vpop.permute.xlu0 %1189
        %1191 = vrot.lane.b32.xlu0 %v776, 6
        %v1192 = vpop.permute.xlu0 %1191
        %1193 = vrot.lane.b32.xlu0 %v777, 6
        %v1194 = vpop.permute.xlu0 %1193
        %1259 = vrot.lane.b32.xlu0 %v778, 9
        %v1260 = vpop.permute.xlu0 %1259
        %1261 = vrot.lane.b32.xlu0 %v779, 9
        %v1262 = vpop.permute.xlu0 %1261
        %1263 = vrot.lane.b32.xlu0 %v780, 9
        %v1264 = vpop.permute.xlu0 %1263
        %1265 = vrot.lane.b32.xlu0 %v781, 9
        %v1266 = vpop.permute.xlu0 %1265
        %1267 = vrot.lane.b32.xlu0 %v782, 9
        %v1268 = vpop.permute.xlu0 %1267
        %1269 = vrot.lane.b32.xlu0 %v783, 9
        %v1270 = vpop.permute.xlu0 %1269
        %1271 = vrot.lane.b32.xlu0 %v784, 9
        %v1272 = vpop.permute.xlu0 %1271
        %1273 = vrot.lane.b32.xlu0 %v785, 9
        %v1274 = vpop.permute.xlu0 %1273
        %1275 = vrot.lane.b32.xlu0 %v786, 9
        %v1276 = vpop.permute.xlu0 %1275
        %1277 = vrot.lane.b32.xlu0 %v787, 9
        %v1278 = vpop.permute.xlu0 %1277
        %1279 = vrot.lane.b32.xlu0 %v788, 9
        %v1280 = vpop.permute.xlu0 %1279
        %1281 = vrot.lane.b32.xlu0 %v789, 9
        %v1282 = vpop.permute.xlu0 %1281
        %1283 = vrot.lane.b32.xlu0 %v790, 9
        %v1284 = vpop.permute.xlu0 %1283
        %1285 = vrot.lane.b32.xlu0 %v791, 9
        %v1286 = vpop.permute.xlu0 %1285
        %1287 = vrot.lane.b32.xlu0 %v792, 9
        %v1288 = vpop.permute.xlu0 %1287
        %1289 = vrot.lane.b32.xlu0 %v793, 9
        %v1290 = vpop.permute.xlu0 %1289
        %1291 = vrot.lane.b32.xlu0 %v794, 9
        %v1292 = vpop.permute.xlu0 %1291
        %1293 = vrot.lane.b32.xlu0 %v795, 9
        %v1294 = vpop.permute.xlu0 %1293
        %1295 = vrot.lane.b32.xlu0 %v796, 9
        %v1296 = vpop.permute.xlu0 %1295
        %1297 = vrot.lane.b32.xlu0 %v797, 9
        %v1298 = vpop.permute.xlu0 %1297
        %1299 = vrot.lane.b32.xlu0 %v798, 9
        %v1300 = vpop.permute.xlu0 %1299
        %1301 = vrot.lane.b32.xlu0 %v799, 9
        %v1302 = vpop.permute.xlu0 %1301
        %1303 = vrot.lane.b32.xlu0 %v800, 9
        %v1304 = vpop.permute.xlu0 %1303
        %1305 = vrot.lane.b32.xlu0 %v801, 9
        %v1306 = vpop.permute.xlu0 %1305
        %1307 = vrot.lane.b32.xlu0 %v802, 9
        %v1308 = vpop.permute.xlu0 %1307
        %1309 = vrot.lane.b32.xlu0 %v803, 9
        %v1310 = vpop.permute.xlu0 %1309
        %1311 = vrot.lane.b32.xlu0 %v804, 9
        %v1312 = vpop.permute.xlu0 %1311
        %1313 = vrot.lane.b32.xlu0 %v805, 9
        %v1314 = vpop.permute.xlu0 %1313
        %1315 = vrot.lane.b32.xlu0 %v806, 9
        %v1316 = vpop.permute.xlu0 %1315
        %1317 = vrot.lane.b32.xlu0 %v807, 9
        %v1318 = vpop.permute.xlu0 %1317
        %1319 = vrot.lane.b32.xlu0 %v808, 9
        %v1320 = vpop.permute.xlu0 %1319
        %1321 = vrot.lane.b32.xlu0 %v809, 9
        %v1322 = vpop.permute.xlu0 %1321
        %1387 = vrot.lane.b32.xlu0 %v810, 12
        %v1388 = vpop.permute.xlu0 %1387
        %1389 = vrot.lane.b32.xlu0 %v811, 12
        %v1390 = vpop.permute.xlu0 %1389
        %1391 = vrot.lane.b32.xlu0 %v812, 12
        %v1392 = vpop.permute.xlu0 %1391
        %1393 = vrot.lane.b32.xlu0 %v813, 12
        %v1394 = vpop.permute.xlu0 %1393
        %1395 = vrot.lane.b32.xlu0 %v814, 12
        %v1396 = vpop.permute.xlu0 %1395
        %1397 = vrot.lane.b32.xlu0 %v815, 12
        %v1398 = vpop.permute.xlu0 %1397
        %1399 = vrot.lane.b32.xlu0 %v816, 12
        %v1400 = vpop.permute.xlu0 %1399
        %1401 = vrot.lane.b32.xlu0 %v817, 12
        %v1402 = vpop.permute.xlu0 %1401
        %1403 = vrot.lane.b32.xlu0 %v818, 12
        %v1404 = vpop.permute.xlu0 %1403
        %1405 = vrot.lane.b32.xlu0 %v819, 12
        %v1406 = vpop.permute.xlu0 %1405
        %1407 = vrot.lane.b32.xlu0 %v820, 12
        %v1408 = vpop.permute.xlu0 %1407
        %1409 = vrot.lane.b32.xlu0 %v821, 12
        %v1410 = vpop.permute.xlu0 %1409
        %1411 = vrot.lane.b32.xlu0 %v822, 12
        %v1412 = vpop.permute.xlu0 %1411
        %1413 = vrot.lane.b32.xlu0 %v823, 12
        %v1414 = vpop.permute.xlu0 %1413
        %1415 = vrot.lane.b32.xlu0 %v824, 12
        %v1416 = vpop.permute.xlu0 %1415
        %1417 = vrot.lane.b32.xlu0 %v825, 12
        %v1418 = vpop.permute.xlu0 %1417
        %1419 = vrot.lane.b32.xlu0 %v826, 12
        %v1420 = vpop.permute.xlu0 %1419
        %1421 = vrot.lane.b32.xlu0 %v827, 12
        %v1422 = vpop.permute.xlu0 %1421
        %1423 = vrot.lane.b32.xlu0 %v828, 12
        %v1424 = vpop.permute.xlu0 %1423
        %1425 = vrot.lane.b32.xlu0 %v829, 12
        %v1426 = vpop.permute.xlu0 %1425
        %1427 = vrot.lane.b32.xlu0 %v830, 12
        %v1428 = vpop.permute.xlu0 %1427
        %1429 = vrot.lane.b32.xlu0 %v831, 12
        %v1430 = vpop.permute.xlu0 %1429
        %1431 = vrot.lane.b32.xlu0 %v832, 12
        %v1432 = vpop.permute.xlu0 %1431
        %1433 = vrot.lane.b32.xlu0 %v833, 12
        %v1434 = vpop.permute.xlu0 %1433
        %1435 = vrot.lane.b32.xlu0 %v834, 12
        %v1436 = vpop.permute.xlu0 %1435
        %1437 = vrot.lane.b32.xlu0 %v835, 12
        %v1438 = vpop.permute.xlu0 %1437
        %1439 = vrot.lane.b32.xlu0 %v836, 12
        %v1440 = vpop.permute.xlu0 %1439
        %1441 = vrot.lane.b32.xlu0 %v837, 12
        %v1442 = vpop.permute.xlu0 %1441
        %1443 = vrot.lane.b32.xlu0 %v838, 12
        %v1444 = vpop.permute.xlu0 %1443
        %1445 = vrot.lane.b32.xlu0 %v839, 12
        %v1446 = vpop.permute.xlu0 %1445
        %1447 = vrot.lane.b32.xlu0 %v840, 12
        %v1448 = vpop.permute.xlu0 %1447
        %1449 = vrot.lane.b32.xlu0 %v841, 12
        %v1450 = vpop.permute.xlu0 %1449
        %1515 = vrot.lane.b32.xlu0 %v842, 15
        %v1516 = vpop.permute.xlu0 %1515
        %1517 = vrot.lane.b32.xlu0 %v843, 15
        %v1518 = vpop.permute.xlu0 %1517
        %1519 = vrot.lane.b32.xlu0 %v844, 15
        %v1520 = vpop.permute.xlu0 %1519
        %1521 = vrot.lane.b32.xlu0 %v845, 15
        %v1522 = vpop.permute.xlu0 %1521
        %1523 = vrot.lane.b32.xlu0 %v846, 15
        %v1524 = vpop.permute.xlu0 %1523
        %1525 = vrot.lane.b32.xlu0 %v847, 15
        %v1526 = vpop.permute.xlu0 %1525
        %1527 = vrot.lane.b32.xlu0 %v848, 15
        %v1528 = vpop.permute.xlu0 %1527
        %1529 = vrot.lane.b32.xlu0 %v849, 15
        %v1530 = vpop.permute.xlu0 %1529
        %1531 = vrot.lane.b32.xlu0 %v850, 15
        %v1532 = vpop.permute.xlu0 %1531
        %1533 = vrot.lane.b32.xlu0 %v851, 15
        %v1534 = vpop.permute.xlu0 %1533
        %1535 = vrot.lane.b32.xlu0 %v852, 15
        %v1536 = vpop.permute.xlu0 %1535
        %1537 = vrot.lane.b32.xlu0 %v853, 15
        %v1538 = vpop.permute.xlu0 %1537
        %1539 = vrot.lane.b32.xlu0 %v854, 15
        %v1540 = vpop.permute.xlu0 %1539
        %1541 = vrot.lane.b32.xlu0 %v855, 15
        %v1542 = vpop.permute.xlu0 %1541
        %1543 = vrot.lane.b32.xlu0 %v856, 15
        %v1544 = vpop.permute.xlu0 %1543
        %1545 = vrot.lane.b32.xlu0 %v857, 15
        %v1546 = vpop.permute.xlu0 %1545
        %1547 = vrot.lane.b32.xlu0 %v858, 15
        %v1548 = vpop.permute.xlu0 %1547
        %1549 = vrot.lane.b32.xlu0 %v859, 15
        %v1550 = vpop.permute.xlu0 %1549
        %1551 = vrot.lane.b32.xlu0 %v860, 15
        %v1552 = vpop.permute.xlu0 %1551
        %1553 = vrot.lane.b32.xlu0 %v861, 15
        %v1554 = vpop.permute.xlu0 %1553
        %1555 = vrot.lane.b32.xlu0 %v862, 15
        %v1556 = vpop.permute.xlu0 %1555
        %1557 = vrot.lane.b32.xlu0 %v863, 15
        %v1558 = vpop.permute.xlu0 %1557
        %1559 = vrot.lane.b32.xlu0 %v864, 15
        %v1560 = vpop.permute.xlu0 %1559
        %1561 = vrot.lane.b32.xlu0 %v865, 15
        %v1562 = vpop.permute.xlu0 %1561
        %1563 = vrot.lane.b32.xlu0 %v866, 15
        %v1564 = vpop.permute.xlu0 %1563
        %1565 = vrot.lane.b32.xlu0 %v867, 15
        %v1566 = vpop.permute.xlu0 %1565
        %1567 = vrot.lane.b32.xlu0 %v868, 15
        %v1568 = vpop.permute.xlu0 %1567
        %1569 = vrot.lane.b32.xlu0 %v869, 15
        %v1570 = vpop.permute.xlu0 %1569
        %1571 = vrot.lane.b32.xlu0 %v870, 15
        %v1572 = vpop.permute.xlu0 %1571
        %1573 = vrot.lane.b32.xlu0 %v871, 15
        %v1574 = vpop.permute.xlu0 %1573
        %1575 = vrot.lane.b32.xlu0 %v872, 15
        %v1576 = vpop.permute.xlu0 %1575
        %1577 = vrot.lane.b32.xlu0 %v873, 15
        %v1578 = vpop.permute.xlu0 %1577
        %1643 = vrot.lane.b32.xlu0 %v875, 18
        %v1644 = vpop.permute.xlu0 %1643
        %1645 = vrot.lane.b32.xlu0 %v876, 18
        %v1646 = vpop.permute.xlu0 %1645
        %1647 = vrot.lane.b32.xlu0 %v877, 18
        %v1648 = vpop.permute.xlu0 %1647
        %1649 = vrot.lane.b32.xlu0 %v878, 18
        %v1650 = vpop.permute.xlu0 %1649
        %1651 = vrot.lane.b32.xlu0 %v879, 18
        %v1652 = vpop.permute.xlu0 %1651
        %1653 = vrot.lane.b32.xlu0 %v880, 18
        %v1654 = vpop.permute.xlu0 %1653
        %1655 = vrot.lane.b32.xlu0 %v881, 18
        %v1656 = vpop.permute.xlu0 %1655
        %1657 = vrot.lane.b32.xlu0 %v882, 18
        %v1658 = vpop.permute.xlu0 %1657
        %1659 = vrot.lane.b32.xlu0 %v883, 18
        %v1660 = vpop.permute.xlu0 %1659
        %1661 = vrot.lane.b32.xlu0 %v884, 18
        %v1662 = vpop.permute.xlu0 %1661
        %1663 = vrot.lane.b32.xlu0 %v885, 18
        %v1664 = vpop.permute.xlu0 %1663
        %1665 = vrot.lane.b32.xlu0 %v886, 18
        %v1666 = vpop.permute.xlu0 %1665
        %1667 = vrot.lane.b32.xlu0 %v887, 18
        %v1668 = vpop.permute.xlu0 %1667
        %1669 = vrot.lane.b32.xlu0 %v888, 18
        %v1670 = vpop.permute.xlu0 %1669
        %1671 = vrot.lane.b32.xlu0 %v889, 18
        %v1672 = vpop.permute.xlu0 %1671
        %1673 = vrot.lane.b32.xlu0 %v890, 18
        %v1674 = vpop.permute.xlu0 %1673
        %1675 = vrot.lane.b32.xlu0 %v891, 18
        %v1676 = vpop.permute.xlu0 %1675
        %1677 = vrot.lane.b32.xlu0 %v892, 18
        %v1678 = vpop.permute.xlu0 %1677
        %1679 = vrot.lane.b32.xlu0 %v893, 18
        %v1680 = vpop.permute.xlu0 %1679
        %1681 = vrot.lane.b32.xlu0 %v894, 18
        %v1682 = vpop.permute.xlu0 %1681
        %1683 = vrot.lane.b32.xlu0 %v895, 18
        %v1684 = vpop.permute.xlu0 %1683
        %1685 = vrot.lane.b32.xlu0 %v896, 18
        %v1686 = vpop.permute.xlu0 %1685
        %1687 = vrot.lane.b32.xlu0 %v897, 18
        %v1688 = vpop.permute.xlu0 %1687
        %1689 = vrot.lane.b32.xlu0 %v898, 18
        %v1690 = vpop.permute.xlu0 %1689
        %1691 = vrot.lane.b32.xlu0 %v899, 18
        %v1692 = vpop.permute.xlu0 %1691
        %1693 = vrot.lane.b32.xlu0 %v900, 18
        %v1694 = vpop.permute.xlu0 %1693
        %1695 = vrot.lane.b32.xlu0 %v901, 18
        %v1696 = vpop.permute.xlu0 %1695
        %1697 = vrot.lane.b32.xlu0 %v902, 18
        %v1698 = vpop.permute.xlu0 %1697
        %1699 = vrot.lane.b32.xlu0 %v903, 18
        %v1700 = vpop.permute.xlu0 %1699
        %1701 = vrot.lane.b32.xlu0 %v904, 18
        %v1702 = vpop.permute.xlu0 %1701
        %1703 = vrot.lane.b32.xlu0 %v905, 18
        %v1704 = vpop.permute.xlu0 %1703
        %1705 = vrot.lane.b32.xlu0 %v906, 18
        %v1706 = vpop.permute.xlu0 %1705
        %1771 = vrot.lane.b32.xlu0 %v907, 21
        %v1772 = vpop.permute.xlu0 %1771
        %1773 = vrot.lane.b32.xlu0 %v908, 21
        %v1774 = vpop.permute.xlu0 %1773
        %1775 = vrot.lane.b32.xlu0 %v909, 21
        %v1776 = vpop.permute.xlu0 %1775
        %1777 = vrot.lane.b32.xlu0 %v910, 21
        %v1778 = vpop.permute.xlu0 %1777
        %1779 = vrot.lane.b32.xlu0 %v911, 21
        %v1780 = vpop.permute.xlu0 %1779
        %1781 = vrot.lane.b32.xlu0 %v912, 21
        %v1782 = vpop.permute.xlu0 %1781
        %1783 = vrot.lane.b32.xlu0 %v913, 21
        %v1784 = vpop.permute.xlu0 %1783
        %1785 = vrot.lane.b32.xlu0 %v914, 21
        %v1786 = vpop.permute.xlu0 %1785
        %1787 = vrot.lane.b32.xlu0 %v915, 21
        %v1788 = vpop.permute.xlu0 %1787
        %1789 = vrot.lane.b32.xlu0 %v916, 21
        %v1790 = vpop.permute.xlu0 %1789
        %1791 = vrot.lane.b32.xlu0 %v917, 21
        %v1792 = vpop.permute.xlu0 %1791
        %1793 = vrot.lane.b32.xlu0 %v918, 21
        %v1794 = vpop.permute.xlu0 %1793
        %1795 = vrot.lane.b32.xlu0 %v919, 21
        %v1796 = vpop.permute.xlu0 %1795
        %1797 = vrot.lane.b32.xlu0 %v920, 21
        %v1798 = vpop.permute.xlu0 %1797
        %1799 = vrot.lane.b32.xlu0 %v921, 21
        %v1800 = vpop.permute.xlu0 %1799
        %1801 = vrot.lane.b32.xlu0 %v922, 21
        %v1802 = vpop.permute.xlu0 %1801
        %1803 = vrot.lane.b32.xlu0 %v923, 21
        %v1804 = vpop.permute.xlu0 %1803
        %1805 = vrot.lane.b32.xlu0 %v924, 21
        %v1806 = vpop.permute.xlu0 %1805
        %1807 = vrot.lane.b32.xlu0 %v925, 21
        %v1808 = vpop.permute.xlu0 %1807
        %1809 = vrot.lane.b32.xlu0 %v926, 21
        %v1810 = vpop.permute.xlu0 %1809
        %1811 = vrot.lane.b32.xlu0 %v927, 21
        %v1812 = vpop.permute.xlu0 %1811
        %1813 = vrot.lane.b32.xlu0 %v928, 21
        %v1814 = vpop.permute.xlu0 %1813
        %1815 = vrot.lane.b32.xlu0 %v929, 21
        %v1816 = vpop.permute.xlu0 %1815
        %1817 = vrot.lane.b32.xlu0 %v930, 21
        %v1818 = vpop.permute.xlu0 %1817
        %1819 = vrot.lane.b32.xlu0 %v931, 21
        %v1820 = vpop.permute.xlu0 %1819
        %1821 = vrot.lane.b32.xlu0 %v932, 21
        %v1822 = vpop.permute.xlu0 %1821
        %1823 = vrot.lane.b32.xlu0 %v933, 21
        %v1824 = vpop.permute.xlu0 %1823
        %1825 = vrot.lane.b32.xlu0 %v934, 21
        %v1826 = vpop.permute.xlu0 %1825
        %1827 = vrot.lane.b32.xlu0 %v935, 21
        %v1828 = vpop.permute.xlu0 %1827
        %1829 = vrot.lane.b32.xlu0 %v936, 21
        %v1830 = vpop.permute.xlu0 %1829
        %1831 = vrot.lane.b32.xlu0 %v937, 21
        %v1832 = vpop.permute.xlu0 %1831
        %1833 = vrot.lane.b32.xlu0 %v938, 21
        %v1834 = vpop.permute.xlu0 %1833
        %1899 = vrot.lane.b32.xlu0 %v939, 24
        %v1900 = vpop.permute.xlu0 %1899
        %1901 = vrot.lane.b32.xlu0 %v940, 24
        %v1902 = vpop.permute.xlu0 %1901
        %1903 = vrot.lane.b32.xlu0 %v941, 24
        %v1904 = vpop.permute.xlu0 %1903
        %1905 = vrot.lane.b32.xlu0 %v942, 24
        %v1906 = vpop.permute.xlu0 %1905
        %1907 = vrot.lane.b32.xlu0 %v943, 24
        %v1908 = vpop.permute.xlu0 %1907
        %1909 = vrot.lane.b32.xlu0 %v944, 24
        %v1910 = vpop.permute.xlu0 %1909
        %1911 = vrot.lane.b32.xlu0 %v945, 24
        %v1912 = vpop.permute.xlu0 %1911
        %1913 = vrot.lane.b32.xlu0 %v946, 24
        %v1914 = vpop.permute.xlu0 %1913
        %1915 = vrot.lane.b32.xlu0 %v947, 24
        %v1916 = vpop.permute.xlu0 %1915
        %1917 = vrot.lane.b32.xlu0 %v948, 24
        %v1918 = vpop.permute.xlu0 %1917
        %1919 = vrot.lane.b32.xlu0 %v949, 24
        %v1920 = vpop.permute.xlu0 %1919
        %1921 = vrot.lane.b32.xlu0 %v950, 24
        %v1922 = vpop.permute.xlu0 %1921
        %1923 = vrot.lane.b32.xlu0 %v951, 24
        %v1924 = vpop.permute.xlu0 %1923
        %1925 = vrot.lane.b32.xlu0 %v952, 24
        %v1926 = vpop.permute.xlu0 %1925
        %1927 = vrot.lane.b32.xlu0 %v953, 24
        %v1928 = vpop.permute.xlu0 %1927
        %1929 = vrot.lane.b32.xlu0 %v954, 24
        %v1930 = vpop.permute.xlu0 %1929
        %1931 = vrot.lane.b32.xlu0 %v955, 24
        %v1932 = vpop.permute.xlu0 %1931
        %1933 = vrot.lane.b32.xlu0 %v956, 24
        %v1934 = vpop.permute.xlu0 %1933
        %1935 = vrot.lane.b32.xlu0 %v957, 24
        %v1936 = vpop.permute.xlu0 %1935
        %1937 = vrot.lane.b32.xlu0 %v958, 24
        %v1938 = vpop.permute.xlu0 %1937
        %1939 = vrot.lane.b32.xlu0 %v959, 24
        %v1940 = vpop.permute.xlu0 %1939
        %1941 = vrot.lane.b32.xlu0 %v960, 24
        %v1942 = vpop.permute.xlu0 %1941
        %1943 = vrot.lane.b32.xlu0 %v961, 24
        %v1944 = vpop.permute.xlu0 %1943
        %1945 = vrot.lane.b32.xlu0 %v962, 24
        %v1946 = vpop.permute.xlu0 %1945
        %1947 = vrot.lane.b32.xlu0 %v963, 24
        %v1948 = vpop.permute.xlu0 %1947
        %1949 = vrot.lane.b32.xlu0 %v964, 24
        %v1950 = vpop.permute.xlu0 %1949
        %1951 = vrot.lane.b32.xlu0 %v965, 24
        %v1952 = vpop.permute.xlu0 %1951
        %1953 = vrot.lane.b32.xlu0 %v966, 24
        %v1954 = vpop.permute.xlu0 %1953
        %1955 = vrot.lane.b32.xlu0 %v967, 24
        %v1956 = vpop.permute.xlu0 %1955
        %1957 = vrot.lane.b32.xlu0 %v968, 24
        %v1958 = vpop.permute.xlu0 %1957
        %1959 = vrot.lane.b32.xlu0 %v969, 24
        %v1960 = vpop.permute.xlu0 %1959
        %1961 = vrot.lane.b32.xlu0 %v970, 24
        %v1962 = vpop.permute.xlu0 %1961
        %v1995 = vsel %vm576, %v682, %v1004
        %v1996 = vsel %vm576, %v683, %v1006
        %v1997 = vsel %vm576, %v684, %v1008
        %v1998 = vsel %vm576, %v685, %v1010
        %v1999 = vsel %vm576, %v686, %v1012
        %v2000 = vsel %vm576, %v687, %v1014
        %v2001 = vsel %vm576, %v688, %v1016
        %v2002 = vsel %vm576, %v689, %v1018
        %v2003 = vsel %vm576, %v690, %v1020
        %v2004 = vsel %vm576, %v691, %v1022
        %v2005 = vsel %vm576, %v692, %v1024
        %v2006 = vsel %vm576, %v693, %v1026
        %v2007 = vsel %vm576, %v694, %v1028
        %v2008 = vsel %vm576, %v695, %v1030
        %v2009 = vsel %vm576, %v696, %v1032
        %v2010 = vsel %vm576, %v697, %v1034
        %v2011 = vsel %vm576, %v698, %v1036
        %v2012 = vsel %vm576, %v699, %v1038
        %v2013 = vsel %vm576, %v700, %v1040
        %v2014 = vsel %vm576, %v701, %v1042
        %v2015 = vsel %vm576, %v702, %v1044
        %v2016 = vsel %vm576, %v703, %v1046
        %v2017 = vsel %vm576, %v704, %v1048
        %v2018 = vsel %vm576, %v705, %v1050
        %v2019 = vsel %vm576, %v706, %v1052
        %v2020 = vsel %vm576, %v707, %v1054
        %v2021 = vsel %vm576, %v708, %v1056
        %v2022 = vsel %vm576, %v709, %v1058
        %v2023 = vsel %vm576, %v710, %v1060
        %v2024 = vsel %vm576, %v711, %v1062
        %v2025 = vsel %vm576, %v712, %v1064
        %v2026 = vsel %vm576, %v713, %v1066
        %vm2027 = vcmask 48128
        %v2028 = vsel %vm2027, %v1995, %v1132
        %v2029 = vsel %vm2027, %v1996, %v1134
        %v2030 = vsel %vm2027, %v1997, %v1136
        %v2031 = vsel %vm2027, %v1998, %v1138
        %v2032 = vsel %vm2027, %v1999, %v1140
        %v2033 = vsel %vm2027, %v2000, %v1142
        %v2034 = vsel %vm2027, %v2001, %v1144
        %v2035 = vsel %vm2027, %v2002, %v1146
        %v2036 = vsel %vm2027, %v2003, %v1148
        %v2037 = vsel %vm2027, %v2004, %v1150
        %v2038 = vsel %vm2027, %v2005, %v1152
        %v2039 = vsel %vm2027, %v2006, %v1154
        %v2040 = vsel %vm2027, %v2007, %v1156
        %v2041 = vsel %vm2027, %v2008, %v1158
        %v2042 = vsel %vm2027, %v2009, %v1160
        %v2043 = vsel %vm2027, %v2010, %v1162
        %v2044 = vsel %vm2027, %v2011, %v1164
        %v2045 = vsel %vm2027, %v2012, %v1166
        %v2046 = vsel %vm2027, %v2013, %v1168
        %v2047 = vsel %vm2027, %v2014, %v1170
        %v2048 = vsel %vm2027, %v2015, %v1172
        %v2049 = vsel %vm2027, %v2016, %v1174
        %v2050 = vsel %vm2027, %v2017, %v1176
        %v2051 = vsel %vm2027, %v2018, %v1178
        %v2052 = vsel %vm2027, %v2019, %v1180
        %v2053 = vsel %vm2027, %v2020, %v1182
        %v2054 = vsel %vm2027, %v2021, %v1184
        %v2055 = vsel %vm2027, %v2022, %v1186
        %v2056 = vsel %vm2027, %v2023, %v1188
        %v2057 = vsel %vm2027, %v2024, %v1190
        %v2058 = vsel %vm2027, %v2025, %v1192
        %v2059 = vsel %vm2027, %v2026, %v1194
        %vm2060 = vcmask 72704
        %v2061 = vsel %vm2060, %v2028, %v1260
        %v2062 = vsel %vm2060, %v2029, %v1262
        %v2063 = vsel %vm2060, %v2030, %v1264
        %v2064 = vsel %vm2060, %v2031, %v1266
        %v2065 = vsel %vm2060, %v2032, %v1268
        %v2066 = vsel %vm2060, %v2033, %v1270
        %v2067 = vsel %vm2060, %v2034, %v1272
        %v2068 = vsel %vm2060, %v2035, %v1274
        %v2069 = vsel %vm2060, %v2036, %v1276
        %v2070 = vsel %vm2060, %v2037, %v1278
        %v2071 = vsel %vm2060, %v2038, %v1280
        %v2072 = vsel %vm2060, %v2039, %v1282
        %v2073 = vsel %vm2060, %v2040, %v1284
        %v2074 = vsel %vm2060, %v2041, %v1286
        %v2075 = vsel %vm2060, %v2042, %v1288
        %v2076 = vsel %vm2060, %v2043, %v1290
        %v2077 = vsel %vm2060, %v2044, %v1292
        %v2078 = vsel %vm2060, %v2045, %v1294
        %v2079 = vsel %vm2060, %v2046, %v1296
        %v2080 = vsel %vm2060, %v2047, %v1298
        %v2081 = vsel %vm2060, %v2048, %v1300
        %v2082 = vsel %vm2060, %v2049, %v1302
        %v2083 = vsel %vm2060, %v2050, %v1304
        %v2084 = vsel %vm2060, %v2051, %v1306
        %v2085 = vsel %vm2060, %v2052, %v1308
        %v2086 = vsel %vm2060, %v2053, %v1310
        %v2087 = vsel %vm2060, %v2054, %v1312
        %v2088 = vsel %vm2060, %v2055, %v1314
        %v2089 = vsel %vm2060, %v2056, %v1316
        %v2090 = vsel %vm2060, %v2057, %v1318
        %v2091 = vsel %vm2060, %v2058, %v1320
        %v2092 = vsel %vm2060, %v2059, %v1322
        %vm2093 = vcmask 97280
        %v2094 = vsel %vm2093, %v2061, %v1388
        %v2095 = vsel %vm2093, %v2062, %v1390
        %v2096 = vsel %vm2093, %v2063, %v1392
        %v2097 = vsel %vm2093, %v2064, %v1394
        %v2098 = vsel %vm2093, %v2065, %v1396
        %v2099 = vsel %vm2093, %v2066, %v1398
        %v2100 = vsel %vm2093, %v2067, %v1400
        %v2101 = vsel %vm2093, %v2068, %v1402
        %v2102 = vsel %vm2093, %v2069, %v1404
        %v2103 = vsel %vm2093, %v2070, %v1406
        %v2104 = vsel %vm2093, %v2071, %v1408
        %v2105 = vsel %vm2093, %v2072, %v1410
        %v2106 = vsel %vm2093, %v2073, %v1412
        %v2107 = vsel %vm2093, %v2074, %v1414
        %v2108 = vsel %vm2093, %v2075, %v1416
        %v2109 = vsel %vm2093, %v2076, %v1418
        %v2110 = vsel %vm2093, %v2077, %v1420
        %v2111 = vsel %vm2093, %v2078, %v1422
        %v2112 = vsel %vm2093, %v2079, %v1424
        %v2113 = vsel %vm2093, %v2080, %v1426
        %v2114 = vsel %vm2093, %v2081, %v1428
        %v2115 = vsel %vm2093, %v2082, %v1430
        %v2116 = vsel %vm2093, %v2083, %v1432
        %v2117 = vsel %vm2093, %v2084, %v1434
        %v2118 = vsel %vm2093, %v2085, %v1436
        %v2119 = vsel %vm2093, %v2086, %v1438
        %v2120 = vsel %vm2093, %v2087, %v1440
        %v2121 = vsel %vm2093, %v2088, %v1442
        %v2122 = vsel %vm2093, %v2089, %v1444
        %v2123 = vsel %vm2093, %v2090, %v1446
        %v2124 = vsel %vm2093, %v2091, %v1448
        %v2125 = vsel %vm2093, %v2092, %v1450
        %vm2126 = vcmask 121856
        %v2127 = vsel %vm2126, %v2094, %v1516
        %v2128 = vsel %vm2126, %v2095, %v1518
        %v2129 = vsel %vm2126, %v2096, %v1520
        %v2130 = vsel %vm2126, %v2097, %v1522
        %v2131 = vsel %vm2126, %v2098, %v1524
        %v2132 = vsel %vm2126, %v2099, %v1526
        %v2133 = vsel %vm2126, %v2100, %v1528
        %v2134 = vsel %vm2126, %v2101, %v1530
        %v2135 = vsel %vm2126, %v2102, %v1532
        %v2136 = vsel %vm2126, %v2103, %v1534
        %v2137 = vsel %vm2126, %v2104, %v1536
        %v2138 = vsel %vm2126, %v2105, %v1538
        %v2139 = vsel %vm2126, %v2106, %v1540
        %v2140 = vsel %vm2126, %v2107, %v1542
        %v2141 = vsel %vm2126, %v2108, %v1544
        %v2142 = vsel %vm2126, %v2109, %v1546
        %v2143 = vsel %vm2126, %v2110, %v1548
        %v2144 = vsel %vm2126, %v2111, %v1550
        %v2145 = vsel %vm2126, %v2112, %v1552
        %v2146 = vsel %vm2126, %v2113, %v1554
        %v2147 = vsel %vm2126, %v2114, %v1556
        %v2148 = vsel %vm2126, %v2115, %v1558
        %v2149 = vsel %vm2126, %v2116, %v1560
        %v2150 = vsel %vm2126, %v2117, %v1562
        %v2151 = vsel %vm2126, %v2118, %v1564
        %v2152 = vsel %vm2126, %v2119, %v1566
        %v2153 = vsel %vm2126, %v2120, %v1568
        %v2154 = vsel %vm2126, %v2121, %v1570
        %v2155 = vsel %vm2126, %v2122, %v1572
        %v2156 = vsel %vm2126, %v2123, %v1574
        %v2157 = vsel %vm2126, %v2124, %v1576
        %v2158 = vsel %vm2126, %v2125, %v1578
        %vm2159 = vcmask 146432
        %v2160 = vsel %vm2159, %v2127, %v1644
        %v2161 = vsel %vm2159, %v2128, %v1646
        %v2162 = vsel %vm2159, %v2129, %v1648
        %v2163 = vsel %vm2159, %v2130, %v1650
        %v2164 = vsel %vm2159, %v2131, %v1652
        %v2165 = vsel %vm2159, %v2132, %v1654
        %v2166 = vsel %vm2159, %v2133, %v1656
        %v2167 = vsel %vm2159, %v2134, %v1658
        %v2168 = vsel %vm2159, %v2135, %v1660
        %v2169 = vsel %vm2159, %v2136, %v1662
        %v2170 = vsel %vm2159, %v2137, %v1664
        %v2171 = vsel %vm2159, %v2138, %v1666
        %v2172 = vsel %vm2159, %v2139, %v1668
        %v2173 = vsel %vm2159, %v2140, %v1670
        %v2174 = vsel %vm2159, %v2141, %v1672
        %v2175 = vsel %vm2159, %v2142, %v1674
        %v2176 = vsel %vm2159, %v2143, %v1676
        %v2177 = vsel %vm2159, %v2144, %v1678
        %v2178 = vsel %vm2159, %v2145, %v1680
        %v2179 = vsel %vm2159, %v2146, %v1682
        %v2180 = vsel %vm2159, %v2147, %v1684
        %v2181 = vsel %vm2159, %v2148, %v1686
        %v2182 = vsel %vm2159, %v2149, %v1688
        %v2183 = vsel %vm2159, %v2150, %v1690
        %v2184 = vsel %vm2159, %v2151, %v1692
        %v2185 = vsel %vm2159, %v2152, %v1694
        %v2186 = vsel %vm2159, %v2153, %v1696
        %v2187 = vsel %vm2159, %v2154, %v1698
        %v2188 = vsel %vm2159, %v2155, %v1700
        %v2189 = vsel %vm2159, %v2156, %v1702
        %v2190 = vsel %vm2159, %v2157, %v1704
        %v2191 = vsel %vm2159, %v2158, %v1706
        %vm2192 = vcmask 171008
        %v2193 = vsel %vm2192, %v2160, %v1772
        %v2194 = vsel %vm2192, %v2161, %v1774
        %v2195 = vsel %vm2192, %v2162, %v1776
        %v2196 = vsel %vm2192, %v2163, %v1778
        %v2197 = vsel %vm2192, %v2164, %v1780
        %v2198 = vsel %vm2192, %v2165, %v1782
        %v2199 = vsel %vm2192, %v2166, %v1784
        %v2200 = vsel %vm2192, %v2167, %v1786
        %v2201 = vsel %vm2192, %v2168, %v1788
        %v2202 = vsel %vm2192, %v2169, %v1790
        %v2203 = vsel %vm2192, %v2170, %v1792
        %v2204 = vsel %vm2192, %v2171, %v1794
        %v2205 = vsel %vm2192, %v2172, %v1796
        %v2206 = vsel %vm2192, %v2173, %v1798
        %v2207 = vsel %vm2192, %v2174, %v1800
        %v2208 = vsel %vm2192, %v2175, %v1802
        %v2209 = vsel %vm2192, %v2176, %v1804
        %v2210 = vsel %vm2192, %v2177, %v1806
        %v2211 = vsel %vm2192, %v2178, %v1808
        %v2212 = vsel %vm2192, %v2179, %v1810
        %v2213 = vsel %vm2192, %v2180, %v1812
        %v2214 = vsel %vm2192, %v2181, %v1814
        %v2215 = vsel %vm2192, %v2182, %v1816
        %v2216 = vsel %vm2192, %v2183, %v1818
        %v2217 = vsel %vm2192, %v2184, %v1820
        %v2218 = vsel %vm2192, %v2185, %v1822
        %v2219 = vsel %vm2192, %v2186, %v1824
        %v2220 = vsel %vm2192, %v2187, %v1826
        %v2221 = vsel %vm2192, %v2188, %v1828
        %v2222 = vsel %vm2192, %v2189, %v1830
        %v2223 = vsel %vm2192, %v2190, %v1832
        %v2224 = vsel %vm2192, %v2191, %v1834
        %vm2225 = vcmask 195584
        %v2226 = vsel %vm2225, %v2193, %v1900
        %v2227 = vsel %vm2225, %v2194, %v1902
        %v2228 = vsel %vm2225, %v2195, %v1904
        %v2229 = vsel %vm2225, %v2196, %v1906
        %v2230 = vsel %vm2225, %v2197, %v1908
        %v2231 = vsel %vm2225, %v2198, %v1910
        %v2232 = vsel %vm2225, %v2199, %v1912
        %v2233 = vsel %vm2225, %v2200, %v1914
        %v2234 = vsel %vm2225, %v2201, %v1916
        %v2235 = vsel %vm2225, %v2202, %v1918
        %v2236 = vsel %vm2225, %v2203, %v1920
        %v2237 = vsel %vm2225, %v2204, %v1922
        %v2238 = vsel %vm2225, %v2205, %v1924
        %v2239 = vsel %vm2225, %v2206, %v1926
        %v2240 = vsel %vm2225, %v2207, %v1928
        %v2241 = vsel %vm2225, %v2208, %v1930
        %v2242 = vsel %vm2225, %v2209, %v1932
        %v2243 = vsel %vm2225, %v2210, %v1934
        %v2244 = vsel %vm2225, %v2211, %v1936
        %v2245 = vsel %vm2225, %v2212, %v1938
        %v2246 = vsel %vm2225, %v2213, %v1940
        %v2247 = vsel %vm2225, %v2214, %v1942
        %v2248 = vsel %vm2225, %v2215, %v1944
        %v2249 = vsel %vm2225, %v2216, %v1946
        %v2250 = vsel %vm2225, %v2217, %v1948
        %v2251 = vsel %vm2225, %v2218, %v1950
        %v2252 = vsel %vm2225, %v2219, %v1952
        %v2253 = vsel %vm2225, %v2220, %v1954
        %v2254 = vsel %vm2225, %v2221, %v1956
        %v2255 = vsel %vm2225, %v2222, %v1958
        %v2256 = vsel %vm2225, %v2223, %v1960
        %v2257 = vsel %vm2225, %v2224, %v1962
        %v2258 = vpack.c.bf16 %v2227, %v2226
        %v2259 = vpack.c.bf16 %v2229, %v2228
        %v2260 = vpack.c.bf16 %v2231, %v2230
        %v2261 = vpack.c.bf16 %v2233, %v2232
        %v2262 = vpack.c.bf16 %v2235, %v2234
        %v2263 = vpack.c.bf16 %v2237, %v2236
        %v2264 = vpack.c.bf16 %v2239, %v2238
        %v2265 = vpack.c.bf16 %v2241, %v2240
        %v2266 = vpack.c.bf16 %v2243, %v2242
        %v2267 = vpack.c.bf16 %v2245, %v2244
        %v2268 = vpack.c.bf16 %v2247, %v2246
        %v2269 = vpack.c.bf16 %v2249, %v2248
        %v2270 = vpack.c.bf16 %v2251, %v2250
        %v2271 = vpack.c.bf16 %v2253, %v2252
        %v2272 = vpack.c.bf16 %v2255, %v2254
        %v2273 = vpack.c.bf16 %v2257, %v2256
        %v2274 = vld [vmem:[%s3] sm:$0xf]
        %v2275 = vld [vmem:[%s3 + $0x4] sm:$0xf]
        %v2276 = vld [vmem:[%s3 + $0x8] sm:$0xf]
        %v2277 = vld [vmem:[%s3 + $0xc] sm:$0x3]
        %v2282 = vunpack.c.l.b16 %v2274
        %v2283 = vunpack.c.l.b16 %v2275
        %v2284 = vunpack.c.l.b16 %v2276
        %v2285 = vunpack.c.l.b16 %v2277
        %v2286 = vpack.c.b16 %v2283, %v2282
        %v2287 = vpack.c.b16 %v2285, %v2284
        %vm2289 = vcmask 220160
        %v2291 = vsel %vm2289, %v2258, 0
        %v2294 = vsel %vm2289, %v2259, 0
        %v2297 = vsel %vm2289, %v2260, 0
        %v2300 = vsel %vm2289, %v2261, 0
        %v2303 = vsel %vm2289, %v2262, 0
        %v2306 = vsel %vm2289, %v2263, 0
        %v2309 = vsel %vm2289, %v2264, 0
        %v2312 = vsel %vm2289, %v2265, 0
        %v2315 = vsel %vm2289, %v2266, 0
        %v2318 = vsel %vm2289, %v2267, 0
        %v2321 = vsel %vm2289, %v2268, 0
        %v2324 = vsel %vm2289, %v2269, 0
        %v2327 = vsel %vm2289, %v2270, 0
        %v2330 = vsel %vm2289, %v2271, 0
        %v2333 = vsel %vm2289, %v2272, 0
        %v2336 = vsel %vm2289, %v2273, 0
        %vm2338 = vcmask 1044480
        %vm2339 = vcmask 1045504
        %v2340 = vsel %vm2338, 4294967295, 65535
        %v2341 = vsel %vm2339, %v2340, 0
        %v2343 = vand.u32 %v2287, %v2341
        %2345 = vmatprep.subr.bf16.mxu0 0
        %2346 = vmatpush1.bf16.msra.mxu0 %v2286
        %2347 = vmatprep.subr.bf16.mxu0 0
        %2348 = vmatpush1.bf16.msra.mxu0 %v2343
        %2349 = vmatprep.subr.bf16.mxu0 0
        %2350 = vmatpush1.bf16.msra.mxu0 0
        %2351 = vmatprep.subr.bf16.mxu0 0
        %2352 = vmatpush1.bf16.msra.mxu0 0
        %2353 = vmatprep.subr.bf16.mxu0 0
        %2354 = vmatpush1.bf16.msra.mxu0 0
        %2355 = vmatprep.subr.bf16.mxu0 0
        %2356 = vmatpush1.bf16.msra.mxu0 0
        %2357 = vmatprep.subr.bf16.mxu0 0
        %2358 = vmatpush1.bf16.msra.mxu0 0
        %2359 = vmatprep.subr.bf16.mxu0 0
        %2360 = vmatpush1.bf16.msra.mxu0 0
        %2361 = vmatprep.subr.bf16.mxu0 0
        %2362 = vmatpush1.bf16.msra.mxu0 0
        %2363 = vmatprep.subr.bf16.mxu0 0
        %2364 = vmatpush1.bf16.msra.mxu0 0
        %2365 = vmatprep.subr.bf16.mxu0 0
        %2366 = vmatpush1.bf16.msra.mxu0 0
        %2367 = vmatprep.subr.bf16.mxu0 0
        %2368 = vmatpush1.bf16.msra.mxu0 0
        %2369 = vmatprep.subr.bf16.mxu0 0
        %2370 = vmatpush1.bf16.msra.mxu0 0
        %2371 = vmatprep.subr.bf16.mxu0 0
        %2372 = vmatpush1.bf16.msra.mxu0 0
        %2373 = vmatprep.subr.bf16.mxu0 0
        %2374 = vmatpush1.bf16.msra.mxu0 0
        %2375 = vmatprep.subr.bf16.mxu0 0
        %2376 = vmatpush1.bf16.msra.mxu0 0
        %2377 = vmatprep.mubr.bf16.mxu0 0
        %2378 = vmatmul.mubr.bf16.gmra.mrb[0].mxu0 %v2291
        %v2379 = vpop.f32.mrb[0].mxu0
        %v2380 = vadd.f32 0.0, %v2379
        %v2381 = vpop.f32.mrb[0].mxu0
        %v2382 = vpop.f32.mrb[0].mxu0
        %v2383 = vadd.f32 0.0, %v2382
        %v2384 = vpop.f32.mrb[0].mxu0
        %2385 = vmatprep.mubr.bf16.mxu0 0
        %2386 = vmatmul.mubr.bf16.gmra.mrb[0].mxu0 %v2294
        %v2387 = vpop.f32.mrb[0].mxu0
        %v2388 = vadd.f32 0.0, %v2387
        %v2389 = vpop.f32.mrb[0].mxu0
        %v2390 = vpop.f32.mrb[0].mxu0
        %v2391 = vadd.f32 0.0, %v2390
        %v2392 = vpop.f32.mrb[0].mxu0
        %2393 = vmatprep.mubr.bf16.mxu0 0
        %2394 = vmatmul.mubr.bf16.gmra.mrb[0].mxu0 %v2297
        %v2395 = vpop.f32.mrb[0].mxu0
        %v2396 = vadd.f32 0.0, %v2395
        %v2397 = vpop.f32.mrb[0].mxu0
        %v2398 = vpop.f32.mrb[0].mxu0
        %v2399 = vadd.f32 0.0, %v2398
        %v2400 = vpop.f32.mrb[0].mxu0
        %2401 = vmatprep.mubr.bf16.mxu0 0
        %2402 = vmatmul.mubr.bf16.gmra.mrb[0].mxu0 %v2300
        %v2403 = vpop.f32.mrb[0].mxu0
        %v2404 = vadd.f32 0.0, %v2403
        %v2405 = vpop.f32.mrb[0].mxu0
        %v2406 = vpop.f32.mrb[0].mxu0
        %v2407 = vadd.f32 0.0, %v2406
        %v2408 = vpop.f32.mrb[0].mxu0
        %2409 = vmatprep.mubr.bf16.mxu0 0
        %2410 = vmatmul.mubr.bf16.gmra.mrb[0].mxu0 %v2303
        %v2411 = vpop.f32.mrb[0].mxu0
        %v2412 = vadd.f32 0.0, %v2411
        %v2413 = vpop.f32.mrb[0].mxu0
        %v2414 = vpop.f32.mrb[0].mxu0
        %v2415 = vadd.f32 0.0, %v2414
        %v2416 = vpop.f32.mrb[0].mxu0
        %2417 = vmatprep.mubr.bf16.mxu0 0
        %2418 = vmatmul.mubr.bf16.gmra.mrb[0].mxu0 %v2306
        %v2419 = vpop.f32.mrb[0].mxu0
        %v2420 = vadd.f32 0.0, %v2419
        %v2421 = vpop.f32.mrb[0].mxu0
        %v2422 = vpop.f32.mrb[0].mxu0
        %v2423 = vadd.f32 0.0, %v2422
        %v2424 = vpop.f32.mrb[0].mxu0
        %2425 = vmatprep.mubr.bf16.mxu0 0
        %2426 = vmatmul.mubr.bf16.gmra.mrb[0].mxu0 %v2309
        %v2427 = vpop.f32.mrb[0].mxu0
        %v2428 = vadd.f32 0.0, %v2427
        %v2429 = vpop.f32.mrb[0].mxu0
        %v2430 = vpop.f32.mrb[0].mxu0
        %v2431 = vadd.f32 0.0, %v2430
        %v2432 = vpop.f32.mrb[0].mxu0
        %2433 = vmatprep.mubr.bf16.mxu0 0
        %2434 = vmatmul.mubr.bf16.gmra.mrb[0].mxu0 %v2312
        %v2435 = vpop.f32.mrb[0].mxu0
        %v2436 = vadd.f32 0.0, %v2435
        %v2437 = vpop.f32.mrb[0].mxu0
        %v2438 = vpop.f32.mrb[0].mxu0
        %v2439 = vadd.f32 0.0, %v2438
        %v2440 = vpop.f32.mrb[0].mxu0
        %2441 = vmatprep.mubr.bf16.mxu0 0
        %2442 = vmatmul.mubr.bf16.gmra.mrb[0].mxu0 %v2315
        %v2443 = vpop.f32.mrb[0].mxu0
        %v2444 = vadd.f32 0.0, %v2443
        %v2445 = vpop.f32.mrb[0].mxu0
        %v2446 = vpop.f32.mrb[0].mxu0
        %v2447 = vadd.f32 0.0, %v2446
        %v2448 = vpop.f32.mrb[0].mxu0
        %2449 = vmatprep.mubr.bf16.mxu0 0
        %2450 = vmatmul.mubr.bf16.gmra.mrb[0].mxu0 %v2318
        %v2451 = vpop.f32.mrb[0].mxu0
        %v2452 = vadd.f32 0.0, %v2451
        %v2453 = vpop.f32.mrb[0].mxu0
        %v2454 = vpop.f32.mrb[0].mxu0
        %v2455 = vadd.f32 0.0, %v2454
        %v2456 = vpop.f32.mrb[0].mxu0
        %2457 = vmatprep.mubr.bf16.mxu0 0
        %2458 = vmatmul.mubr.bf16.gmra.mrb[0].mxu0 %v2321
        %v2459 = vpop.f32.mrb[0].mxu0
        %v2460 = vadd.f32 0.0, %v2459
        %v2461 = vpop.f32.mrb[0].mxu0
        %v2462 = vpop.f32.mrb[0].mxu0
        %v2463 = vadd.f32 0.0, %v2462
        %v2464 = vpop.f32.mrb[0].mxu0
        %2465 = vmatprep.mubr.bf16.mxu0 0
        %2466 = vmatmul.mubr.bf16.gmra.mrb[0].mxu0 %v2324
        %v2467 = vpop.f32.mrb[0].mxu0
        %v2468 = vadd.f32 0.0, %v2467
        %v2469 = vpop.f32.mrb[0].mxu0
        %v2470 = vpop.f32.mrb[0].mxu0
        %v2471 = vadd.f32 0.0, %v2470
        %v2472 = vpop.f32.mrb[0].mxu0
        %2473 = vmatprep.mubr.bf16.mxu0 0
        %2474 = vmatmul.mubr.bf16.gmra.mrb[0].mxu0 %v2327
        %v2475 = vpop.f32.mrb[0].mxu0
        %v2476 = vadd.f32 0.0, %v2475
        %v2477 = vpop.f32.mrb[0].mxu0
        %v2478 = vpop.f32.mrb[0].mxu0
        %v2479 = vadd.f32 0.0, %v2478
        %v2480 = vpop.f32.mrb[0].mxu0
        %2481 = vmatprep.mubr.bf16.mxu0 0
        %2482 = vmatmul.mubr.bf16.gmra.mrb[0].mxu0 %v2330
        %v2483 = vpop.f32.mrb[0].mxu0
        %v2484 = vadd.f32 0.0, %v2483
        %v2485 = vpop.f32.mrb[0].mxu0
        %v2486 = vpop.f32.mrb[0].mxu0
        %v2487 = vadd.f32 0.0, %v2486
        %v2488 = vpop.f32.mrb[0].mxu0
        %2489 = vmatprep.mubr.bf16.mxu0 0
        %2490 = vmatmul.mubr.bf16.gmra.mrb[0].mxu0 %v2333
        %v2491 = vpop.f32.mrb[0].mxu0
        %v2492 = vadd.f32 0.0, %v2491
        %v2493 = vpop.f32.mrb[0].mxu0
        %v2494 = vpop.f32.mrb[0].mxu0
        %v2495 = vadd.f32 0.0, %v2494
        %v2496 = vpop.f32.mrb[0].mxu0
        %2497 = vmatprep.mubr.bf16.mxu0 0
        %2498 = vmatmul.mubr.bf16.gmra.mrb[0].mxu0 %v2336
        %v2499 = vpop.f32.mrb[0].mxu0
        %v2500 = vadd.f32 0.0, %v2499
        %v2501 = vpop.f32.mrb[0].mxu0
        %v2502 = vpop.f32.mrb[0].mxu0
        %v2503 = vadd.f32 0.0, %v2502
        %v2504 = vpop.f32.mrb[0].mxu0
        %2505 = vdwg.mxu0
        %v2506 = vld [vmem:[%s4] sm:$0x1]
        %v2508 = vlaneseq
        %v2509 = vshrl.u32 %v2508, 7
        %v2510 = vsub.s32 0, %v2509
        %v2511 = vrot.slane %v2506, %v2510
        %v2513 = vmul.f32 %v2380, %v2511
        %v2514 = vmul.f32 %v2383, %v2511
        %v2515 = vmul.f32 %v2388, %v2511
        %v2516 = vmul.f32 %v2391, %v2511
        %v2517 = vmul.f32 %v2396, %v2511
        %v2518 = vmul.f32 %v2399, %v2511
        %v2519 = vmul.f32 %v2404, %v2511
        %v2520 = vmul.f32 %v2407, %v2511
        %v2521 = vmul.f32 %v2412, %v2511
        %v2522 = vmul.f32 %v2415, %v2511
        %v2523 = vmul.f32 %v2420, %v2511
        %v2524 = vmul.f32 %v2423, %v2511
        %v2525 = vmul.f32 %v2428, %v2511
        %v2526 = vmul.f32 %v2431, %v2511
        %v2527 = vmul.f32 %v2436, %v2511
        %v2528 = vmul.f32 %v2439, %v2511
        %v2529 = vmul.f32 %v2444, %v2511
        %v2530 = vmul.f32 %v2447, %v2511
        %v2531 = vmul.f32 %v2452, %v2511
        %v2532 = vmul.f32 %v2455, %v2511
        %v2533 = vmul.f32 %v2460, %v2511
        %v2534 = vmul.f32 %v2463, %v2511
        %v2535 = vmul.f32 %v2468, %v2511
        %v2536 = vmul.f32 %v2471, %v2511
        %v2537 = vmul.f32 %v2476, %v2511
        %v2538 = vmul.f32 %v2479, %v2511
        %v2539 = vmul.f32 %v2484, %v2511
        %v2540 = vmul.f32 %v2487, %v2511
        %v2541 = vmul.f32 %v2492, %v2511
        %v2542 = vmul.f32 %v2495, %v2511
        %v2543 = vmul.f32 %v2500, %v2511
        %v2544 = vmul.f32 %v2503, %v2511
        %v2545 = vld [vmem:[%s5] sm:$0x1]
        %v2547 = vlaneseq
        %v2548 = vshrl.u32 %v2547, 7
        %v2549 = vsub.s32 0, %v2548
        %v2550 = vrot.slane %v2545, %v2549
        %v2552 = vadd.f32 %v2513, %v2550
        %v2553 = vadd.f32 %v2514, %v2550
        %v2554 = vadd.f32 %v2515, %v2550
        %v2555 = vadd.f32 %v2516, %v2550
        %v2556 = vadd.f32 %v2517, %v2550
        %v2557 = vadd.f32 %v2518, %v2550
        %v2558 = vadd.f32 %v2519, %v2550
        %v2559 = vadd.f32 %v2520, %v2550
        %v2560 = vadd.f32 %v2521, %v2550
        %v2561 = vadd.f32 %v2522, %v2550
        %v2562 = vadd.f32 %v2523, %v2550
        %v2563 = vadd.f32 %v2524, %v2550
        %v2564 = vadd.f32 %v2525, %v2550
        %v2565 = vadd.f32 %v2526, %v2550
        %v2566 = vadd.f32 %v2527, %v2550
        %v2567 = vadd.f32 %v2528, %v2550
        %v2568 = vadd.f32 %v2529, %v2550
        %v2569 = vadd.f32 %v2530, %v2550
        %v2570 = vadd.f32 %v2531, %v2550
        %v2571 = vadd.f32 %v2532, %v2550
        %v2572 = vadd.f32 %v2533, %v2550
        %v2573 = vadd.f32 %v2534, %v2550
        %v2574 = vadd.f32 %v2535, %v2550
        %v2575 = vadd.f32 %v2536, %v2550
        %v2576 = vadd.f32 %v2537, %v2550
        %v2577 = vadd.f32 %v2538, %v2550
        %v2578 = vadd.f32 %v2539, %v2550
        %v2579 = vadd.f32 %v2540, %v2550
        %v2580 = vadd.f32 %v2541, %v2550
        %v2581 = vadd.f32 %v2542, %v2550
        %v2582 = vadd.f32 %v2543, %v2550
        %v2583 = vadd.f32 %v2544, %v2550
        %v2584 = vmax.f32 %v2552, 0.0
        %v2585 = vmax.f32 %v2553, 0.0
        %v2586 = vmax.f32 %v2554, 0.0
        %v2587 = vmax.f32 %v2555, 0.0
        %v2588 = vmax.f32 %v2556, 0.0
        %v2589 = vmax.f32 %v2557, 0.0
        %v2590 = vmax.f32 %v2558, 0.0
        %v2591 = vmax.f32 %v2559, 0.0
        %v2592 = vmax.f32 %v2560, 0.0
        %v2593 = vmax.f32 %v2561, 0.0
        %v2594 = vmax.f32 %v2562, 0.0
        %v2595 = vmax.f32 %v2563, 0.0
        %v2596 = vmax.f32 %v2564, 0.0
        %v2597 = vmax.f32 %v2565, 0.0
        %v2598 = vmax.f32 %v2566, 0.0
        %v2599 = vmax.f32 %v2567, 0.0
        %v2600 = vmax.f32 %v2568, 0.0
        %v2601 = vmax.f32 %v2569, 0.0
        %v2602 = vmax.f32 %v2570, 0.0
        %v2603 = vmax.f32 %v2571, 0.0
        %v2604 = vmax.f32 %v2572, 0.0
        %v2605 = vmax.f32 %v2573, 0.0
        %v2606 = vmax.f32 %v2574, 0.0
        %v2607 = vmax.f32 %v2575, 0.0
        %v2608 = vmax.f32 %v2576, 0.0
        %v2609 = vmax.f32 %v2577, 0.0
        %v2610 = vmax.f32 %v2578, 0.0
        %v2611 = vmax.f32 %v2579, 0.0
        %v2612 = vmax.f32 %v2580, 0.0
        %v2613 = vmax.f32 %v2581, 0.0
        %v2614 = vmax.f32 %v2582, 0.0
        %v2615 = vmax.f32 %v2583, 0.0
        %v2648 = vcombine.high %v2584, %v2584
        %v2650 = vunpack.c.l.s4 1983009808
        %v2651 = vunpack.c.0.s8 %v2650
        %v2652 = vlaneseq
        %v2653 = vshrl.u32 %v2652, 7
        %v2654 = vsub.s32 %v2651, %v2653
        %v2655 = vrot.slane %v2584, %v2654
        %v2657 = vunpack.c.l.s4 1983009808
        %v2658 = vunpack.c.0.s8 %v2657
        %v2659 = vlaneseq
        %v2660 = vshrl.u32 %v2659, 7
        %v2661 = vsub.s32 %v2658, %v2660
        %v2662 = vrot.slane %v2648, %v2661
        %v2663 = vcombine.high %v2655, %v2655
        %v2664 = vcombine.high %v2662, %v2662
        %v2665 = vcombine.high %v2585, %v2585
        %v2667 = vunpack.c.l.s4 1983009808
        %v2668 = vunpack.c.0.s8 %v2667
        %v2669 = vlaneseq
        %v2670 = vshrl.u32 %v2669, 7
        %v2671 = vsub.s32 %v2668, %v2670
        %v2672 = vrot.slane %v2585, %v2671
        %v2674 = vunpack.c.l.s4 1983009808
        %v2675 = vunpack.c.0.s8 %v2674
        %v2676 = vlaneseq
        %v2677 = vshrl.u32 %v2676, 7
        %v2678 = vsub.s32 %v2675, %v2677
        %v2679 = vrot.slane %v2665, %v2678
        %v2680 = vcombine.high %v2672, %v2672
        %v2681 = vcombine.high %v2679, %v2679
        %v2682 = vcombine.high %v2586, %v2586
        %v2684 = vunpack.c.l.s4 1983009808
        %v2685 = vunpack.c.0.s8 %v2684
        %v2686 = vlaneseq
        %v2687 = vshrl.u32 %v2686, 7
        %v2688 = vsub.s32 %v2685, %v2687
        %v2689 = vrot.slane %v2586, %v2688
        %v2691 = vunpack.c.l.s4 1983009808
        %v2692 = vunpack.c.0.s8 %v2691
        %v2693 = vlaneseq
        %v2694 = vshrl.u32 %v2693, 7
        %v2695 = vsub.s32 %v2692, %v2694
        %v2696 = vrot.slane %v2682, %v2695
        %v2697 = vcombine.high %v2689, %v2689
        %v2698 = vcombine.high %v2696, %v2696
        %v2699 = vcombine.high %v2587, %v2587
        %v2701 = vunpack.c.l.s4 1983009808
        %v2702 = vunpack.c.0.s8 %v2701
        %v2703 = vlaneseq
        %v2704 = vshrl.u32 %v2703, 7
        %v2705 = vsub.s32 %v2702, %v2704
        %v2706 = vrot.slane %v2587, %v2705
        %v2708 = vunpack.c.l.s4 1983009808
        %v2709 = vunpack.c.0.s8 %v2708
        %v2710 = vlaneseq
        %v2711 = vshrl.u32 %v2710, 7
        %v2712 = vsub.s32 %v2709, %v2711
        %v2713 = vrot.slane %v2699, %v2712
        %v2714 = vcombine.high %v2706, %v2706
        %v2715 = vcombine.high %v2713, %v2713
        %v2716 = vcombine.high %v2588, %v2588
        %v2718 = vunpack.c.l.s4 1983009808
        %v2719 = vunpack.c.0.s8 %v2718
        %v2720 = vlaneseq
        %v2721 = vshrl.u32 %v2720, 7
        %v2722 = vsub.s32 %v2719, %v2721
        %v2723 = vrot.slane %v2588, %v2722
        %v2725 = vunpack.c.l.s4 1983009808
        %v2726 = vunpack.c.0.s8 %v2725
        %v2727 = vlaneseq
        %v2728 = vshrl.u32 %v2727, 7
        %v2729 = vsub.s32 %v2726, %v2728
        %v2730 = vrot.slane %v2716, %v2729
        %v2731 = vcombine.high %v2723, %v2723
        %v2732 = vcombine.high %v2730, %v2730
        %v2733 = vcombine.high %v2589, %v2589
        %v2735 = vunpack.c.l.s4 1983009808
        %v2736 = vunpack.c.0.s8 %v2735
        %v2737 = vlaneseq
        %v2738 = vshrl.u32 %v2737, 7
        %v2739 = vsub.s32 %v2736, %v2738
        %v2740 = vrot.slane %v2589, %v2739
        %v2742 = vunpack.c.l.s4 1983009808
        %v2743 = vunpack.c.0.s8 %v2742
        %v2744 = vlaneseq
        %v2745 = vshrl.u32 %v2744, 7
        %v2746 = vsub.s32 %v2743, %v2745
        %v2747 = vrot.slane %v2733, %v2746
        %v2748 = vcombine.high %v2740, %v2740
        %v2749 = vcombine.high %v2747, %v2747
        %v2750 = vcombine.high %v2590, %v2590
        %v2752 = vunpack.c.l.s4 1983009808
        %v2753 = vunpack.c.0.s8 %v2752
        %v2754 = vlaneseq
        %v2755 = vshrl.u32 %v2754, 7
        %v2756 = vsub.s32 %v2753, %v2755
        %v2757 = vrot.slane %v2590, %v2756
        %v2759 = vunpack.c.l.s4 1983009808
        %v2760 = vunpack.c.0.s8 %v2759
        %v2761 = vlaneseq
        %v2762 = vshrl.u32 %v2761, 7
        %v2763 = vsub.s32 %v2760, %v2762
        %v2764 = vrot.slane %v2750, %v2763
        %v2765 = vcombine.high %v2757, %v2757
        %v2766 = vcombine.high %v2764, %v2764
        %v2767 = vcombine.high %v2591, %v2591
        %v2769 = vunpack.c.l.s4 1983009808
        %v2770 = vunpack.c.0.s8 %v2769
        %v2771 = vlaneseq
        %v2772 = vshrl.u32 %v2771, 7
        %v2773 = vsub.s32 %v2770, %v2772
        %v2774 = vrot.slane %v2591, %v2773
        %v2776 = vunpack.c.l.s4 1983009808
        %v2777 = vunpack.c.0.s8 %v2776
        %v2778 = vlaneseq
        %v2779 = vshrl.u32 %v2778, 7
        %v2780 = vsub.s32 %v2777, %v2779
        %v2781 = vrot.slane %v2767, %v2780
        %v2782 = vcombine.high %v2774, %v2774
        %v2783 = vcombine.high %v2781, %v2781
        %v2784 = vcombine.high %v2592, %v2592
        %v2786 = vunpack.c.l.s4 1983009808
        %v2787 = vunpack.c.0.s8 %v2786
        %v2788 = vlaneseq
        %v2789 = vshrl.u32 %v2788, 7
        %v2790 = vsub.s32 %v2787, %v2789
        %v2791 = vrot.slane %v2592, %v2790
        %v2793 = vunpack.c.l.s4 1983009808
        %v2794 = vunpack.c.0.s8 %v2793
        %v2795 = vlaneseq
        %v2796 = vshrl.u32 %v2795, 7
        %v2797 = vsub.s32 %v2794, %v2796
        %v2798 = vrot.slane %v2784, %v2797
        %v2799 = vcombine.high %v2791, %v2791
        %v2800 = vcombine.high %v2798, %v2798
        %v2801 = vcombine.high %v2593, %v2593
        %v2803 = vunpack.c.l.s4 1983009808
        %v2804 = vunpack.c.0.s8 %v2803
        %v2805 = vlaneseq
        %v2806 = vshrl.u32 %v2805, 7
        %v2807 = vsub.s32 %v2804, %v2806
        %v2808 = vrot.slane %v2593, %v2807
        %v2810 = vunpack.c.l.s4 1983009808
        %v2811 = vunpack.c.0.s8 %v2810
        %v2812 = vlaneseq
        %v2813 = vshrl.u32 %v2812, 7
        %v2814 = vsub.s32 %v2811, %v2813
        %v2815 = vrot.slane %v2801, %v2814
        %v2816 = vcombine.high %v2808, %v2808
        %v2817 = vcombine.high %v2815, %v2815
        %v2818 = vcombine.high %v2594, %v2594
        %v2820 = vunpack.c.l.s4 1983009808
        %v2821 = vunpack.c.0.s8 %v2820
        %v2822 = vlaneseq
        %v2823 = vshrl.u32 %v2822, 7
        %v2824 = vsub.s32 %v2821, %v2823
        %v2825 = vrot.slane %v2594, %v2824
        %v2827 = vunpack.c.l.s4 1983009808
        %v2828 = vunpack.c.0.s8 %v2827
        %v2829 = vlaneseq
        %v2830 = vshrl.u32 %v2829, 7
        %v2831 = vsub.s32 %v2828, %v2830
        %v2832 = vrot.slane %v2818, %v2831
        %v2833 = vcombine.high %v2825, %v2825
        %v2834 = vcombine.high %v2832, %v2832
        %v2835 = vcombine.high %v2595, %v2595
        %v2837 = vunpack.c.l.s4 1983009808
        %v2838 = vunpack.c.0.s8 %v2837
        %v2839 = vlaneseq
        %v2840 = vshrl.u32 %v2839, 7
        %v2841 = vsub.s32 %v2838, %v2840
        %v2842 = vrot.slane %v2595, %v2841
        %v2844 = vunpack.c.l.s4 1983009808
        %v2845 = vunpack.c.0.s8 %v2844
        %v2846 = vlaneseq
        %v2847 = vshrl.u32 %v2846, 7
        %v2848 = vsub.s32 %v2845, %v2847
        %v2849 = vrot.slane %v2835, %v2848
        %v2850 = vcombine.high %v2842, %v2842
        %v2851 = vcombine.high %v2849, %v2849
        %v2852 = vcombine.high %v2596, %v2596
        %v2854 = vunpack.c.l.s4 1983009808
        %v2855 = vunpack.c.0.s8 %v2854
        %v2856 = vlaneseq
        %v2857 = vshrl.u32 %v2856, 7
        %v2858 = vsub.s32 %v2855, %v2857
        %v2859 = vrot.slane %v2596, %v2858
        %v2861 = vunpack.c.l.s4 1983009808
        %v2862 = vunpack.c.0.s8 %v2861
        %v2863 = vlaneseq
        %v2864 = vshrl.u32 %v2863, 7
        %v2865 = vsub.s32 %v2862, %v2864
        %v2866 = vrot.slane %v2852, %v2865
        %v2867 = vcombine.high %v2859, %v2859
        %v2868 = vcombine.high %v2866, %v2866
        %v2869 = vcombine.high %v2597, %v2597
        %v2871 = vunpack.c.l.s4 1983009808
        %v2872 = vunpack.c.0.s8 %v2871
        %v2873 = vlaneseq
        %v2874 = vshrl.u32 %v2873, 7
        %v2875 = vsub.s32 %v2872, %v2874
        %v2876 = vrot.slane %v2597, %v2875
        %v2878 = vunpack.c.l.s4 1983009808
        %v2879 = vunpack.c.0.s8 %v2878
        %v2880 = vlaneseq
        %v2881 = vshrl.u32 %v2880, 7
        %v2882 = vsub.s32 %v2879, %v2881
        %v2883 = vrot.slane %v2869, %v2882
        %v2884 = vcombine.high %v2876, %v2876
        %v2885 = vcombine.high %v2883, %v2883
        %v2886 = vcombine.high %v2598, %v2598
        %v2888 = vunpack.c.l.s4 1983009808
        %v2889 = vunpack.c.0.s8 %v2888
        %v2890 = vlaneseq
        %v2891 = vshrl.u32 %v2890, 7
        %v2892 = vsub.s32 %v2889, %v2891
        %v2893 = vrot.slane %v2598, %v2892
        %v2895 = vunpack.c.l.s4 1983009808
        %v2896 = vunpack.c.0.s8 %v2895
        %v2897 = vlaneseq
        %v2898 = vshrl.u32 %v2897, 7
        %v2899 = vsub.s32 %v2896, %v2898
        %v2900 = vrot.slane %v2886, %v2899
        %v2901 = vcombine.high %v2893, %v2893
        %v2902 = vcombine.high %v2900, %v2900
        %v2903 = vcombine.high %v2599, %v2599
        %v2905 = vunpack.c.l.s4 1983009808
        %v2906 = vunpack.c.0.s8 %v2905
        %v2907 = vlaneseq
        %v2908 = vshrl.u32 %v2907, 7
        %v2909 = vsub.s32 %v2906, %v2908
        %v2910 = vrot.slane %v2599, %v2909
        %v2912 = vunpack.c.l.s4 1983009808
        %v2913 = vunpack.c.0.s8 %v2912
        %v2914 = vlaneseq
        %v2915 = vshrl.u32 %v2914, 7
        %v2916 = vsub.s32 %v2913, %v2915
        %v2917 = vrot.slane %v2903, %v2916
        %v2918 = vcombine.high %v2910, %v2910
        %v2919 = vcombine.high %v2917, %v2917
        %v2920 = vcombine.high %v2600, %v2600
        %v2922 = vunpack.c.l.s4 1983009808
        %v2923 = vunpack.c.0.s8 %v2922
        %v2924 = vlaneseq
        %v2925 = vshrl.u32 %v2924, 7
        %v2926 = vsub.s32 %v2923, %v2925
        %v2927 = vrot.slane %v2600, %v2926
        %v2929 = vunpack.c.l.s4 1983009808
        %v2930 = vunpack.c.0.s8 %v2929
        %v2931 = vlaneseq
        %v2932 = vshrl.u32 %v2931, 7
        %v2933 = vsub.s32 %v2930, %v2932
        %v2934 = vrot.slane %v2920, %v2933
        %v2935 = vcombine.high %v2927, %v2927
        %v2936 = vcombine.high %v2934, %v2934
        %v2937 = vcombine.high %v2601, %v2601
        %v2939 = vunpack.c.l.s4 1983009808
        %v2940 = vunpack.c.0.s8 %v2939
        %v2941 = vlaneseq
        %v2942 = vshrl.u32 %v2941, 7
        %v2943 = vsub.s32 %v2940, %v2942
        %v2944 = vrot.slane %v2601, %v2943
        %v2946 = vunpack.c.l.s4 1983009808
        %v2947 = vunpack.c.0.s8 %v2946
        %v2948 = vlaneseq
        %v2949 = vshrl.u32 %v2948, 7
        %v2950 = vsub.s32 %v2947, %v2949
        %v2951 = vrot.slane %v2937, %v2950
        %v2952 = vcombine.high %v2944, %v2944
        %v2953 = vcombine.high %v2951, %v2951
        %v2954 = vcombine.high %v2602, %v2602
        %v2956 = vunpack.c.l.s4 1983009808
        %v2957 = vunpack.c.0.s8 %v2956
        %v2958 = vlaneseq
        %v2959 = vshrl.u32 %v2958, 7
        %v2960 = vsub.s32 %v2957, %v2959
        %v2961 = vrot.slane %v2602, %v2960
        %v2963 = vunpack.c.l.s4 1983009808
        %v2964 = vunpack.c.0.s8 %v2963
        %v2965 = vlaneseq
        %v2966 = vshrl.u32 %v2965, 7
        %v2967 = vsub.s32 %v2964, %v2966
        %v2968 = vrot.slane %v2954, %v2967
        %v2969 = vcombine.high %v2961, %v2961
        %v2970 = vcombine.high %v2968, %v2968
        %v2971 = vcombine.high %v2603, %v2603
        %v2973 = vunpack.c.l.s4 1983009808
        %v2974 = vunpack.c.0.s8 %v2973
        %v2975 = vlaneseq
        %v2976 = vshrl.u32 %v2975, 7
        %v2977 = vsub.s32 %v2974, %v2976
        %v2978 = vrot.slane %v2603, %v2977
        %v2980 = vunpack.c.l.s4 1983009808
        %v2981 = vunpack.c.0.s8 %v2980
        %v2982 = vlaneseq
        %v2983 = vshrl.u32 %v2982, 7
        %v2984 = vsub.s32 %v2981, %v2983
        %v2985 = vrot.slane %v2971, %v2984
        %v2986 = vcombine.high %v2978, %v2978
        %v2987 = vcombine.high %v2985, %v2985
        %v2988 = vcombine.high %v2604, %v2604
        %v2990 = vunpack.c.l.s4 1983009808
        %v2991 = vunpack.c.0.s8 %v2990
        %v2992 = vlaneseq
        %v2993 = vshrl.u32 %v2992, 7
        %v2994 = vsub.s32 %v2991, %v2993
        %v2995 = vrot.slane %v2604, %v2994
        %v2997 = vunpack.c.l.s4 1983009808
        %v2998 = vunpack.c.0.s8 %v2997
        %v2999 = vlaneseq
        %v3000 = vshrl.u32 %v2999, 7
        %v3001 = vsub.s32 %v2998, %v3000
        %v3002 = vrot.slane %v2988, %v3001
        %v3003 = vcombine.high %v2995, %v2995
        %v3004 = vcombine.high %v3002, %v3002
        %v3005 = vcombine.high %v2605, %v2605
        %v3007 = vunpack.c.l.s4 1983009808
        %v3008 = vunpack.c.0.s8 %v3007
        %v3009 = vlaneseq
        %v3010 = vshrl.u32 %v3009, 7
        %v3011 = vsub.s32 %v3008, %v3010
        %v3012 = vrot.slane %v2605, %v3011
        %v3014 = vunpack.c.l.s4 1983009808
        %v3015 = vunpack.c.0.s8 %v3014
        %v3016 = vlaneseq
        %v3017 = vshrl.u32 %v3016, 7
        %v3018 = vsub.s32 %v3015, %v3017
        %v3019 = vrot.slane %v3005, %v3018
        %v3020 = vcombine.high %v3012, %v3012
        %v3021 = vcombine.high %v3019, %v3019
        %v3022 = vcombine.high %v2606, %v2606
        %v3024 = vunpack.c.l.s4 1983009808
        %v3025 = vunpack.c.0.s8 %v3024
        %v3026 = vlaneseq
        %v3027 = vshrl.u32 %v3026, 7
        %v3028 = vsub.s32 %v3025, %v3027
        %v3029 = vrot.slane %v2606, %v3028
        %v3031 = vunpack.c.l.s4 1983009808
        %v3032 = vunpack.c.0.s8 %v3031
        %v3033 = vlaneseq
        %v3034 = vshrl.u32 %v3033, 7
        %v3035 = vsub.s32 %v3032, %v3034
        %v3036 = vrot.slane %v3022, %v3035
        %v3037 = vcombine.high %v3029, %v3029
        %v3038 = vcombine.high %v3036, %v3036
        %v3039 = vcombine.high %v2607, %v2607
        %v3041 = vunpack.c.l.s4 1983009808
        %v3042 = vunpack.c.0.s8 %v3041
        %v3043 = vlaneseq
        %v3044 = vshrl.u32 %v3043, 7
        %v3045 = vsub.s32 %v3042, %v3044
        %v3046 = vrot.slane %v2607, %v3045
        %v3048 = vunpack.c.l.s4 1983009808
        %v3049 = vunpack.c.0.s8 %v3048
        %v3050 = vlaneseq
        %v3051 = vshrl.u32 %v3050, 7
        %v3052 = vsub.s32 %v3049, %v3051
        %v3053 = vrot.slane %v3039, %v3052
        %v3054 = vcombine.high %v3046, %v3046
        %v3055 = vcombine.high %v3053, %v3053
        %v3056 = vcombine.high %v2608, %v2608
        %v3058 = vunpack.c.l.s4 1983009808
        %v3059 = vunpack.c.0.s8 %v3058
        %v3060 = vlaneseq
        %v3061 = vshrl.u32 %v3060, 7
        %v3062 = vsub.s32 %v3059, %v3061
        %v3063 = vrot.slane %v2608, %v3062
        %v3065 = vunpack.c.l.s4 1983009808
        %v3066 = vunpack.c.0.s8 %v3065
        %v3067 = vlaneseq
        %v3068 = vshrl.u32 %v3067, 7
        %v3069 = vsub.s32 %v3066, %v3068
        %v3070 = vrot.slane %v3056, %v3069
        %v3071 = vcombine.high %v3063, %v3063
        %v3072 = vcombine.high %v3070, %v3070
        %v3073 = vcombine.high %v2609, %v2609
        %v3075 = vunpack.c.l.s4 1983009808
        %v3076 = vunpack.c.0.s8 %v3075
        %v3077 = vlaneseq
        %v3078 = vshrl.u32 %v3077, 7
        %v3079 = vsub.s32 %v3076, %v3078
        %v3080 = vrot.slane %v2609, %v3079
        %v3082 = vunpack.c.l.s4 1983009808
        %v3083 = vunpack.c.0.s8 %v3082
        %v3084 = vlaneseq
        %v3085 = vshrl.u32 %v3084, 7
        %v3086 = vsub.s32 %v3083, %v3085
        %v3087 = vrot.slane %v3073, %v3086
        %v3088 = vcombine.high %v3080, %v3080
        %v3089 = vcombine.high %v3087, %v3087
        %v3090 = vcombine.high %v2610, %v2610
        %v3092 = vunpack.c.l.s4 1983009808
        %v3093 = vunpack.c.0.s8 %v3092
        %v3094 = vlaneseq
        %v3095 = vshrl.u32 %v3094, 7
        %v3096 = vsub.s32 %v3093, %v3095
        %v3097 = vrot.slane %v2610, %v3096
        %v3099 = vunpack.c.l.s4 1983009808
        %v3100 = vunpack.c.0.s8 %v3099
        %v3101 = vlaneseq
        %v3102 = vshrl.u32 %v3101, 7
        %v3103 = vsub.s32 %v3100, %v3102
        %v3104 = vrot.slane %v3090, %v3103
        %v3105 = vcombine.high %v3097, %v3097
        %v3106 = vcombine.high %v3104, %v3104
        %v3107 = vcombine.high %v2611, %v2611
        %v3109 = vunpack.c.l.s4 1983009808
        %v3110 = vunpack.c.0.s8 %v3109
        %v3111 = vlaneseq
        %v3112 = vshrl.u32 %v3111, 7
        %v3113 = vsub.s32 %v3110, %v3112
        %v3114 = vrot.slane %v2611, %v3113
        %v3116 = vunpack.c.l.s4 1983009808
        %v3117 = vunpack.c.0.s8 %v3116
        %v3118 = vlaneseq
        %v3119 = vshrl.u32 %v3118, 7
        %v3120 = vsub.s32 %v3117, %v3119
        %v3121 = vrot.slane %v3107, %v3120
        %v3122 = vcombine.high %v3114, %v3114
        %v3123 = vcombine.high %v3121, %v3121
        %v3124 = vcombine.high %v2612, %v2612
        %v3126 = vunpack.c.l.s4 1983009808
        %v3127 = vunpack.c.0.s8 %v3126
        %v3128 = vlaneseq
        %v3129 = vshrl.u32 %v3128, 7
        %v3130 = vsub.s32 %v3127, %v3129
        %v3131 = vrot.slane %v2612, %v3130
        %v3133 = vunpack.c.l.s4 1983009808
        %v3134 = vunpack.c.0.s8 %v3133
        %v3135 = vlaneseq
        %v3136 = vshrl.u32 %v3135, 7
        %v3137 = vsub.s32 %v3134, %v3136
        %v3138 = vrot.slane %v3124, %v3137
        %v3139 = vcombine.high %v3131, %v3131
        %v3140 = vcombine.high %v3138, %v3138
        %v3141 = vcombine.high %v2613, %v2613
        %v3143 = vunpack.c.l.s4 1983009808
        %v3144 = vunpack.c.0.s8 %v3143
        %v3145 = vlaneseq
        %v3146 = vshrl.u32 %v3145, 7
        %v3147 = vsub.s32 %v3144, %v3146
        %v3148 = vrot.slane %v2613, %v3147
        %v3150 = vunpack.c.l.s4 1983009808
        %v3151 = vunpack.c.0.s8 %v3150
        %v3152 = vlaneseq
        %v3153 = vshrl.u32 %v3152, 7
        %v3154 = vsub.s32 %v3151, %v3153
        %v3155 = vrot.slane %v3141, %v3154
        %v3156 = vcombine.high %v3148, %v3148
        %v3157 = vcombine.high %v3155, %v3155
        %v3158 = vcombine.high %v2614, %v2614
        %v3160 = vunpack.c.l.s4 1983009808
        %v3161 = vunpack.c.0.s8 %v3160
        %v3162 = vlaneseq
        %v3163 = vshrl.u32 %v3162, 7
        %v3164 = vsub.s32 %v3161, %v3163
        %v3165 = vrot.slane %v2614, %v3164
        %v3167 = vunpack.c.l.s4 1983009808
        %v3168 = vunpack.c.0.s8 %v3167
        %v3169 = vlaneseq
        %v3170 = vshrl.u32 %v3169, 7
        %v3171 = vsub.s32 %v3168, %v3170
        %v3172 = vrot.slane %v3158, %v3171
        %v3173 = vcombine.high %v3165, %v3165
        %v3174 = vcombine.high %v3172, %v3172
        %v3175 = vcombine.high %v2615, %v2615
        %v3177 = vunpack.c.l.s4 1983009808
        %v3178 = vunpack.c.0.s8 %v3177
        %v3179 = vlaneseq
        %v3180 = vshrl.u32 %v3179, 7
        %v3181 = vsub.s32 %v3178, %v3180
        %v3182 = vrot.slane %v2615, %v3181
        %v3184 = vunpack.c.l.s4 1983009808
        %v3185 = vunpack.c.0.s8 %v3184
        %v3186 = vlaneseq
        %v3187 = vshrl.u32 %v3186, 7
        %v3188 = vsub.s32 %v3185, %v3187
        %v3189 = vrot.slane %v3175, %v3188
        %v3190 = vcombine.high %v3182, %v3182
        %v3191 = vcombine.high %v3189, %v3189
        %v3320 = vrot.slane %v2655, 7
        %v3321 = vrot.slane %v3320, 2
        %v3322 = vrot.slane %v2663, 7
        %v3323 = vrot.slane %v3322, 2
        %v3324 = vrot.slane %v2662, 7
        %v3325 = vrot.slane %v3324, 2
        %v3326 = vrot.slane %v2664, 7
        %v3327 = vrot.slane %v3326, 2
        %v3328 = vrot.slane %v2672, 7
        %v3329 = vrot.slane %v3328, 2
        %v3330 = vrot.slane %v2680, 7
        %v3331 = vrot.slane %v3330, 2
        %v3332 = vrot.slane %v2679, 7
        %v3333 = vrot.slane %v3332, 2
        %v3334 = vrot.slane %v2681, 7
        %v3335 = vrot.slane %v3334, 2
        %v3336 = vrot.slane %v2723, 7
        %v3337 = vrot.slane %v3336, 2
        %v3338 = vrot.slane %v2731, 7
        %v3339 = vrot.slane %v3338, 2
        %v3340 = vrot.slane %v2730, 7
        %v3341 = vrot.slane %v3340, 2
        %v3342 = vrot.slane %v2732, 7
        %v3343 = vrot.slane %v3342, 2
        %v3344 = vrot.slane %v2740, 7
        %v3345 = vrot.slane %v3344, 2
        %v3346 = vrot.slane %v2748, 7
        %v3347 = vrot.slane %v3346, 2
        %v3348 = vrot.slane %v2747, 7
        %v3349 = vrot.slane %v3348, 2
        %v3350 = vrot.slane %v2749, 7
        %v3351 = vrot.slane %v3350, 2
        %v3352 = vrot.slane %v2791, 7
        %v3353 = vrot.slane %v3352, 2
        %v3354 = vrot.slane %v2799, 7
        %v3355 = vrot.slane %v3354, 2
        %v3356 = vrot.slane %v2798, 7
        %v3357 = vrot.slane %v3356, 2
        %v3358 = vrot.slane %v2800, 7
        %v3359 = vrot.slane %v3358, 2
        %v3360 = vrot.slane %v2808, 7
        %v3361 = vrot.slane %v3360, 2
        %v3362 = vrot.slane %v2816, 7
        %v3363 = vrot.slane %v3362, 2
        %v3364 = vrot.slane %v2815, 7
        %v3365 = vrot.slane %v3364, 2
        %v3366 = vrot.slane %v2817, 7
        %v3367 = vrot.slane %v3366, 2
        %v3368 = vrot.slane %v2859, 7
        %v3369 = vrot.slane %v3368, 2
        %v3370 = vrot.slane %v2867, 7
        %v3371 = vrot.slane %v3370, 2
        %v3372 = vrot.slane %v2866, 7
        %v3373 = vrot.slane %v3372, 2
        %v3374 = vrot.slane %v2868, 7
        %v3375 = vrot.slane %v3374, 2
        %v3376 = vrot.slane %v2876, 7
        %v3377 = vrot.slane %v3376, 2
        %v3378 = vrot.slane %v2884, 7
        %v3379 = vrot.slane %v3378, 2
        %v3380 = vrot.slane %v2883, 7
        %v3381 = vrot.slane %v3380, 2
        %v3382 = vrot.slane %v2885, 7
        %v3383 = vrot.slane %v3382, 2
        %v3384 = vrot.slane %v2927, 7
        %v3385 = vrot.slane %v3384, 2
        %v3386 = vrot.slane %v2935, 7
        %v3387 = vrot.slane %v3386, 2
        %v3388 = vrot.slane %v2934, 7
        %v3389 = vrot.slane %v3388, 2
        %v3390 = vrot.slane %v2936, 7
        %v3391 = vrot.slane %v3390, 2
        %v3392 = vrot.slane %v2944, 7
        %v3393 = vrot.slane %v3392, 2
        %v3394 = vrot.slane %v2952, 7
        %v3395 = vrot.slane %v3394, 2
        %v3396 = vrot.slane %v2951, 7
        %v3397 = vrot.slane %v3396, 2
        %v3398 = vrot.slane %v2953, 7
        %v3399 = vrot.slane %v3398, 2
        %v3400 = vrot.slane %v2995, 7
        %v3401 = vrot.slane %v3400, 2
        %v3402 = vrot.slane %v3003, 7
        %v3403 = vrot.slane %v3402, 2
        %v3404 = vrot.slane %v3002, 7
        %v3405 = vrot.slane %v3404, 2
        %v3406 = vrot.slane %v3004, 7
        %v3407 = vrot.slane %v3406, 2
        %v3408 = vrot.slane %v3012, 7
        %v3409 = vrot.slane %v3408, 2
        %v3410 = vrot.slane %v3020, 7
        %v3411 = vrot.slane %v3410, 2
        %v3412 = vrot.slane %v3019, 7
        %v3413 = vrot.slane %v3412, 2
        %v3414 = vrot.slane %v3021, 7
        %v3415 = vrot.slane %v3414, 2
        %v3416 = vrot.slane %v3063, 7
        %v3417 = vrot.slane %v3416, 2
        %v3418 = vrot.slane %v3071, 7
        %v3419 = vrot.slane %v3418, 2
        %v3420 = vrot.slane %v3070, 7
        %v3421 = vrot.slane %v3420, 2
        %v3422 = vrot.slane %v3072, 7
        %v3423 = vrot.slane %v3422, 2
        %v3424 = vrot.slane %v3080, 7
        %v3425 = vrot.slane %v3424, 2
        %v3426 = vrot.slane %v3088, 7
        %v3427 = vrot.slane %v3426, 2
        %v3428 = vrot.slane %v3087, 7
        %v3429 = vrot.slane %v3428, 2
        %v3430 = vrot.slane %v3089, 7
        %v3431 = vrot.slane %v3430, 2
        %v3432 = vrot.slane %v3131, 7
        %v3433 = vrot.slane %v3432, 2
        %v3434 = vrot.slane %v3139, 7
        %v3435 = vrot.slane %v3434, 2
        %v3436 = vrot.slane %v3138, 7
        %v3437 = vrot.slane %v3436, 2
        %v3438 = vrot.slane %v3140, 7
        %v3439 = vrot.slane %v3438, 2
        %v3440 = vrot.slane %v3148, 7
        %v3441 = vrot.slane %v3440, 2
        %v3442 = vrot.slane %v3156, 7
        %v3443 = vrot.slane %v3442, 2
        %v3444 = vrot.slane %v3155, 7
        %v3445 = vrot.slane %v3444, 2
        %v3446 = vrot.slane %v3157, 7
        %v3447 = vrot.slane %v3446, 2
        %v3512 = vmax.f32 %v2655, %v3321
        %v3513 = vmax.f32 %v2663, %v3323
        %v3514 = vmax.f32 %v2662, %v3325
        %v3515 = vmax.f32 %v2664, %v3327
        %v3516 = vmax.f32 %v2672, %v3329
        %v3517 = vmax.f32 %v2680, %v3331
        %v3518 = vmax.f32 %v2679, %v3333
        %v3519 = vmax.f32 %v2681, %v3335
        %v3520 = vmax.f32 %v2723, %v3337
        %v3521 = vmax.f32 %v2731, %v3339
        %v3522 = vmax.f32 %v2730, %v3341
        %v3523 = vmax.f32 %v2732, %v3343
        %v3524 = vmax.f32 %v2740, %v3345
        %v3525 = vmax.f32 %v2748, %v3347
        %v3526 = vmax.f32 %v2747, %v3349
        %v3527 = vmax.f32 %v2749, %v3351
        %v3528 = vmax.f32 %v2791, %v3353
        %v3529 = vmax.f32 %v2799, %v3355
        %v3530 = vmax.f32 %v2798, %v3357
        %v3531 = vmax.f32 %v2800, %v3359
        %v3532 = vmax.f32 %v2808, %v3361
        %v3533 = vmax.f32 %v2816, %v3363
        %v3534 = vmax.f32 %v2815, %v3365
        %v3535 = vmax.f32 %v2817, %v3367
        %v3536 = vmax.f32 %v2859, %v3369
        %v3537 = vmax.f32 %v2867, %v3371
        %v3538 = vmax.f32 %v2866, %v3373
        %v3539 = vmax.f32 %v2868, %v3375
        %v3540 = vmax.f32 %v2876, %v3377
        %v3541 = vmax.f32 %v2884, %v3379
        %v3542 = vmax.f32 %v2883, %v3381
        %v3543 = vmax.f32 %v2885, %v3383
        %v3544 = vmax.f32 %v2927, %v3385
        %v3545 = vmax.f32 %v2935, %v3387
        %v3546 = vmax.f32 %v2934, %v3389
        %v3547 = vmax.f32 %v2936, %v3391
        %v3548 = vmax.f32 %v2944, %v3393
        %v3549 = vmax.f32 %v2952, %v3395
        %v3550 = vmax.f32 %v2951, %v3397
        %v3551 = vmax.f32 %v2953, %v3399
        %v3552 = vmax.f32 %v2995, %v3401
        %v3553 = vmax.f32 %v3003, %v3403
        %v3554 = vmax.f32 %v3002, %v3405
        %v3555 = vmax.f32 %v3004, %v3407
        %v3556 = vmax.f32 %v3012, %v3409
        %v3557 = vmax.f32 %v3020, %v3411
        %v3558 = vmax.f32 %v3019, %v3413
        %v3559 = vmax.f32 %v3021, %v3415
        %v3560 = vmax.f32 %v3063, %v3417
        %v3561 = vmax.f32 %v3071, %v3419
        %v3562 = vmax.f32 %v3070, %v3421
        %v3563 = vmax.f32 %v3072, %v3423
        %v3564 = vmax.f32 %v3080, %v3425
        %v3565 = vmax.f32 %v3088, %v3427
        %v3566 = vmax.f32 %v3087, %v3429
        %v3567 = vmax.f32 %v3089, %v3431
        %v3568 = vmax.f32 %v3131, %v3433
        %v3569 = vmax.f32 %v3139, %v3435
        %v3570 = vmax.f32 %v3138, %v3437
        %v3571 = vmax.f32 %v3140, %v3439
        %v3572 = vmax.f32 %v3148, %v3441
        %v3573 = vmax.f32 %v3156, %v3443
        %v3574 = vmax.f32 %v3155, %v3445
        %v3575 = vmax.f32 %v3157, %v3447
        %v3576 = vrot.slane %v2689, 7
        %v3577 = vrot.slane %v3576, 2
        %v3578 = vrot.slane %v2697, 7
        %v3579 = vrot.slane %v3578, 2
        %v3580 = vrot.slane %v2696, 7
        %v3581 = vrot.slane %v3580, 2
        %v3582 = vrot.slane %v2698, 7
        %v3583 = vrot.slane %v3582, 2
        %v3584 = vrot.slane %v2706, 7
        %v3585 = vrot.slane %v3584, 2
        %v3586 = vrot.slane %v2714, 7
        %v3587 = vrot.slane %v3586, 2
        %v3588 = vrot.slane %v2713, 7
        %v3589 = vrot.slane %v3588, 2
        %v3590 = vrot.slane %v2715, 7
        %v3591 = vrot.slane %v3590, 2
        %v3592 = vrot.slane %v2757, 7
        %v3593 = vrot.slane %v3592, 2
        %v3594 = vrot.slane %v2765, 7
        %v3595 = vrot.slane %v3594, 2
        %v3596 = vrot.slane %v2764, 7
        %v3597 = vrot.slane %v3596, 2
        %v3598 = vrot.slane %v2766, 7
        %v3599 = vrot.slane %v3598, 2
        %v3600 = vrot.slane %v2774, 7
        %v3601 = vrot.slane %v3600, 2
        %v3602 = vrot.slane %v2782, 7
        %v3603 = vrot.slane %v3602, 2
        %v3604 = vrot.slane %v2781, 7
        %v3605 = vrot.slane %v3604, 2
        %v3606 = vrot.slane %v2783, 7
        %v3607 = vrot.slane %v3606, 2
        %v3608 = vrot.slane %v2825, 7
        %v3609 = vrot.slane %v3608, 2
        %v3610 = vrot.slane %v2833, 7
        %v3611 = vrot.slane %v3610, 2
        %v3612 = vrot.slane %v2832, 7
        %v3613 = vrot.slane %v3612, 2
        %v3614 = vrot.slane %v2834, 7
        %v3615 = vrot.slane %v3614, 2
        %v3616 = vrot.slane %v2842, 7
        %v3617 = vrot.slane %v3616, 2
        %v3618 = vrot.slane %v2850, 7
        %v3619 = vrot.slane %v3618, 2
        %v3620 = vrot.slane %v2849, 7
        %v3621 = vrot.slane %v3620, 2
        %v3622 = vrot.slane %v2851, 7
        %v3623 = vrot.slane %v3622, 2
        %v3624 = vrot.slane %v2893, 7
        %v3625 = vrot.slane %v3624, 2
        %v3626 = vrot.slane %v2901, 7
        %v3627 = vrot.slane %v3626, 2
        %v3628 = vrot.slane %v2900, 7
        %v3629 = vrot.slane %v3628, 2
        %v3630 = vrot.slane %v2902, 7
        %v3631 = vrot.slane %v3630, 2
        %v3632 = vrot.slane %v2910, 7
        %v3633 = vrot.slane %v3632, 2
        %v3634 = vrot.slane %v2918, 7
        %v3635 = vrot.slane %v3634, 2
        %v3636 = vrot.slane %v2917, 7
        %v3637 = vrot.slane %v3636, 2
        %v3638 = vrot.slane %v2919, 7
        %v3639 = vrot.slane %v3638, 2
        %v3640 = vrot.slane %v2961, 7
        %v3641 = vrot.slane %v3640, 2
        %v3642 = vrot.slane %v2969, 7
        %v3643 = vrot.slane %v3642, 2
        %v3644 = vrot.slane %v2968, 7
        %v3645 = vrot.slane %v3644, 2
        %v3646 = vrot.slane %v2970, 7
        %v3647 = vrot.slane %v3646, 2
        %v3648 = vrot.slane %v2978, 7
        %v3649 = vrot.slane %v3648, 2
        %v3650 = vrot.slane %v2986, 7
        %v3651 = vrot.slane %v3650, 2
        %v3652 = vrot.slane %v2985, 7
        %v3653 = vrot.slane %v3652, 2
        %v3654 = vrot.slane %v2987, 7
        %v3655 = vrot.slane %v3654, 2
        %v3656 = vrot.slane %v3029, 7
        %v3657 = vrot.slane %v3656, 2
        %v3658 = vrot.slane %v3037, 7
        %v3659 = vrot.slane %v3658, 2
        %v3660 = vrot.slane %v3036, 7
        %v3661 = vrot.slane %v3660, 2
        %v3662 = vrot.slane %v3038, 7
        %v3663 = vrot.slane %v3662, 2
        %v3664 = vrot.slane %v3046, 7
        %v3665 = vrot.slane %v3664, 2
        %v3666 = vrot.slane %v3054, 7
        %v3667 = vrot.slane %v3666, 2
        %v3668 = vrot.slane %v3053, 7
        %v3669 = vrot.slane %v3668, 2
        %v3670 = vrot.slane %v3055, 7
        %v3671 = vrot.slane %v3670, 2
        %v3672 = vrot.slane %v3097, 7
        %v3673 = vrot.slane %v3672, 2
        %v3674 = vrot.slane %v3105, 7
        %v3675 = vrot.slane %v3674, 2
        %v3676 = vrot.slane %v3104, 7
        %v3677 = vrot.slane %v3676, 2
        %v3678 = vrot.slane %v3106, 7
        %v3679 = vrot.slane %v3678, 2
        %v3680 = vrot.slane %v3114, 7
        %v3681 = vrot.slane %v3680, 2
        %v3682 = vrot.slane %v3122, 7
        %v3683 = vrot.slane %v3682, 2
        %v3684 = vrot.slane %v3121, 7
        %v3685 = vrot.slane %v3684, 2
        %v3686 = vrot.slane %v3123, 7
        %v3687 = vrot.slane %v3686, 2
        %v3688 = vrot.slane %v3165, 7
        %v3689 = vrot.slane %v3688, 2
        %v3690 = vrot.slane %v3173, 7
        %v3691 = vrot.slane %v3690, 2
        %v3692 = vrot.slane %v3172, 7
        %v3693 = vrot.slane %v3692, 2
        %v3694 = vrot.slane %v3174, 7
        %v3695 = vrot.slane %v3694, 2
        %v3696 = vrot.slane %v3182, 7
        %v3697 = vrot.slane %v3696, 2
        %v3698 = vrot.slane %v3190, 7
        %v3699 = vrot.slane %v3698, 2
        %v3700 = vrot.slane %v3189, 7
        %v3701 = vrot.slane %v3700, 2
        %v3702 = vrot.slane %v3191, 7
        %v3703 = vrot.slane %v3702, 2
        %v3768 = vmax.f32 %v2689, %v3577
        %v3769 = vmax.f32 %v2697, %v3579
        %v3770 = vmax.f32 %v2696, %v3581
        %v3771 = vmax.f32 %v2698, %v3583
        %v3772 = vmax.f32 %v2706, %v3585
        %v3773 = vmax.f32 %v2714, %v3587
        %v3774 = vmax.f32 %v2713, %v3589
        %v3775 = vmax.f32 %v2715, %v3591
        %v3776 = vmax.f32 %v2757, %v3593
        %v3777 = vmax.f32 %v2765, %v3595
        %v3778 = vmax.f32 %v2764, %v3597
        %v3779 = vmax.f32 %v2766, %v3599
        %v3780 = vmax.f32 %v2774, %v3601
        %v3781 = vmax.f32 %v2782, %v3603
        %v3782 = vmax.f32 %v2781, %v3605
        %v3783 = vmax.f32 %v2783, %v3607
        %v3784 = vmax.f32 %v2825, %v3609
        %v3785 = vmax.f32 %v2833, %v3611
        %v3786 = vmax.f32 %v2832, %v3613
        %v3787 = vmax.f32 %v2834, %v3615
        %v3788 = vmax.f32 %v2842, %v3617
        %v3789 = vmax.f32 %v2850, %v3619
        %v3790 = vmax.f32 %v2849, %v3621
        %v3791 = vmax.f32 %v2851, %v3623
        %v3792 = vmax.f32 %v2893, %v3625
        %v3793 = vmax.f32 %v2901, %v3627
        %v3794 = vmax.f32 %v2900, %v3629
        %v3795 = vmax.f32 %v2902, %v3631
        %v3796 = vmax.f32 %v2910, %v3633
        %v3797 = vmax.f32 %v2918, %v3635
        %v3798 = vmax.f32 %v2917, %v3637
        %v3799 = vmax.f32 %v2919, %v3639
        %v3800 = vmax.f32 %v2961, %v3641
        %v3801 = vmax.f32 %v2969, %v3643
        %v3802 = vmax.f32 %v2968, %v3645
        %v3803 = vmax.f32 %v2970, %v3647
        %v3804 = vmax.f32 %v2978, %v3649
        %v3805 = vmax.f32 %v2986, %v3651
        %v3806 = vmax.f32 %v2985, %v3653
        %v3807 = vmax.f32 %v2987, %v3655
        %v3808 = vmax.f32 %v3029, %v3657
        %v3809 = vmax.f32 %v3037, %v3659
        %v3810 = vmax.f32 %v3036, %v3661
        %v3811 = vmax.f32 %v3038, %v3663
        %v3812 = vmax.f32 %v3046, %v3665
        %v3813 = vmax.f32 %v3054, %v3667
        %v3814 = vmax.f32 %v3053, %v3669
        %v3815 = vmax.f32 %v3055, %v3671
        %v3816 = vmax.f32 %v3097, %v3673
        %v3817 = vmax.f32 %v3105, %v3675
        %v3818 = vmax.f32 %v3104, %v3677
        %v3819 = vmax.f32 %v3106, %v3679
        %v3820 = vmax.f32 %v3114, %v3681
        %v3821 = vmax.f32 %v3122, %v3683
        %v3822 = vmax.f32 %v3121, %v3685
        %v3823 = vmax.f32 %v3123, %v3687
        %v3824 = vmax.f32 %v3165, %v3689
        %v3825 = vmax.f32 %v3173, %v3691
        %v3826 = vmax.f32 %v3172, %v3693
        %v3827 = vmax.f32 %v3174, %v3695
        %v3828 = vmax.f32 %v3182, %v3697
        %v3829 = vmax.f32 %v3190, %v3699
        %v3830 = vmax.f32 %v3189, %v3701
        %v3831 = vmax.f32 %v3191, %v3703
        %v3832 = vmax.f32 %v3512, %v3768
        %v3833 = vmax.f32 %v3513, %v3769
        %v3834 = vmax.f32 %v3514, %v3770
        %v3835 = vmax.f32 %v3515, %v3771
        %v3836 = vmax.f32 %v3516, %v3772
        %v3837 = vmax.f32 %v3517, %v3773
        %v3838 = vmax.f32 %v3518, %v3774
        %v3839 = vmax.f32 %v3519, %v3775
        %v3840 = vmax.f32 %v3520, %v3776
        %v3841 = vmax.f32 %v3521, %v3777
        %v3842 = vmax.f32 %v3522, %v3778
        %v3843 = vmax.f32 %v3523, %v3779
        %v3844 = vmax.f32 %v3524, %v3780
        %v3845 = vmax.f32 %v3525, %v3781
        %v3846 = vmax.f32 %v3526, %v3782
        %v3847 = vmax.f32 %v3527, %v3783
        %v3848 = vmax.f32 %v3528, %v3784
        %v3849 = vmax.f32 %v3529, %v3785
        %v3850 = vmax.f32 %v3530, %v3786
        %v3851 = vmax.f32 %v3531, %v3787
        %v3852 = vmax.f32 %v3532, %v3788
        %v3853 = vmax.f32 %v3533, %v3789
        %v3854 = vmax.f32 %v3534, %v3790
        %v3855 = vmax.f32 %v3535, %v3791
        %v3856 = vmax.f32 %v3536, %v3792
        %v3857 = vmax.f32 %v3537, %v3793
        %v3858 = vmax.f32 %v3538, %v3794
        %v3859 = vmax.f32 %v3539, %v3795
        %v3860 = vmax.f32 %v3540, %v3796
        %v3861 = vmax.f32 %v3541, %v3797
        %v3862 = vmax.f32 %v3542, %v3798
        %v3863 = vmax.f32 %v3543, %v3799
        %v3864 = vmax.f32 %v3544, %v3800
        %v3865 = vmax.f32 %v3545, %v3801
        %v3866 = vmax.f32 %v3546, %v3802
        %v3867 = vmax.f32 %v3547, %v3803
        %v3868 = vmax.f32 %v3548, %v3804
        %v3869 = vmax.f32 %v3549, %v3805
        %v3870 = vmax.f32 %v3550, %v3806
        %v3871 = vmax.f32 %v3551, %v3807
        %v3872 = vmax.f32 %v3552, %v3808
        %v3873 = vmax.f32 %v3553, %v3809
        %v3874 = vmax.f32 %v3554, %v3810
        %v3875 = vmax.f32 %v3555, %v3811
        %v3876 = vmax.f32 %v3556, %v3812
        %v3877 = vmax.f32 %v3557, %v3813
        %v3878 = vmax.f32 %v3558, %v3814
        %v3879 = vmax.f32 %v3559, %v3815
        %v3880 = vmax.f32 %v3560, %v3816
        %v3881 = vmax.f32 %v3561, %v3817
        %v3882 = vmax.f32 %v3562, %v3818
        %v3883 = vmax.f32 %v3563, %v3819
        %v3884 = vmax.f32 %v3564, %v3820
        %v3885 = vmax.f32 %v3565, %v3821
        %v3886 = vmax.f32 %v3566, %v3822
        %v3887 = vmax.f32 %v3567, %v3823
        %v3888 = vmax.f32 %v3568, %v3824
        %v3889 = vmax.f32 %v3569, %v3825
        %v3890 = vmax.f32 %v3570, %v3826
        %v3891 = vmax.f32 %v3571, %v3827
        %v3892 = vmax.f32 %v3572, %v3828
        %v3893 = vmax.f32 %v3573, %v3829
        %v3894 = vmax.f32 %v3574, %v3830
        %v3895 = vmax.f32 %v3575, %v3831
        %vm3896 = vcmask 64512
        %3897 = vst.msk [vmem:[#allocation3] sm:$0xff] %vm3896, 0.0
        %3898 = vst.msk [vmem:[#allocation3 + $0x8] sm:$0xff] %vm3896, 0.0
        %3899 = vst.msk [vmem:[#allocation3 + $0x10] sm:$0xff] %vm3896, 0.0
        %3900 = vst.msk [vmem:[#allocation3 + $0x18] sm:$0xff] %vm3896, 0.0
        %3901 = vst.msk [vmem:[#allocation3 + $0x20] sm:$0xff] %vm3896, 0.0
        %3902 = vst.msk [vmem:[#allocation3 + $0x28] sm:$0xff] %vm3896, 0.0
        %3903 = vst.msk [vmem:[#allocation3 + $0x30] sm:$0xff] %vm3896, 0.0
        %3904 = vst.msk [vmem:[#allocation3 + $0x38] sm:$0xff] %vm3896, 0.0
        %3905 = vst.msk [vmem:[#allocation3 + $0x40] sm:$0xff] %vm3896, 0.0
        %3906 = vst.msk [vmem:[#allocation3 + $0x48] sm:$0xff] %vm3896, 0.0
        %3907 = vst.msk [vmem:[#allocation3 + $0x50] sm:$0xff] %vm3896, 0.0
        %3908 = vst.msk [vmem:[#allocation3 + $0x58] sm:$0xff] %vm3896, 0.0
        %3909 = vst.msk [vmem:[#allocation3 + $0x60] sm:$0xff] %vm3896, 0.0
        %3910 = vst.msk [vmem:[#allocation3 + $0x68] sm:$0xff] %vm3896, 0.0
        %3911 = vst.msk [vmem:[#allocation3 + $0x70] sm:$0xff] %vm3896, 0.0
        %3912 = vst.msk [vmem:[#allocation3 + $0x78] sm:$0xff] %vm3896, 0.0
        %3913 = vst.msk [vmem:[#allocation3 + $0x80] sm:$0xff] %vm3896, 0.0
        %3914 = vst.msk [vmem:[#allocation3 + $0x88] sm:$0xff] %vm3896, 0.0
        %3915 = vst.msk [vmem:[#allocation3 + $0x90] sm:$0xff] %vm3896, 0.0
        %3916 = vst.msk [vmem:[#allocation3 + $0x98] sm:$0xff] %vm3896, 0.0
        %3917 = vst.msk [vmem:[#allocation3 + $0xa0] sm:$0xff] %vm3896, 0.0
        %3918 = vst.msk [vmem:[#allocation3 + $0xa8] sm:$0xff] %vm3896, 0.0
        %3919 = vst.msk [vmem:[#allocation3 + $0xb0] sm:$0xff] %vm3896, 0.0
        %3920 = vst.msk [vmem:[#allocation3 + $0xb8] sm:$0xff] %vm3896, 0.0
        %3921 = vst.msk [vmem:[#allocation3 + $0xc0] sm:$0xff] %vm3896, 0.0
        %3922 = vst.msk [vmem:[#allocation3 + $0xc8] sm:$0xff] %vm3896, 0.0
        %3923 = vst.msk [vmem:[#allocation3 + $0xd0] sm:$0xff] %vm3896, 0.0
        %3924 = vst.msk [vmem:[#allocation3 + $0xd8] sm:$0xff] %vm3896, 0.0
        %3925 = vst.msk [vmem:[#allocation3 + $0xe0] sm:$0xff] %vm3896, 0.0
        %3926 = vst.msk [vmem:[#allocation3 + $0xe8] sm:$0xff] %vm3896, 0.0
        %v3991 = vlaneseq
        %v3992 = vshrl.u32 %v3991, 7
        %v3993 = vsub.s32 0, %v3992
        %v3994 = vrot.slane %v3832, %v3993
        %v3995 = vlaneseq
        %v3996 = vshrl.u32 %v3995, 7
        %v3997 = vsub.s32 0, %v3996
        %v3998 = vrot.slane %v3833, %v3997
        %v3999 = vlaneseq
        %v4000 = vshrl.u32 %v3999, 7
        %v4001 = vsub.s32 0, %v4000
        %v4002 = vrot.slane %v3834, %v4001
        %v4003 = vlaneseq
        %v4004 = vshrl.u32 %v4003, 7
        %v4005 = vsub.s32 0, %v4004
        %v4006 = vrot.slane %v3835, %v4005
        %v4007 = vlaneseq
        %v4008 = vshrl.u32 %v4007, 7
        %v4009 = vsub.s32 0, %v4008
        %v4010 = vrot.slane %v3836, %v4009
        %v4011 = vlaneseq
        %v4012 = vshrl.u32 %v4011, 7
        %v4013 = vsub.s32 0, %v4012
        %v4014 = vrot.slane %v3837, %v4013
        %v4015 = vlaneseq
        %v4016 = vshrl.u32 %v4015, 7
        %v4017 = vsub.s32 0, %v4016
        %v4018 = vrot.slane %v3838, %v4017
        %v4019 = vlaneseq
        %v4020 = vshrl.u32 %v4019, 7
        %v4021 = vsub.s32 0, %v4020
        %v4022 = vrot.slane %v3839, %v4021
        %v4023 = vlaneseq
        %v4024 = vshrl.u32 %v4023, 7
        %v4025 = vsub.s32 0, %v4024
        %v4026 = vrot.slane %v3840, %v4025
        %v4027 = vlaneseq
        %v4028 = vshrl.u32 %v4027, 7
        %v4029 = vsub.s32 0, %v4028
        %v4030 = vrot.slane %v3841, %v4029
        %v4031 = vlaneseq
        %v4032 = vshrl.u32 %v4031, 7
        %v4033 = vsub.s32 0, %v4032
        %v4034 = vrot.slane %v3842, %v4033
        %v4035 = vlaneseq
        %v4036 = vshrl.u32 %v4035, 7
        %v4037 = vsub.s32 0, %v4036
        %v4038 = vrot.slane %v3843, %v4037
        %v4039 = vlaneseq
        %v4040 = vshrl.u32 %v4039, 7
        %v4041 = vsub.s32 0, %v4040
        %v4042 = vrot.slane %v3844, %v4041
        %v4043 = vlaneseq
        %v4044 = vshrl.u32 %v4043, 7
        %v4045 = vsub.s32 0, %v4044
        %v4046 = vrot.slane %v3845, %v4045
        %v4047 = vlaneseq
        %v4048 = vshrl.u32 %v4047, 7
        %v4049 = vsub.s32 0, %v4048
        %v4050 = vrot.slane %v3846, %v4049
        %v4051 = vlaneseq
        %v4052 = vshrl.u32 %v4051, 7
        %v4053 = vsub.s32 0, %v4052
        %v4054 = vrot.slane %v3847, %v4053
        %v4055 = vlaneseq
        %v4056 = vshrl.u32 %v4055, 7
        %v4057 = vsub.s32 0, %v4056
        %v4058 = vrot.slane %v3848, %v4057
        %v4059 = vlaneseq
        %v4060 = vshrl.u32 %v4059, 7
        %v4061 = vsub.s32 0, %v4060
        %v4062 = vrot.slane %v3849, %v4061
        %v4063 = vlaneseq
        %v4064 = vshrl.u32 %v4063, 7
        %v4065 = vsub.s32 0, %v4064
        %v4066 = vrot.slane %v3850, %v4065
        %v4067 = vlaneseq
        %v4068 = vshrl.u32 %v4067, 7
        %v4069 = vsub.s32 0, %v4068
        %v4070 = vrot.slane %v3851, %v4069
        %v4071 = vlaneseq
        %v4072 = vshrl.u32 %v4071, 7
        %v4073 = vsub.s32 0, %v4072
        %v4074 = vrot.slane %v3852, %v4073
        %v4075 = vlaneseq
        %v4076 = vshrl.u32 %v4075, 7
        %v4077 = vsub.s32 0, %v4076
        %v4078 = vrot.slane %v3853, %v4077
        %v4079 = vlaneseq
        %v4080 = vshrl.u32 %v4079, 7
        %v4081 = vsub.s32 0, %v4080
        %v4082 = vrot.slane %v3854, %v4081
        %v4083 = vlaneseq
        %v4084 = vshrl.u32 %v4083, 7
        %v4085 = vsub.s32 0, %v4084
        %v4086 = vrot.slane %v3855, %v4085
        %v4087 = vlaneseq
        %v4088 = vshrl.u32 %v4087, 7
        %v4089 = vsub.s32 0, %v4088
        %v4090 = vrot.slane %v3856, %v4089
        %v4091 = vlaneseq
        %v4092 = vshrl.u32 %v4091, 7
        %v4093 = vsub.s32 0, %v4092
        %v4094 = vrot.slane %v3857, %v4093
        %v4095 = vlaneseq
        %v4096 = vshrl.u32 %v4095, 7
        %v4097 = vsub.s32 0, %v4096
        %v4098 = vrot.slane %v3858, %v4097
        %v4099 = vlaneseq
        %v4100 = vshrl.u32 %v4099, 7
        %v4101 = vsub.s32 0, %v4100
        %v4102 = vrot.slane %v3859, %v4101
        %v4103 = vlaneseq
        %v4104 = vshrl.u32 %v4103, 7
        %v4105 = vsub.s32 0, %v4104
        %v4106 = vrot.slane %v3860, %v4105
        %v4107 = vlaneseq
        %v4108 = vshrl.u32 %v4107, 7
        %v4109 = vsub.s32 0, %v4108
        %v4110 = vrot.slane %v3861, %v4109
        %v4111 = vlaneseq
        %v4112 = vshrl.u32 %v4111, 7
        %v4113 = vsub.s32 0, %v4112
        %v4114 = vrot.slane %v3862, %v4113
        %v4115 = vlaneseq
        %v4116 = vshrl.u32 %v4115, 7
        %v4117 = vsub.s32 0, %v4116
        %v4118 = vrot.slane %v3863, %v4117
        %v4119 = vlaneseq
        %v4120 = vshrl.u32 %v4119, 7
        %v4121 = vsub.s32 0, %v4120
        %v4122 = vrot.slane %v3864, %v4121
        %v4123 = vlaneseq
        %v4124 = vshrl.u32 %v4123, 7
        %v4125 = vsub.s32 0, %v4124
        %v4126 = vrot.slane %v3865, %v4125
        %v4127 = vlaneseq
        %v4128 = vshrl.u32 %v4127, 7
        %v4129 = vsub.s32 0, %v4128
        %v4130 = vrot.slane %v3866, %v4129
        %v4131 = vlaneseq
        %v4132 = vshrl.u32 %v4131, 7
        %v4133 = vsub.s32 0, %v4132
        %v4134 = vrot.slane %v3867, %v4133
        %v4135 = vlaneseq
        %v4136 = vshrl.u32 %v4135, 7
        %v4137 = vsub.s32 0, %v4136
        %v4138 = vrot.slane %v3868, %v4137
        %v4139 = vlaneseq
        %v4140 = vshrl.u32 %v4139, 7
        %v4141 = vsub.s32 0, %v4140
        %v4142 = vrot.slane %v3869, %v4141
        %v4143 = vlaneseq
        %v4144 = vshrl.u32 %v4143, 7
        %v4145 = vsub.s32 0, %v4144
        %v4146 = vrot.slane %v3870, %v4145
        %v4147 = vlaneseq
        %v4148 = vshrl.u32 %v4147, 7
        %v4149 = vsub.s32 0, %v4148
        %v4150 = vrot.slane %v3871, %v4149
        %v4151 = vlaneseq
        %v4152 = vshrl.u32 %v4151, 7
        %v4153 = vsub.s32 0, %v4152
        %v4154 = vrot.slane %v3872, %v4153
        %v4155 = vlaneseq
        %v4156 = vshrl.u32 %v4155, 7
        %v4157 = vsub.s32 0, %v4156
        %v4158 = vrot.slane %v3873, %v4157
        %v4159 = vlaneseq
        %v4160 = vshrl.u32 %v4159, 7
        %v4161 = vsub.s32 0, %v4160
        %v4162 = vrot.slane %v3874, %v4161
        %v4163 = vlaneseq
        %v4164 = vshrl.u32 %v4163, 7
        %v4165 = vsub.s32 0, %v4164
        %v4166 = vrot.slane %v3875, %v4165
        %v4167 = vlaneseq
        %v4168 = vshrl.u32 %v4167, 7
        %v4169 = vsub.s32 0, %v4168
        %v4170 = vrot.slane %v3876, %v4169
        %v4171 = vlaneseq
        %v4172 = vshrl.u32 %v4171, 7
        %v4173 = vsub.s32 0, %v4172
        %v4174 = vrot.slane %v3877, %v4173
        %v4175 = vlaneseq
        %v4176 = vshrl.u32 %v4175, 7
        %v4177 = vsub.s32 0, %v4176
        %v4178 = vrot.slane %v3878, %v4177
        %v4179 = vlaneseq
        %v4180 = vshrl.u32 %v4179, 7
        %v4181 = vsub.s32 0, %v4180
        %v4182 = vrot.slane %v3879, %v4181
        %v4183 = vlaneseq
        %v4184 = vshrl.u32 %v4183, 7
        %v4185 = vsub.s32 0, %v4184
        %v4186 = vrot.slane %v3880, %v4185
        %v4187 = vlaneseq
        %v4188 = vshrl.u32 %v4187, 7
        %v4189 = vsub.s32 0, %v4188
        %v4190 = vrot.slane %v3881, %v4189
        %v4191 = vlaneseq
        %v4192 = vshrl.u32 %v4191, 7
        %v4193 = vsub.s32 0, %v4192
        %v4194 = vrot.slane %v3882, %v4193
        %v4195 = vlaneseq
        %v4196 = vshrl.u32 %v4195, 7
        %v4197 = vsub.s32 0, %v4196
        %v4198 = vrot.slane %v3883, %v4197
        %v4199 = vlaneseq
        %v4200 = vshrl.u32 %v4199, 7
        %v4201 = vsub.s32 0, %v4200
        %v4202 = vrot.slane %v3884, %v4201
        %v4203 = vlaneseq
        %v4204 = vshrl.u32 %v4203, 7
        %v4205 = vsub.s32 0, %v4204
        %v4206 = vrot.slane %v3885, %v4205
        %v4207 = vlaneseq
        %v4208 = vshrl.u32 %v4207, 7
        %v4209 = vsub.s32 0, %v4208
        %v4210 = vrot.slane %v3886, %v4209
        %v4211 = vlaneseq
        %v4212 = vshrl.u32 %v4211, 7
        %v4213 = vsub.s32 0, %v4212
        %v4214 = vrot.slane %v3887, %v4213
        %v4215 = vlaneseq
        %v4216 = vshrl.u32 %v4215, 7
        %v4217 = vsub.s32 0, %v4216
        %v4218 = vrot.slane %v3888, %v4217
        %v4219 = vlaneseq
        %v4220 = vshrl.u32 %v4219, 7
        %v4221 = vsub.s32 0, %v4220
        %v4222 = vrot.slane %v3889, %v4221
        %v4223 = vlaneseq
        %v4224 = vshrl.u32 %v4223, 7
        %v4225 = vsub.s32 0, %v4224
        %v4226 = vrot.slane %v3890, %v4225
        %v4227 = vlaneseq
        %v4228 = vshrl.u32 %v4227, 7
        %v4229 = vsub.s32 0, %v4228
        %v4230 = vrot.slane %v3891, %v4229
        %v4231 = vlaneseq
        %v4232 = vshrl.u32 %v4231, 7
        %v4233 = vsub.s32 0, %v4232
        %v4234 = vrot.slane %v3892, %v4233
        %v4235 = vlaneseq
        %v4236 = vshrl.u32 %v4235, 7
        %v4237 = vsub.s32 0, %v4236
        %v4238 = vrot.slane %v3893, %v4237
        %v4239 = vlaneseq
        %v4240 = vshrl.u32 %v4239, 7
        %v4241 = vsub.s32 0, %v4240
        %v4242 = vrot.slane %v3894, %v4241
        %v4243 = vlaneseq
        %v4244 = vshrl.u32 %v4243, 7
        %v4245 = vsub.s32 0, %v4244
        %v4246 = vrot.slane %v3895, %v4245
        %vm4247 = vcmask 1041409
        %v4248 = vsel %vm4247, %v3998, %v3994
        %vm4249 = vcmask 1042434
        %v4250 = vsel %vm4249, %v4002, %v4248
        %vm4251 = vcmask 1043459
        %v4252 = vsel %vm4251, %v4006, %v4250
        %vm4253 = vcmask 1044484
        %v4254 = vsel %vm4253, %v4010, %v4252
        %vm4255 = vcmask 1045509
        %v4256 = vsel %vm4255, %v4014, %v4254
        %vm4257 = vcmask 1046534
        %v4258 = vsel %vm4257, %v4018, %v4256
        %vm4259 = vcmask 1047559
        %v4260 = vsel %vm4259, %v4022, %v4258
        %v4261 = vsel %vm4247, %v4030, %v4026
        %v4262 = vsel %vm4249, %v4034, %v4261
        %v4263 = vsel %vm4251, %v4038, %v4262
        %v4264 = vsel %vm4253, %v4042, %v4263
        %v4265 = vsel %vm4255, %v4046, %v4264
        %v4266 = vsel %vm4257, %v4050, %v4265
        %v4267 = vsel %vm4259, %v4054, %v4266
        %v4268 = vsel %vm4247, %v4062, %v4058
        %v4269 = vsel %vm4249, %v4066, %v4268
        %v4270 = vsel %vm4251, %v4070, %v4269
        %v4271 = vsel %vm4253, %v4074, %v4270
        %v4272 = vsel %vm4255, %v4078, %v4271
        %v4273 = vsel %vm4257, %v4082, %v4272
        %v4274 = vsel %vm4259, %v4086, %v4273
        %v4275 = vsel %vm4247, %v4094, %v4090
        %v4276 = vsel %vm4249, %v4098, %v4275
        %v4277 = vsel %vm4251, %v4102, %v4276
        %v4278 = vsel %vm4253, %v4106, %v4277
        %v4279 = vsel %vm4255, %v4110, %v4278
        %v4280 = vsel %vm4257, %v4114, %v4279
        %v4281 = vsel %vm4259, %v4118, %v4280
        %v4282 = vsel %vm4247, %v4126, %v4122
        %v4283 = vsel %vm4249, %v4130, %v4282
        %v4284 = vsel %vm4251, %v4134, %v4283
        %v4285 = vsel %vm4253, %v4138, %v4284
        %v4286 = vsel %vm4255, %v4142, %v4285
        %v4287 = vsel %vm4257, %v4146, %v4286
        %v4288 = vsel %vm4259, %v4150, %v4287
        %v4289 = vsel %vm4247, %v4158, %v4154
        %v4290 = vsel %vm4249, %v4162, %v4289
        %v4291 = vsel %vm4251, %v4166, %v4290
        %v4292 = vsel %vm4253, %v4170, %v4291
        %v4293 = vsel %vm4255, %v4174, %v4292
        %v4294 = vsel %vm4257, %v4178, %v4293
        %v4295 = vsel %vm4259, %v4182, %v4294
        %v4296 = vsel %vm4247, %v4190, %v4186
        %v4297 = vsel %vm4249, %v4194, %v4296
        %v4298 = vsel %vm4251, %v4198, %v4297
        %v4299 = vsel %vm4253, %v4202, %v4298
        %v4300 = vsel %vm4255, %v4206, %v4299
        %v4301 = vsel %vm4257, %v4210, %v4300
        %v4302 = vsel %vm4259, %v4214, %v4301
        %v4303 = vsel %vm4247, %v4222, %v4218
        %v4304 = vsel %vm4249, %v4226, %v4303
        %v4305 = vsel %vm4251, %v4230, %v4304
        %v4306 = vsel %vm4253, %v4234, %v4305
        %v4307 = vsel %vm4255, %v4238, %v4306
        %v4308 = vsel %vm4257, %v4242, %v4307
        %v4309 = vsel %vm4259, %v4246, %v4308
        %s4318 = scalar_lea.vmem [#allocation3], 24
        %4319 = vst.msk [vmem:[%s4318 + $0x8] sm:$0xff] %vm3896, %v4260
        %4320 = vst.msk [vmem:[%s4318 + $0x20] sm:$0xff] %vm3896, %v4267
        %4321 = vst.msk [vmem:[%s4318 + $0x38] sm:$0xff] %vm3896, %v4274
        %4322 = vst.msk [vmem:[%s4318 + $0x50] sm:$0xff] %vm3896, %v4281
        %4323 = vst.msk [vmem:[%s4318 + $0x68] sm:$0xff] %vm3896, %v4288
        %4324 = vst.msk [vmem:[%s4318 + $0x80] sm:$0xff] %vm3896, %v4295
        %4325 = vst.msk [vmem:[%s4318 + $0x98] sm:$0xff] %vm3896, %v4302
        %4326 = vst.msk [vmem:[%s4318 + $0xb0] sm:$0xff] %vm3896, %v4309
        %v4327 = vld [vmem:[#allocation3 + $0x7] sm:$0xff]
        %v4328 = vld [vmem:[#allocation3 + $0x1f] sm:$0xff]
        %v4329 = vld [vmem:[#allocation3 + $0x37] sm:$0xff]
        %v4330 = vld [vmem:[#allocation3 + $0x4f] sm:$0xff]
        %v4331 = vld [vmem:[#allocation3 + $0x67] sm:$0xff]
        %v4332 = vld [vmem:[#allocation3 + $0x7f] sm:$0xff]
        %v4333 = vld [vmem:[#allocation3 + $0x97] sm:$0xff]
        %v4334 = vld [vmem:[#allocation3 + $0xaf] sm:$0xff]
        %v4335 = vld [vmem:[#allocation3 + $0x8] sm:$0xff]
        %v4336 = vld [vmem:[#allocation3 + $0x20] sm:$0xff]
        %v4337 = vld [vmem:[#allocation3 + $0x38] sm:$0xff]
        %v4338 = vld [vmem:[#allocation3 + $0x50] sm:$0xff]
        %v4339 = vld [vmem:[#allocation3 + $0x68] sm:$0xff]
        %v4340 = vld [vmem:[#allocation3 + $0x80] sm:$0xff]
        %v4341 = vld [vmem:[#allocation3 + $0x98] sm:$0xff]
        %v4342 = vld [vmem:[#allocation3 + $0xb0] sm:$0xff]
        %v4343 = vld [vmem:[#allocation3 + $0x9] sm:$0xff]
        %v4344 = vld [vmem:[#allocation3 + $0x21] sm:$0xff]
        %v4345 = vld [vmem:[#allocation3 + $0x39] sm:$0xff]
        %v4346 = vld [vmem:[#allocation3 + $0x51] sm:$0xff]
        %v4347 = vld [vmem:[#allocation3 + $0x69] sm:$0xff]
        %v4348 = vld [vmem:[#allocation3 + $0x81] sm:$0xff]
        %v4349 = vld [vmem:[#allocation3 + $0x99] sm:$0xff]
        %v4350 = vld [vmem:[#allocation3 + $0xb1] sm:$0xff]
        %v4351 = vld [vmem:[%s4318 + $0x7] sm:$0xff]
        %v4352 = vld [vmem:[%s4318 + $0x1f] sm:$0xff]
        %v4353 = vld [vmem:[%s4318 + $0x37] sm:$0xff]
        %v4354 = vld [vmem:[%s4318 + $0x4f] sm:$0xff]
        %v4355 = vld [vmem:[%s4318 + $0x67] sm:$0xff]
        %v4356 = vld [vmem:[%s4318 + $0x7f] sm:$0xff]
        %v4357 = vld [vmem:[%s4318 + $0x97] sm:$0xff]
        %v4358 = vld [vmem:[%s4318 + $0xaf] sm:$0xff]
        %v4359 = vld [vmem:[%s4318 + $0x8] sm:$0xff]
        %v4360 = vld [vmem:[%s4318 + $0x20] sm:$0xff]
        %v4361 = vld [vmem:[%s4318 + $0x38] sm:$0xff]
        %v4362 = vld [vmem:[%s4318 + $0x50] sm:$0xff]
        %v4363 = vld [vmem:[%s4318 + $0x68] sm:$0xff]
        %v4364 = vld [vmem:[%s4318 + $0x80] sm:$0xff]
        %v4365 = vld [vmem:[%s4318 + $0x98] sm:$0xff]
        %v4366 = vld [vmem:[%s4318 + $0xb0] sm:$0xff]
        %v4367 = vld [vmem:[%s4318 + $0x9] sm:$0xff]
        %v4368 = vld [vmem:[%s4318 + $0x21] sm:$0xff]
        %v4369 = vld [vmem:[%s4318 + $0x39] sm:$0xff]
        %v4370 = vld [vmem:[%s4318 + $0x51] sm:$0xff]
        %v4371 = vld [vmem:[%s4318 + $0x69] sm:$0xff]
        %v4372 = vld [vmem:[%s4318 + $0x81] sm:$0xff]
        %v4373 = vld [vmem:[%s4318 + $0x99] sm:$0xff]
        %v4374 = vld [vmem:[%s4318 + $0xb1] sm:$0xff]
        %s4375 = scalar_lea.vmem [#allocation3], 48
        %v4376 = vld [vmem:[%s4375 + $0x7] sm:$0xff]
        %v4377 = vld [vmem:[%s4375 + $0x1f] sm:$0xff]
        %v4378 = vld [vmem:[%s4375 + $0x37] sm:$0xff]
        %v4379 = vld [vmem:[%s4375 + $0x4f] sm:$0xff]
        %v4380 = vld [vmem:[%s4375 + $0x67] sm:$0xff]
        %v4381 = vld [vmem:[%s4375 + $0x7f] sm:$0xff]
        %v4382 = vld [vmem:[%s4375 + $0x97] sm:$0xff]
        %v4383 = vld [vmem:[%s4375 + $0xaf] sm:$0xff]
        %v4384 = vld [vmem:[%s4375 + $0x8] sm:$0xff]
        %v4385 = vld [vmem:[%s4375 + $0x20] sm:$0xff]
        %v4386 = vld [vmem:[%s4375 + $0x38] sm:$0xff]
        %v4387 = vld [vmem:[%s4375 + $0x50] sm:$0xff]
        %v4388 = vld [vmem:[%s4375 + $0x68] sm:$0xff]
        %v4389 = vld [vmem:[%s4375 + $0x80] sm:$0xff]
        %v4390 = vld [vmem:[%s4375 + $0x98] sm:$0xff]
        %v4391 = vld [vmem:[%s4375 + $0xb0] sm:$0xff]
        %v4392 = vld [vmem:[%s4375 + $0x9] sm:$0xff]
        %v4393 = vld [vmem:[%s4375 + $0x21] sm:$0xff]
        %v4394 = vld [vmem:[%s4375 + $0x39] sm:$0xff]
        %v4395 = vld [vmem:[%s4375 + $0x51] sm:$0xff]
        %v4396 = vld [vmem:[%s4375 + $0x69] sm:$0xff]
        %v4397 = vld [vmem:[%s4375 + $0x81] sm:$0xff]
        %v4398 = vld [vmem:[%s4375 + $0x99] sm:$0xff]
        %v4399 = vld [vmem:[%s4375 + $0xb1] sm:$0xff]
        %4408 = vrot.lane.b32.xlu0 %v4335, 8
        %v4409 = vpop.permute.xlu0 %4408
        %4410 = vrot.lane.b32.xlu0 %v4336, 8
        %v4411 = vpop.permute.xlu0 %4410
        %4412 = vrot.lane.b32.xlu0 %v4337, 8
        %v4413 = vpop.permute.xlu0 %4412
        %4414 = vrot.lane.b32.xlu0 %v4338, 8
        %v4415 = vpop.permute.xlu0 %4414
        %4416 = vrot.lane.b32.xlu0 %v4339, 8
        %v4417 = vpop.permute.xlu0 %4416
        %4418 = vrot.lane.b32.xlu0 %v4340, 8
        %v4419 = vpop.permute.xlu0 %4418
        %4420 = vrot.lane.b32.xlu0 %v4341, 8
        %v4421 = vpop.permute.xlu0 %4420
        %4422 = vrot.lane.b32.xlu0 %v4342, 8
        %v4423 = vpop.permute.xlu0 %4422
        %4440 = vrot.lane.b32.xlu0 %v4343, 16
        %v4441 = vpop.permute.xlu0 %4440
        %4442 = vrot.lane.b32.xlu0 %v4344, 16
        %v4443 = vpop.permute.xlu0 %4442
        %4444 = vrot.lane.b32.xlu0 %v4345, 16
        %v4445 = vpop.permute.xlu0 %4444
        %4446 = vrot.lane.b32.xlu0 %v4346, 16
        %v4447 = vpop.permute.xlu0 %4446
        %4448 = vrot.lane.b32.xlu0 %v4347, 16
        %v4449 = vpop.permute.xlu0 %4448
        %4450 = vrot.lane.b32.xlu0 %v4348, 16
        %v4451 = vpop.permute.xlu0 %4450
        %4452 = vrot.lane.b32.xlu0 %v4349, 16
        %v4453 = vpop.permute.xlu0 %4452
        %4454 = vrot.lane.b32.xlu0 %v4350, 16
        %v4455 = vpop.permute.xlu0 %4454
        %4472 = vrot.lane.b32.xlu0 %v4351, 24
        %v4473 = vpop.permute.xlu0 %4472
        %4474 = vrot.lane.b32.xlu0 %v4352, 24
        %v4475 = vpop.permute.xlu0 %4474
        %4476 = vrot.lane.b32.xlu0 %v4353, 24
        %v4477 = vpop.permute.xlu0 %4476
        %4478 = vrot.lane.b32.xlu0 %v4354, 24
        %v4479 = vpop.permute.xlu0 %4478
        %4480 = vrot.lane.b32.xlu0 %v4355, 24
        %v4481 = vpop.permute.xlu0 %4480
        %4482 = vrot.lane.b32.xlu0 %v4356, 24
        %v4483 = vpop.permute.xlu0 %4482
        %4484 = vrot.lane.b32.xlu0 %v4357, 24
        %v4485 = vpop.permute.xlu0 %4484
        %4486 = vrot.lane.b32.xlu0 %v4358, 24
        %v4487 = vpop.permute.xlu0 %4486
        %4504 = vrot.lane.b32.xlu0 %v4359, 32
        %v4505 = vpop.permute.xlu0 %4504
        %4506 = vrot.lane.b32.xlu0 %v4360, 32
        %v4507 = vpop.permute.xlu0 %4506
        %4508 = vrot.lane.b32.xlu0 %v4361, 32
        %v4509 = vpop.permute.xlu0 %4508
        %4510 = vrot.lane.b32.xlu0 %v4362, 32
        %v4511 = vpop.permute.xlu0 %4510
        %4512 = vrot.lane.b32.xlu0 %v4363, 32
        %v4513 = vpop.permute.xlu0 %4512
        %4514 = vrot.lane.b32.xlu0 %v4364, 32
        %v4515 = vpop.permute.xlu0 %4514
        %4516 = vrot.lane.b32.xlu0 %v4365, 32
        %v4517 = vpop.permute.xlu0 %4516
        %4518 = vrot.lane.b32.xlu0 %v4366, 32
        %v4519 = vpop.permute.xlu0 %4518
        %4536 = vrot.lane.b32.xlu0 %v4367, 40
        %v4537 = vpop.permute.xlu0 %4536
        %4538 = vrot.lane.b32.xlu0 %v4368, 40
        %v4539 = vpop.permute.xlu0 %4538
        %4540 = vrot.lane.b32.xlu0 %v4369, 40
        %v4541 = vpop.permute.xlu0 %4540
        %4542 = vrot.lane.b32.xlu0 %v4370, 40
        %v4543 = vpop.permute.xlu0 %4542
        %4544 = vrot.lane.b32.xlu0 %v4371, 40
        %v4545 = vpop.permute.xlu0 %4544
        %4546 = vrot.lane.b32.xlu0 %v4372, 40
        %v4547 = vpop.permute.xlu0 %4546
        %4548 = vrot.lane.b32.xlu0 %v4373, 40
        %v4549 = vpop.permute.xlu0 %4548
        %4550 = vrot.lane.b32.xlu0 %v4374, 40
        %v4551 = vpop.permute.xlu0 %4550
        %4568 = vrot.lane.b32.xlu0 %v4376, 48
        %v4569 = vpop.permute.xlu0 %4568
        %4570 = vrot.lane.b32.xlu0 %v4377, 48
        %v4571 = vpop.permute.xlu0 %4570
        %4572 = vrot.lane.b32.xlu0 %v4378, 48
        %v4573 = vpop.permute.xlu0 %4572
        %4574 = vrot.lane.b32.xlu0 %v4379, 48
        %v4575 = vpop.permute.xlu0 %4574
        %4576 = vrot.lane.b32.xlu0 %v4380, 48
        %v4577 = vpop.permute.xlu0 %4576
        %4578 = vrot.lane.b32.xlu0 %v4381, 48
        %v4579 = vpop.permute.xlu0 %4578
        %4580 = vrot.lane.b32.xlu0 %v4382, 48
        %v4581 = vpop.permute.xlu0 %4580
        %4582 = vrot.lane.b32.xlu0 %v4383, 48
        %v4583 = vpop.permute.xlu0 %4582
        %4600 = vrot.lane.b32.xlu0 %v4384, 56
        %v4601 = vpop.permute.xlu0 %4600
        %4602 = vrot.lane.b32.xlu0 %v4385, 56
        %v4603 = vpop.permute.xlu0 %4602
        %4604 = vrot.lane.b32.xlu0 %v4386, 56
        %v4605 = vpop.permute.xlu0 %4604
        %4606 = vrot.lane.b32.xlu0 %v4387, 56
        %v4607 = vpop.permute.xlu0 %4606
        %4608 = vrot.lane.b32.xlu0 %v4388, 56
        %v4609 = vpop.permute.xlu0 %4608
        %4610 = vrot.lane.b32.xlu0 %v4389, 56
        %v4611 = vpop.permute.xlu0 %4610
        %4612 = vrot.lane.b32.xlu0 %v4390, 56
        %v4613 = vpop.permute.xlu0 %4612
        %4614 = vrot.lane.b32.xlu0 %v4391, 56
        %v4615 = vpop.permute.xlu0 %4614
        %4632 = vrot.lane.b32.xlu0 %v4392, 64
        %v4633 = vpop.permute.xlu0 %4632
        %4634 = vrot.lane.b32.xlu0 %v4393, 64
        %v4635 = vpop.permute.xlu0 %4634
        %4636 = vrot.lane.b32.xlu0 %v4394, 64
        %v4637 = vpop.permute.xlu0 %4636
        %4638 = vrot.lane.b32.xlu0 %v4395, 64
        %v4639 = vpop.permute.xlu0 %4638
        %4640 = vrot.lane.b32.xlu0 %v4396, 64
        %v4641 = vpop.permute.xlu0 %4640
        %4642 = vrot.lane.b32.xlu0 %v4397, 64
        %v4643 = vpop.permute.xlu0 %4642
        %4644 = vrot.lane.b32.xlu0 %v4398, 64
        %v4645 = vpop.permute.xlu0 %4644
        %4646 = vrot.lane.b32.xlu0 %v4399, 64
        %v4647 = vpop.permute.xlu0 %4646
        %v4656 = vsel %vm3896, %v4327, %v4409
        %v4657 = vsel %vm3896, %v4328, %v4411
        %v4658 = vsel %vm3896, %v4329, %v4413
        %v4659 = vsel %vm3896, %v4330, %v4415
        %v4660 = vsel %vm3896, %v4331, %v4417
        %v4661 = vsel %vm3896, %v4332, %v4419
        %v4662 = vsel %vm3896, %v4333, %v4421
        %v4663 = vsel %vm3896, %v4334, %v4423
        %vm4664 = vcmask 130048
        %v4665 = vsel %vm4664, %v4656, %v4441
        %v4666 = vsel %vm4664, %v4657, %v4443
        %v4667 = vsel %vm4664, %v4658, %v4445
        %v4668 = vsel %vm4664, %v4659, %v4447
        %v4669 = vsel %vm4664, %v4660, %v4449
        %v4670 = vsel %vm4664, %v4661, %v4451
        %v4671 = vsel %vm4664, %v4662, %v4453
        %v4672 = vsel %vm4664, %v4663, %v4455
        %v4673 = vsel %vm2225, %v4665, %v4473
        %v4674 = vsel %vm2225, %v4666, %v4475
        %v4675 = vsel %vm2225, %v4667, %v4477
        %v4676 = vsel %vm2225, %v4668, %v4479
        %v4677 = vsel %vm2225, %v4669, %v4481
        %v4678 = vsel %vm2225, %v4670, %v4483
        %v4679 = vsel %vm2225, %v4671, %v4485
        %v4680 = vsel %vm2225, %v4672, %v4487
        %vm4681 = vcmask 261120
        %v4682 = vsel %vm4681, %v4673, %v4505
        %v4683 = vsel %vm4681, %v4674, %v4507
        %v4684 = vsel %vm4681, %v4675, %v4509
        %v4685 = vsel %vm4681, %v4676, %v4511
        %v4686 = vsel %vm4681, %v4677, %v4513
        %v4687 = vsel %vm4681, %v4678, %v4515
        %v4688 = vsel %vm4681, %v4679, %v4517
        %v4689 = vsel %vm4681, %v4680, %v4519
        %vm4690 = vcmask 326656
        %v4691 = vsel %vm4690, %v4682, %v4537
        %v4692 = vsel %vm4690, %v4683, %v4539
        %v4693 = vsel %vm4690, %v4684, %v4541
        %v4694 = vsel %vm4690, %v4685, %v4543
        %v4695 = vsel %vm4690, %v4686, %v4545
        %v4696 = vsel %vm4690, %v4687, %v4547
        %v4697 = vsel %vm4690, %v4688, %v4549
        %v4698 = vsel %vm4690, %v4689, %v4551
        %vm4699 = vcmask 392192
        %v4700 = vsel %vm4699, %v4691, %v4569
        %v4701 = vsel %vm4699, %v4692, %v4571
        %v4702 = vsel %vm4699, %v4693, %v4573
        %v4703 = vsel %vm4699, %v4694, %v4575
        %v4704 = vsel %vm4699, %v4695, %v4577
        %v4705 = vsel %vm4699, %v4696, %v4579
        %v4706 = vsel %vm4699, %v4697, %v4581
        %v4707 = vsel %vm4699, %v4698, %v4583
        %vm4708 = vcmask 457728
        %v4709 = vsel %vm4708, %v4700, %v4601
        %v4710 = vsel %vm4708, %v4701, %v4603
        %v4711 = vsel %vm4708, %v4702, %v4605
        %v4712 = vsel %vm4708, %v4703, %v4607
        %v4713 = vsel %vm4708, %v4704, %v4609
        %v4714 = vsel %vm4708, %v4705, %v4611
        %v4715 = vsel %vm4708, %v4706, %v4613
        %v4716 = vsel %vm4708, %v4707, %v4615
        %vm4717 = vcmask 523264
        %v4718 = vsel %vm4717, %v4709, %v4633
        %v4719 = vsel %vm4717, %v4710, %v4635
        %v4720 = vsel %vm4717, %v4711, %v4637
        %v4721 = vsel %vm4717, %v4712, %v4639
        %v4722 = vsel %vm4717, %v4713, %v4641
        %v4723 = vsel %vm4717, %v4714, %v4643
        %v4724 = vsel %vm4717, %v4715, %v4645
        %v4725 = vsel %vm4717, %v4716, %v4647
        %v4726 = vpack.c.bf16 %v4719, %v4718
        %v4727 = vpack.c.bf16 %v4721, %v4720
        %v4728 = vpack.c.bf16 %v4723, %v4722
        %v4729 = vpack.c.bf16 %v4725, %v4724
        %v4730 = vld [vmem:[%s6] sm:$0xf]
        %v4731 = vld [vmem:[%s6 + $0x4] sm:$0xf]
        %v4732 = vld [vmem:[%s6 + $0x8] sm:$0xf]
        %v4733 = vld [vmem:[%s6 + $0xc] sm:$0xf]
        %v4734 = vld [vmem:[%s6 + $0x10] sm:$0xf]
        %v4735 = vld [vmem:[%s6 + $0x14] sm:$0xf]
        %v4736 = vld [vmem:[%s6 + $0x18] sm:$0xf]
        %v4737 = vld [vmem:[%s6 + $0x1c] sm:$0xf]
        %v4738 = vld [vmem:[%s6 + $0x20] sm:$0xf]
        %v4748 = vunpack.c.l.b16 %v4730
        %v4749 = vunpack.c.l.b16 %v4731
        %v4750 = vunpack.c.l.b16 %v4732
        %v4751 = vunpack.c.l.b16 %v4733
        %v4752 = vunpack.c.l.b16 %v4734
        %v4753 = vunpack.c.l.b16 %v4735
        %v4754 = vunpack.c.l.b16 %v4736
        %v4755 = vunpack.c.l.b16 %v4737
        %v4756 = vunpack.c.l.b16 %v4738
        %v4757 = vpack.c.b16 %v4749, %v4748
        %v4758 = vpack.c.b16 %v4751, %v4750
        %v4759 = vpack.c.b16 %v4753, %v4752
        %v4760 = vpack.c.b16 %v4755, %v4754
        %v4761 = vpack.c.b16 %v4756, %v4756
        %vm4766 = vcmask 588800
        %v4768 = vsel %vm4766, %v4726, 0
        %v4771 = vsel %vm4766, %v4727, 0
        %v4774 = vsel %vm4766, %v4728, 0
        %v4777 = vsel %vm4766, %v4729, 0
        %vm4779 = vcmask 1043456
        %v4781 = vsel %vm4779, %v4761, 0
        %4783 = vmatprep.subr.bf16.mxu0 0
        %4784 = vmatpush1.bf16.msra.mxu0 %v4757
        %4785 = vmatprep.subr.bf16.mxu0 0
        %4786 = vmatpush1.bf16.msra.mxu0 %v4758
        %4787 = vmatprep.subr.bf16.mxu0 0
        %4788 = vmatpush1.bf16.msra.mxu0 %v4759
        %4789 = vmatprep.subr.bf16.mxu0 0
        %4790 = vmatpush1.bf16.msra.mxu0 %v4760
        %4791 = vmatprep.subr.bf16.mxu0 0
        %4792 = vmatpush1.bf16.msra.mxu0 %v4781
        %4793 = vmatprep.subr.bf16.mxu0 0
        %4794 = vmatpush1.bf16.msra.mxu0 0
        %4795 = vmatprep.subr.bf16.mxu0 0
        %4796 = vmatpush1.bf16.msra.mxu0 0
        %4797 = vmatprep.subr.bf16.mxu0 0
        %4798 = vmatpush1.bf16.msra.mxu0 0
        %4799 = vmatprep.subr.bf16.mxu0 0
        %4800 = vmatpush1.bf16.msra.mxu0 0
        %4801 = vmatprep.subr.bf16.mxu0 0
        %4802 = vmatpush1.bf16.msra.mxu0 0
        %4803 = vmatprep.subr.bf16.mxu0 0
        %4804 = vmatpush1.bf16.msra.mxu0 0
        %4805 = vmatprep.subr.bf16.mxu0 0
        %4806 = vmatpush1.bf16.msra.mxu0 0
        %4807 = vmatprep.subr.bf16.mxu0 0
        %4808 = vmatpush1.bf16.msra.mxu0 0
        %4809 = vmatprep.subr.bf16.mxu0 0
        %4810 = vmatpush1.bf16.msra.mxu0 0
        %4811 = vmatprep.subr.bf16.mxu0 0
        %4812 = vmatpush1.bf16.msra.mxu0 0
        %4813 = vmatprep.subr.bf16.mxu0 0
        %4814 = vmatpush1.bf16.msra.mxu0 0
        %4815 = vmatprep.mubr.bf16.mxu0 0
        %4816 = vmatmul.mubr.bf16.gmra.mrb[0].mxu0 %v4768
        %v4817 = vpop.f32.mrb[0].mxu0
        %v4818 = vadd.f32 0.0, %v4817
        %v4819 = vpop.f32.mrb[0].mxu0
        %v4820 = vpop.f32.mrb[0].mxu0
        %v4821 = vadd.f32 0.0, %v4820
        %v4822 = vpop.f32.mrb[0].mxu0
        %4823 = vmatprep.mubr.bf16.mxu0 0
        %4824 = vmatmul.mubr.bf16.gmra.mrb[0].mxu0 %v4771
        %v4825 = vpop.f32.mrb[0].mxu0
        %v4826 = vadd.f32 0.0, %v4825
        %v4827 = vpop.f32.mrb[0].mxu0
        %v4828 = vpop.f32.mrb[0].mxu0
        %v4829 = vadd.f32 0.0, %v4828
        %v4830 = vpop.f32.mrb[0].mxu0
        %4831 = vmatprep.mubr.bf16.mxu0 0
        %4832 = vmatmul.mubr.bf16.gmra.mrb[0].mxu0 %v4774
        %v4833 = vpop.f32.mrb[0].mxu0
        %v4834 = vadd.f32 0.0, %v4833
        %v4835 = vpop.f32.mrb[0].mxu0
        %v4836 = vpop.f32.mrb[0].mxu0
        %v4837 = vadd.f32 0.0, %v4836
        %v4838 = vpop.f32.mrb[0].mxu0
        %4839 = vmatprep.mubr.bf16.mxu0 0
        %4840 = vmatmul.mubr.bf16.gmra.mrb[0].mxu0 %v4777
        %v4841 = vpop.f32.mrb[0].mxu0
        %v4842 = vadd.f32 0.0, %v4841
        %v4843 = vpop.f32.mrb[0].mxu0
        %v4844 = vpop.f32.mrb[0].mxu0
        %v4845 = vadd.f32 0.0, %v4844
        %v4846 = vpop.f32.mrb[0].mxu0
        %4847 = vdwg.mxu0
        %v4848 = vld [vmem:[%s7] sm:$0x1]
        %v4850 = vlaneseq
        %v4851 = vshrl.u32 %v4850, 7
        %v4852 = vsub.s32 0, %v4851
        %v4853 = vrot.slane %v4848, %v4852
        %v4855 = vmul.f32 %v4818, %v4853
        %v4856 = vmul.f32 %v4821, %v4853
        %v4857 = vmul.f32 %v4826, %v4853
        %v4858 = vmul.f32 %v4829, %v4853
        %v4859 = vmul.f32 %v4834, %v4853
        %v4860 = vmul.f32 %v4837, %v4853
        %v4861 = vmul.f32 %v4842, %v4853
        %v4862 = vmul.f32 %v4845, %v4853
        %v4863 = vld [vmem:[%s8] sm:$0x1]
        %v4865 = vlaneseq
        %v4866 = vshrl.u32 %v4865, 7
        %v4867 = vsub.s32 0, %v4866
        %v4868 = vrot.slane %v4863, %v4867
        %v4870 = vadd.f32 %v4855, %v4868
        %v4871 = vadd.f32 %v4856, %v4868
        %v4872 = vadd.f32 %v4857, %v4868
        %v4873 = vadd.f32 %v4858, %v4868
        %v4874 = vadd.f32 %v4859, %v4868
        %v4875 = vadd.f32 %v4860, %v4868
        %v4876 = vadd.f32 %v4861, %v4868
        %v4877 = vadd.f32 %v4862, %v4868
        %v4878 = vmax.f32 %v4870, 0.0
        %v4879 = vmax.f32 %v4871, 0.0
        %v4880 = vmax.f32 %v4872, 0.0
        %v4881 = vmax.f32 %v4873, 0.0
        %v4882 = vmax.f32 %v4874, 0.0
        %v4883 = vmax.f32 %v4875, 0.0
        %v4884 = vmax.f32 %v4876, 0.0
        %v4885 = vmax.f32 %v4877, 0.0
        %v4894 = vcombine.high %v4878, %v4878
        %v4896 = vunpack.c.l.s4 1983009808
        %v4897 = vunpack.c.0.s8 %v4896
        %v4898 = vlaneseq
        %v4899 = vshrl.u32 %v4898, 7
        %v4900 = vsub.s32 %v4897, %v4899
        %v4901 = vrot.slane %v4878, %v4900
        %v4903 = vunpack.c.l.s4 1983009808
        %v4904 = vunpack.c.0.s8 %v4903
        %v4905 = vlaneseq
        %v4906 = vshrl.u32 %v4905, 7
        %v4907 = vsub.s32 %v4904, %v4906
        %v4908 = vrot.slane %v4894, %v4907
        %v4909 = vcombine.high %v4901, %v4901
        %v4910 = vcombine.high %v4908, %v4908
        %v4911 = vcombine.high %v4879, %v4879
        %v4913 = vunpack.c.l.s4 1983009808
        %v4914 = vunpack.c.0.s8 %v4913
        %v4915 = vlaneseq
        %v4916 = vshrl.u32 %v4915, 7
        %v4917 = vsub.s32 %v4914, %v4916
        %v4918 = vrot.slane %v4879, %v4917
        %v4920 = vunpack.c.l.s4 1983009808
        %v4921 = vunpack.c.0.s8 %v4920
        %v4922 = vlaneseq
        %v4923 = vshrl.u32 %v4922, 7
        %v4924 = vsub.s32 %v4921, %v4923
        %v4925 = vrot.slane %v4911, %v4924
        %v4926 = vcombine.high %v4918, %v4918
        %v4927 = vcombine.high %v4925, %v4925
        %v4928 = vcombine.high %v4880, %v4880
        %v4930 = vunpack.c.l.s4 1983009808
        %v4931 = vunpack.c.0.s8 %v4930
        %v4932 = vlaneseq
        %v4933 = vshrl.u32 %v4932, 7
        %v4934 = vsub.s32 %v4931, %v4933
        %v4935 = vrot.slane %v4880, %v4934
        %v4937 = vunpack.c.l.s4 1983009808
        %v4938 = vunpack.c.0.s8 %v4937
        %v4939 = vlaneseq
        %v4940 = vshrl.u32 %v4939, 7
        %v4941 = vsub.s32 %v4938, %v4940
        %v4942 = vrot.slane %v4928, %v4941
        %v4943 = vcombine.high %v4935, %v4935
        %v4944 = vcombine.high %v4942, %v4942
        %v4945 = vcombine.high %v4881, %v4881
        %v4947 = vunpack.c.l.s4 1983009808
        %v4948 = vunpack.c.0.s8 %v4947
        %v4949 = vlaneseq
        %v4950 = vshrl.u32 %v4949, 7
        %v4951 = vsub.s32 %v4948, %v4950
        %v4952 = vrot.slane %v4881, %v4951
        %v4954 = vunpack.c.l.s4 1983009808
        %v4955 = vunpack.c.0.s8 %v4954
        %v4956 = vlaneseq
        %v4957 = vshrl.u32 %v4956, 7
        %v4958 = vsub.s32 %v4955, %v4957
        %v4959 = vrot.slane %v4945, %v4958
        %v4960 = vcombine.high %v4952, %v4952
        %v4961 = vcombine.high %v4959, %v4959
        %v4962 = vcombine.high %v4882, %v4882
        %v4964 = vunpack.c.l.s4 1983009808
        %v4965 = vunpack.c.0.s8 %v4964
        %v4966 = vlaneseq
        %v4967 = vshrl.u32 %v4966, 7
        %v4968 = vsub.s32 %v4965, %v4967
        %v4969 = vrot.slane %v4882, %v4968
        %v4971 = vunpack.c.l.s4 1983009808
        %v4972 = vunpack.c.0.s8 %v4971
        %v4973 = vlaneseq
        %v4974 = vshrl.u32 %v4973, 7
        %v4975 = vsub.s32 %v4972, %v4974
        %v4976 = vrot.slane %v4962, %v4975
        %v4977 = vcombine.high %v4969, %v4969
        %v4978 = vcombine.high %v4976, %v4976
        %v4979 = vcombine.high %v4883, %v4883
        %v4981 = vunpack.c.l.s4 1983009808
        %v4982 = vunpack.c.0.s8 %v4981
        %v4983 = vlaneseq
        %v4984 = vshrl.u32 %v4983, 7
        %v4985 = vsub.s32 %v4982, %v4984
        %v4986 = vrot.slane %v4883, %v4985
        %v4988 = vunpack.c.l.s4 1983009808
        %v4989 = vunpack.c.0.s8 %v4988
        %v4990 = vlaneseq
        %v4991 = vshrl.u32 %v4990, 7
        %v4992 = vsub.s32 %v4989, %v4991
        %v4993 = vrot.slane %v4979, %v4992
        %v4994 = vcombine.high %v4986, %v4986
        %v4995 = vcombine.high %v4993, %v4993
        %v4996 = vcombine.high %v4884, %v4884
        %v4998 = vunpack.c.l.s4 1983009808
        %v4999 = vunpack.c.0.s8 %v4998
        %v5000 = vlaneseq
        %v5001 = vshrl.u32 %v5000, 7
        %v5002 = vsub.s32 %v4999, %v5001
        %v5003 = vrot.slane %v4884, %v5002
        %v5005 = vunpack.c.l.s4 1983009808
        %v5006 = vunpack.c.0.s8 %v5005
        %v5007 = vlaneseq
        %v5008 = vshrl.u32 %v5007, 7
        %v5009 = vsub.s32 %v5006, %v5008
        %v5010 = vrot.slane %v4996, %v5009
        %v5011 = vcombine.high %v5003, %v5003
        %v5012 = vcombine.high %v5010, %v5010
        %v5013 = vcombine.high %v4885, %v4885
        %v5015 = vunpack.c.l.s4 1983009808
        %v5016 = vunpack.c.0.s8 %v5015
        %v5017 = vlaneseq
        %v5018 = vshrl.u32 %v5017, 7
        %v5019 = vsub.s32 %v5016, %v5018
        %v5020 = vrot.slane %v4885, %v5019
        %v5022 = vunpack.c.l.s4 1983009808
        %v5023 = vunpack.c.0.s8 %v5022
        %v5024 = vlaneseq
        %v5025 = vshrl.u32 %v5024, 7
        %v5026 = vsub.s32 %v5023, %v5025
        %v5027 = vrot.slane %v5013, %v5026
        %v5028 = vcombine.high %v5020, %v5020
        %v5029 = vcombine.high %v5027, %v5027
        %v5062 = vrot.slane %v4901, 7
        %v5063 = vrot.slane %v5062, 2
        %v5064 = vrot.slane %v4909, 7
        %v5065 = vrot.slane %v5064, 2
        %v5066 = vrot.slane %v4908, 7
        %v5067 = vrot.slane %v5066, 2
        %v5068 = vrot.slane %v4910, 7
        %v5069 = vrot.slane %v5068, 2
        %v5070 = vrot.slane %v4935, 7
        %v5071 = vrot.slane %v5070, 2
        %v5072 = vrot.slane %v4943, 7
        %v5073 = vrot.slane %v5072, 2
        %v5074 = vrot.slane %v4942, 7
        %v5075 = vrot.slane %v5074, 2
        %v5076 = vrot.slane %v4944, 7
        %v5077 = vrot.slane %v5076, 2
        %v5078 = vrot.slane %v4969, 7
        %v5079 = vrot.slane %v5078, 2
        %v5080 = vrot.slane %v4977, 7
        %v5081 = vrot.slane %v5080, 2
        %v5082 = vrot.slane %v4976, 7
        %v5083 = vrot.slane %v5082, 2
        %v5084 = vrot.slane %v4978, 7
        %v5085 = vrot.slane %v5084, 2
        %v5086 = vrot.slane %v5003, 7
        %v5087 = vrot.slane %v5086, 2
        %v5088 = vrot.slane %v5011, 7
        %v5089 = vrot.slane %v5088, 2
        %v5090 = vrot.slane %v5010, 7
        %v5091 = vrot.slane %v5090, 2
        %v5092 = vrot.slane %v5012, 7
        %v5093 = vrot.slane %v5092, 2
        %v5110 = vmax.f32 %v4901, %v5063
        %v5111 = vmax.f32 %v4909, %v5065
        %v5112 = vmax.f32 %v4908, %v5067
        %v5113 = vmax.f32 %v4910, %v5069
        %v5114 = vmax.f32 %v4935, %v5071
        %v5115 = vmax.f32 %v4943, %v5073
        %v5116 = vmax.f32 %v4942, %v5075
        %v5117 = vmax.f32 %v4944, %v5077
        %v5118 = vmax.f32 %v4969, %v5079
        %v5119 = vmax.f32 %v4977, %v5081
        %v5120 = vmax.f32 %v4976, %v5083
        %v5121 = vmax.f32 %v4978, %v5085
        %v5122 = vmax.f32 %v5003, %v5087
        %v5123 = vmax.f32 %v5011, %v5089
        %v5124 = vmax.f32 %v5010, %v5091
        %v5125 = vmax.f32 %v5012, %v5093
        %v5126 = vrot.slane %v4918, 7
        %v5127 = vrot.slane %v5126, 2
        %v5128 = vrot.slane %v4926, 7
        %v5129 = vrot.slane %v5128, 2
        %v5130 = vrot.slane %v4925, 7
        %v5131 = vrot.slane %v5130, 2
        %v5132 = vrot.slane %v4927, 7
        %v5133 = vrot.slane %v5132, 2
        %v5134 = vrot.slane %v4952, 7
        %v5135 = vrot.slane %v5134, 2
        %v5136 = vrot.slane %v4960, 7
        %v5137 = vrot.slane %v5136, 2
        %v5138 = vrot.slane %v4959, 7
        %v5139 = vrot.slane %v5138, 2
        %v5140 = vrot.slane %v4961, 7
        %v5141 = vrot.slane %v5140, 2
        %v5142 = vrot.slane %v4986, 7
        %v5143 = vrot.slane %v5142, 2
        %v5144 = vrot.slane %v4994, 7
        %v5145 = vrot.slane %v5144, 2
        %v5146 = vrot.slane %v4993, 7
        %v5147 = vrot.slane %v5146, 2
        %v5148 = vrot.slane %v4995, 7
        %v5149 = vrot.slane %v5148, 2
        %v5150 = vrot.slane %v5020, 7
        %v5151 = vrot.slane %v5150, 2
        %v5152 = vrot.slane %v5028, 7
        %v5153 = vrot.slane %v5152, 2
        %v5154 = vrot.slane %v5027, 7
        %v5155 = vrot.slane %v5154, 2
        %v5156 = vrot.slane %v5029, 7
        %v5157 = vrot.slane %v5156, 2
        %v5174 = vmax.f32 %v4918, %v5127
        %v5175 = vmax.f32 %v4926, %v5129
        %v5176 = vmax.f32 %v4925, %v5131
        %v5177 = vmax.f32 %v4927, %v5133
        %v5178 = vmax.f32 %v4952, %v5135
        %v5179 = vmax.f32 %v4960, %v5137
        %v5180 = vmax.f32 %v4959, %v5139
        %v5181 = vmax.f32 %v4961, %v5141
        %v5182 = vmax.f32 %v4986, %v5143
        %v5183 = vmax.f32 %v4994, %v5145
        %v5184 = vmax.f32 %v4993, %v5147
        %v5185 = vmax.f32 %v4995, %v5149
        %v5186 = vmax.f32 %v5020, %v5151
        %v5187 = vmax.f32 %v5028, %v5153
        %v5188 = vmax.f32 %v5027, %v5155
        %v5189 = vmax.f32 %v5029, %v5157
        %v5190 = vmax.f32 %v5110, %v5174
        %v5191 = vmax.f32 %v5111, %v5175
        %v5192 = vmax.f32 %v5112, %v5176
        %v5193 = vmax.f32 %v5113, %v5177
        %v5194 = vmax.f32 %v5114, %v5178
        %v5195 = vmax.f32 %v5115, %v5179
        %v5196 = vmax.f32 %v5116, %v5180
        %v5197 = vmax.f32 %v5117, %v5181
        %v5198 = vmax.f32 %v5118, %v5182
        %v5199 = vmax.f32 %v5119, %v5183
        %v5200 = vmax.f32 %v5120, %v5184
        %v5201 = vmax.f32 %v5121, %v5185
        %v5202 = vmax.f32 %v5122, %v5186
        %v5203 = vmax.f32 %v5123, %v5187
        %v5204 = vmax.f32 %v5124, %v5188
        %v5205 = vmax.f32 %v5125, %v5189
        %5206 = vst.msk [vmem:[#allocation4] sm:$0xff] %vm4664, 0.0
        %5207 = vst.msk [vmem:[#allocation4 + $0x8] sm:$0xff] %vm4664, 0.0
        %vm5208 = vcmask 125952
        %5209 = vst.msk [vmem:[#allocation4 + $0x10] sm:$0xf] %vm5208, 0.0
        %5210 = vst.msk [vmem:[#allocation4 + $0x18] sm:$0xff] %vm4664, 0.0
        %5211 = vst.msk [vmem:[#allocation4 + $0x20] sm:$0xff] %vm4664, 0.0
        %5212 = vst.msk [vmem:[#allocation4 + $0x28] sm:$0xf] %vm5208, 0.0
        %5213 = vst.msk [vmem:[#allocation4 + $0x30] sm:$0xff] %vm4664, 0.0
        %5214 = vst.msk [vmem:[#allocation4 + $0x38] sm:$0xff] %vm4664, 0.0
        %5215 = vst.msk [vmem:[#allocation4 + $0x40] sm:$0xf] %vm5208, 0.0
        %5216 = vst.msk [vmem:[#allocation4 + $0x48] sm:$0xff] %vm4664, 0.0
        %5217 = vst.msk [vmem:[#allocation4 + $0x50] sm:$0xff] %vm4664, 0.0
        %5218 = vst.msk [vmem:[#allocation4 + $0x58] sm:$0xf] %vm5208, 0.0
        %5219 = vst.msk [vmem:[#allocation4 + $0x60] sm:$0xff] %vm4664, 0.0
        %5220 = vst.msk [vmem:[#allocation4 + $0x68] sm:$0xff] %vm4664, 0.0
        %5221 = vst.msk [vmem:[#allocation4 + $0x70] sm:$0xf] %vm5208, 0.0
        %5222 = vst.msk [vmem:[#allocation4 + $0x78] sm:$0xff] %vm4664, 0.0
        %5223 = vst.msk [vmem:[#allocation4 + $0x80] sm:$0xff] %vm4664, 0.0
        %5224 = vst.msk [vmem:[#allocation4 + $0x88] sm:$0xf] %vm5208, 0.0
        %v5241 = vlaneseq
        %v5242 = vshrl.u32 %v5241, 7
        %v5243 = vsub.s32 0, %v5242
        %v5244 = vrot.slane %v5190, %v5243
        %v5245 = vlaneseq
        %v5246 = vshrl.u32 %v5245, 7
        %v5247 = vsub.s32 0, %v5246
        %v5248 = vrot.slane %v5191, %v5247
        %v5249 = vlaneseq
        %v5250 = vshrl.u32 %v5249, 7
        %v5251 = vsub.s32 0, %v5250
        %v5252 = vrot.slane %v5192, %v5251
        %v5253 = vlaneseq
        %v5254 = vshrl.u32 %v5253, 7
        %v5255 = vsub.s32 0, %v5254
        %v5256 = vrot.slane %v5193, %v5255
        %v5257 = vlaneseq
        %v5258 = vshrl.u32 %v5257, 7
        %v5259 = vsub.s32 0, %v5258
        %v5260 = vrot.slane %v5194, %v5259
        %v5261 = vlaneseq
        %v5262 = vshrl.u32 %v5261, 7
        %v5263 = vsub.s32 0, %v5262
        %v5264 = vrot.slane %v5195, %v5263
        %v5265 = vlaneseq
        %v5266 = vshrl.u32 %v5265, 7
        %v5267 = vsub.s32 0, %v5266
        %v5268 = vrot.slane %v5196, %v5267
        %v5269 = vlaneseq
        %v5270 = vshrl.u32 %v5269, 7
        %v5271 = vsub.s32 0, %v5270
        %v5272 = vrot.slane %v5197, %v5271
        %v5273 = vlaneseq
        %v5274 = vshrl.u32 %v5273, 7
        %v5275 = vsub.s32 0, %v5274
        %v5276 = vrot.slane %v5198, %v5275
        %v5277 = vlaneseq
        %v5278 = vshrl.u32 %v5277, 7
        %v5279 = vsub.s32 0, %v5278
        %v5280 = vrot.slane %v5199, %v5279
        %v5281 = vlaneseq
        %v5282 = vshrl.u32 %v5281, 7
        %v5283 = vsub.s32 0, %v5282
        %v5284 = vrot.slane %v5200, %v5283
        %v5285 = vlaneseq
        %v5286 = vshrl.u32 %v5285, 7
        %v5287 = vsub.s32 0, %v5286
        %v5288 = vrot.slane %v5201, %v5287
        %v5289 = vlaneseq
        %v5290 = vshrl.u32 %v5289, 7
        %v5291 = vsub.s32 0, %v5290
        %v5292 = vrot.slane %v5202, %v5291
        %v5293 = vlaneseq
        %v5294 = vshrl.u32 %v5293, 7
        %v5295 = vsub.s32 0, %v5294
        %v5296 = vrot.slane %v5203, %v5295
        %v5297 = vlaneseq
        %v5298 = vshrl.u32 %v5297, 7
        %v5299 = vsub.s32 0, %v5298
        %v5300 = vrot.slane %v5204, %v5299
        %v5301 = vlaneseq
        %v5302 = vshrl.u32 %v5301, 7
        %v5303 = vsub.s32 0, %v5302
        %v5304 = vrot.slane %v5205, %v5303
        %v5305 = vsel %vm4247, %v5248, %v5244
        %v5306 = vsel %vm4249, %v5252, %v5305
        %v5307 = vsel %vm4251, %v5256, %v5306
        %v5308 = vsel %vm4247, %v5264, %v5260
        %v5309 = vsel %vm4249, %v5268, %v5308
        %v5310 = vsel %vm4251, %v5272, %v5309
        %v5311 = vsel %vm4247, %v5280, %v5276
        %v5312 = vsel %vm4249, %v5284, %v5311
        %v5313 = vsel %vm4251, %v5288, %v5312
        %v5314 = vsel %vm4247, %v5296, %v5292
        %v5315 = vsel %vm4249, %v5300, %v5314
        %v5316 = vsel %vm4251, %v5304, %v5315
        %s5321 = scalar_lea.vmem [#allocation4], 24
        %5322 = vst.msk [vmem:[%s5321 + $0x8] sm:$0xf] %vm5208, %v5307
        %5323 = vst.msk [vmem:[%s5321 + $0x20] sm:$0xf] %vm5208, %v5310
        %5324 = vst.msk [vmem:[%s5321 + $0x38] sm:$0xf] %vm5208, %v5313
        %5325 = vst.msk [vmem:[%s5321 + $0x50] sm:$0xf] %vm5208, %v5316
        %v5326 = vld [vmem:[#allocation4 + $0x7] sm:$0xf]
        %v5327 = vld [vmem:[#allocation4 + $0x1f] sm:$0xf]
        %v5328 = vld [vmem:[#allocation4 + $0x37] sm:$0xf]
        %v5329 = vld [vmem:[#allocation4 + $0x4f] sm:$0xf]
        %v5330 = vld [vmem:[#allocation4 + $0x8] sm:$0xf]
        %v5331 = vld [vmem:[#allocation4 + $0x20] sm:$0xf]
        %v5332 = vld [vmem:[#allocation4 + $0x38] sm:$0xf]
        %v5333 = vld [vmem:[#allocation4 + $0x50] sm:$0xf]
        %v5334 = vld [vmem:[#allocation4 + $0x9] sm:$0xf]
        %v5335 = vld [vmem:[#allocation4 + $0x21] sm:$0xf]
        %v5336 = vld [vmem:[#allocation4 + $0x39] sm:$0xf]
        %v5337 = vld [vmem:[#allocation4 + $0x51] sm:$0xf]
        %v5338 = vld [vmem:[%s5321 + $0x7] sm:$0xf]
        %v5339 = vld [vmem:[%s5321 + $0x1f] sm:$0xf]
        %v5340 = vld [vmem:[%s5321 + $0x37] sm:$0xf]
        %v5341 = vld [vmem:[%s5321 + $0x4f] sm:$0xf]
        %v5342 = vld [vmem:[%s5321 + $0x8] sm:$0xf]
        %v5343 = vld [vmem:[%s5321 + $0x20] sm:$0xf]
        %v5344 = vld [vmem:[%s5321 + $0x38] sm:$0xf]
        %v5345 = vld [vmem:[%s5321 + $0x50] sm:$0xf]
        %v5346 = vld [vmem:[%s5321 + $0x9] sm:$0xf]
        %v5347 = vld [vmem:[%s5321 + $0x21] sm:$0xf]
        %v5348 = vld [vmem:[%s5321 + $0x39] sm:$0xf]
        %v5349 = vld [vmem:[%s5321 + $0x51] sm:$0xf]
        %s5350 = scalar_lea.vmem [#allocation4], 48
        %v5351 = vld [vmem:[%s5350 + $0x7] sm:$0xf]
        %v5352 = vld [vmem:[%s5350 + $0x1f] sm:$0xf]
        %v5353 = vld [vmem:[%s5350 + $0x37] sm:$0xf]
        %v5354 = vld [vmem:[%s5350 + $0x4f] sm:$0xf]
        %v5355 = vld [vmem:[%s5350 + $0x8] sm:$0xf]
        %v5356 = vld [vmem:[%s5350 + $0x20] sm:$0xf]
        %v5357 = vld [vmem:[%s5350 + $0x38] sm:$0xf]
        %v5358 = vld [vmem:[%s5350 + $0x50] sm:$0xf]
        %v5359 = vld [vmem:[%s5350 + $0x9] sm:$0xf]
        %v5360 = vld [vmem:[%s5350 + $0x21] sm:$0xf]
        %v5361 = vld [vmem:[%s5350 + $0x39] sm:$0xf]
        %v5362 = vld [vmem:[%s5350 + $0x51] sm:$0xf]
        %v5367 = vcombine.low %v5326, %v5327
        %v5368 = vcombine.low %v5328, %v5329
        %v5375 = vcombine.low %v5330, %v5331
        %v5376 = vcombine.low %v5332, %v5333
        %5377 = vrot.lane.b32.xlu0 %v5375, 16
        %v5378 = vpop.permute.xlu0 %5377
        %5379 = vrot.lane.b32.xlu0 %v5376, 16
        %v5380 = vpop.permute.xlu0 %5379
        %v5387 = vcombine.low %v5334, %v5335
        %v5388 = vcombine.low %v5336, %v5337
        %5389 = vrot.lane.b32.xlu0 %v5387, 32
        %v5390 = vpop.permute.xlu0 %5389
        %5391 = vrot.lane.b32.xlu0 %v5388, 32
        %v5392 = vpop.permute.xlu0 %5391
        %v5399 = vcombine.low %v5338, %v5339
        %v5400 = vcombine.low %v5340, %v5341
        %5401 = vrot.lane.b32.xlu0 %v5399, 48
        %v5402 = vpop.permute.xlu0 %5401
        %5403 = vrot.lane.b32.xlu0 %v5400, 48
        %v5404 = vpop.permute.xlu0 %5403
        %v5411 = vcombine.low %v5342, %v5343
        %v5412 = vcombine.low %v5344, %v5345
        %5413 = vrot.lane.b32.xlu0 %v5411, 64
        %v5414 = vpop.permute.xlu0 %5413
        %5415 = vrot.lane.b32.xlu0 %v5412, 64
        %v5416 = vpop.permute.xlu0 %5415
        %v5423 = vcombine.low %v5346, %v5347
        %v5424 = vcombine.low %v5348, %v5349
        %5425 = vrot.lane.b32.xlu0 %v5423, 80
        %v5426 = vpop.permute.xlu0 %5425
        %5427 = vrot.lane.b32.xlu0 %v5424, 80
        %v5428 = vpop.permute.xlu0 %5427
        %v5435 = vcombine.low %v5351, %v5352
        %v5436 = vcombine.low %v5353, %v5354
        %5437 = vrot.lane.b32.xlu0 %v5435, 96
        %v5438 = vpop.permute.xlu0 %5437
        %5439 = vrot.lane.b32.xlu0 %v5436, 96
        %v5440 = vpop.permute.xlu0 %5439
        %v5447 = vcombine.low %v5355, %v5356
        %v5448 = vcombine.low %v5357, %v5358
        %5449 = vrot.lane.b32.xlu0 %v5447, 112
        %v5450 = vpop.permute.xlu0 %5449
        %5451 = vrot.lane.b32.xlu0 %v5448, 112
        %v5452 = vpop.permute.xlu0 %5451
        %v5459 = vcombine.low %v5359, %v5360
        %v5460 = vcombine.low %v5361, %v5362
        %v5463 = vsel %vm4664, %v5367, %v5378
        %v5464 = vsel %vm4664, %v5368, %v5380
        %v5465 = vsel %vm4681, %v5463, %v5390
        %v5466 = vsel %vm4681, %v5464, %v5392
        %v5467 = vsel %vm4699, %v5465, %v5402
        %v5468 = vsel %vm4699, %v5466, %v5404
        %v5469 = vsel %vm4717, %v5467, %v5414
        %v5470 = vsel %vm4717, %v5468, %v5416
        %vm5471 = vcmask 654336
        %v5472 = vsel %vm5471, %v5469, %v5426
        %v5473 = vsel %vm5471, %v5470, %v5428
        %vm5474 = vcmask 785408
        %v5475 = vsel %vm5474, %v5472, %v5438
        %v5476 = vsel %vm5474, %v5473, %v5440
        %vm5477 = vcmask 916480
        %v5478 = vsel %vm5477, %v5475, %v5450
        %v5479 = vsel %vm5477, %v5476, %v5452
        %v5480 = vpack.c.bf16 %v5479, %v5478
        %v5481 = vpack.c.bf16 %v5460, %v5459
        %v5482 = vld [vmem:[%s9] sm:$0xff]
        %v5483 = vld [vmem:[%s9 + $0x8] sm:$0xff]
        %v5484 = vld [vmem:[%s9 + $0x10] sm:$0xff]
        %v5485 = vld [vmem:[%s9 + $0x18] sm:$0xff]
        %v5486 = vld [vmem:[%s9 + $0x20] sm:$0xff]
        %v5487 = vld [vmem:[%s9 + $0x28] sm:$0xff]
        %v5488 = vld [vmem:[%s9 + $0x30] sm:$0xff]
        %v5489 = vld [vmem:[%s9 + $0x38] sm:$0xff]
        %v5490 = vld [vmem:[%s9 + $0x40] sm:$0xff]
        %v5491 = vld [vmem:[%s9 + $0x48] sm:$0xff]
        %v5492 = vld [vmem:[%s9 + $0x50] sm:$0xff]
        %v5493 = vld [vmem:[%s9 + $0x58] sm:$0xff]
        %v5494 = vld [vmem:[%s9 + $0x60] sm:$0xff]
        %v5495 = vld [vmem:[%s9 + $0x68] sm:$0xff]
        %v5496 = vld [vmem:[%s9 + $0x70] sm:$0xff]
        %v5497 = vld [vmem:[%s9 + $0x78] sm:$0xff]
        %v5498 = vld [vmem:[%s9 + $0x80] sm:$0xff]
        %v5499 = vld [vmem:[%s9 + $0x88] sm:$0xff]
        %v5500 = vld [vmem:[%s9 + $0x90] sm:$0xff]
        %v5501 = vld [vmem:[%s9 + $0x98] sm:$0xff]
        %v5502 = vld [vmem:[%s9 + $0xa0] sm:$0xff]
        %v5503 = vld [vmem:[%s9 + $0xa8] sm:$0xff]
        %v5504 = vld [vmem:[%s9 + $0xb0] sm:$0xff]
        %v5505 = vld [vmem:[%s9 + $0xb8] sm:$0xff]
        %v5506 = vld [vmem:[%s9 + $0xc0] sm:$0xff]
        %v5507 = vld [vmem:[%s9 + $0xc8] sm:$0xff]
        %v5508 = vld [vmem:[%s9 + $0xd0] sm:$0xff]
        %v5509 = vld [vmem:[%s9 + $0xd8] sm:$0xff]
        %v5510 = vld [vmem:[%s9 + $0xe0] sm:$0xff]
        %v5511 = vld [vmem:[%s9 + $0xe8] sm:$0xff]
        %v5512 = vld [vmem:[%s9 + $0xf0] sm:$0xff]
        %v5513 = vld [vmem:[%s9 + $0xf8] sm:$0xff]
        %v5514 = vld [vmem:[%s9 + $0x100] sm:$0xff]
        %v5515 = vld [vmem:[%s9 + $0x108] sm:$0xff]
        %v5516 = vld [vmem:[%s9 + $0x110] sm:$0xff]
        %v5517 = vld [vmem:[%s9 + $0x118] sm:$0xff]
        %v5554 = vunpack.c.l.b16 %v5482
        %v5555 = vunpack.c.h.b16 %v5482
        %v5556 = vunpack.c.l.b16 %v5483
        %v5557 = vunpack.c.h.b16 %v5483
        %v5558 = vunpack.c.l.b16 %v5484
        %v5559 = vunpack.c.h.b16 %v5484
        %v5560 = vunpack.c.l.b16 %v5485
        %v5561 = vunpack.c.h.b16 %v5485
        %v5562 = vunpack.c.l.b16 %v5486
        %v5563 = vunpack.c.h.b16 %v5486
        %v5564 = vunpack.c.l.b16 %v5487
        %v5565 = vunpack.c.h.b16 %v5487
        %v5566 = vunpack.c.l.b16 %v5488
        %v5567 = vunpack.c.h.b16 %v5488
        %v5568 = vunpack.c.l.b16 %v5489
        %v5569 = vunpack.c.h.b16 %v5489
        %v5570 = vunpack.c.l.b16 %v5490
        %v5571 = vunpack.c.h.b16 %v5490
        %v5572 = vunpack.c.l.b16 %v5491
        %v5573 = vunpack.c.h.b16 %v5491
        %v5574 = vunpack.c.l.b16 %v5492
        %v5575 = vunpack.c.h.b16 %v5492
        %v5576 = vunpack.c.l.b16 %v5493
        %v5577 = vunpack.c.h.b16 %v5493
        %v5578 = vunpack.c.l.b16 %v5494
        %v5579 = vunpack.c.h.b16 %v5494
        %v5580 = vunpack.c.l.b16 %v5495
        %v5581 = vunpack.c.h.b16 %v5495
        %v5582 = vunpack.c.l.b16 %v5496
        %v5583 = vunpack.c.h.b16 %v5496
        %v5584 = vunpack.c.l.b16 %v5497
        %v5585 = vunpack.c.h.b16 %v5497
        %v5586 = vunpack.c.l.b16 %v5498
        %v5587 = vunpack.c.h.b16 %v5498
        %v5588 = vunpack.c.l.b16 %v5499
        %v5589 = vunpack.c.h.b16 %v5499
        %v5590 = vunpack.c.l.b16 %v5500
        %v5591 = vunpack.c.h.b16 %v5500
        %v5592 = vunpack.c.l.b16 %v5501
        %v5593 = vunpack.c.h.b16 %v5501
        %v5594 = vunpack.c.l.b16 %v5502
        %v5595 = vunpack.c.h.b16 %v5502
        %v5596 = vunpack.c.l.b16 %v5503
        %v5597 = vunpack.c.h.b16 %v5503
        %v5598 = vunpack.c.l.b16 %v5504
        %v5599 = vunpack.c.h.b16 %v5504
        %v5600 = vunpack.c.l.b16 %v5505
        %v5601 = vunpack.c.h.b16 %v5505
        %v5602 = vunpack.c.l.b16 %v5506
        %v5603 = vunpack.c.h.b16 %v5506
        %v5604 = vunpack.c.l.b16 %v5507
        %v5605 = vunpack.c.h.b16 %v5507
        %v5606 = vunpack.c.l.b16 %v5508
        %v5607 = vunpack.c.h.b16 %v5508
        %v5608 = vunpack.c.l.b16 %v5509
        %v5609 = vunpack.c.h.b16 %v5509
        %v5610 = vunpack.c.l.b16 %v5510
        %v5611 = vunpack.c.h.b16 %v5510
        %v5612 = vunpack.c.l.b16 %v5511
        %v5613 = vunpack.c.h.b16 %v5511
        %v5614 = vunpack.c.l.b16 %v5512
        %v5615 = vunpack.c.h.b16 %v5512
        %v5616 = vunpack.c.l.b16 %v5513
        %v5617 = vunpack.c.h.b16 %v5513
        %v5618 = vunpack.c.l.b16 %v5514
        %v5619 = vunpack.c.h.b16 %v5514
        %v5620 = vunpack.c.l.b16 %v5515
        %v5621 = vunpack.c.h.b16 %v5515
        %v5622 = vunpack.c.l.b16 %v5516
        %v5623 = vunpack.c.h.b16 %v5516
        %v5624 = vunpack.c.l.b16 %v5517
        %v5625 = vunpack.c.h.b16 %v5517
        %v5626 = vpack.c.b16 %v5558, %v5554
        %v5627 = vpack.c.b16 %v5559, %v5555
        %v5628 = vpack.c.b16 %v5560, %v5556
        %v5629 = vpack.c.b16 %v5561, %v5557
        %v5630 = vpack.c.b16 %v5566, %v5562
        %v5631 = vpack.c.b16 %v5567, %v5563
        %v5632 = vpack.c.b16 %v5568, %v5564
        %v5633 = vpack.c.b16 %v5569, %v5565
        %v5634 = vpack.c.b16 %v5574, %v5570
        %v5635 = vpack.c.b16 %v5575, %v5571
        %v5636 = vpack.c.b16 %v5576, %v5572
        %v5637 = vpack.c.b16 %v5577, %v5573
        %v5638 = vpack.c.b16 %v5582, %v5578
        %v5639 = vpack.c.b16 %v5583, %v5579
        %v5640 = vpack.c.b16 %v5584, %v5580
        %v5641 = vpack.c.b16 %v5585, %v5581
        %v5642 = vpack.c.b16 %v5590, %v5586
        %v5643 = vpack.c.b16 %v5591, %v5587
        %v5644 = vpack.c.b16 %v5592, %v5588
        %v5645 = vpack.c.b16 %v5593, %v5589
        %v5646 = vpack.c.b16 %v5598, %v5594
        %v5647 = vpack.c.b16 %v5599, %v5595
        %v5648 = vpack.c.b16 %v5600, %v5596
        %v5649 = vpack.c.b16 %v5601, %v5597
        %v5650 = vpack.c.b16 %v5606, %v5602
        %v5651 = vpack.c.b16 %v5607, %v5603
        %v5652 = vpack.c.b16 %v5608, %v5604
        %v5653 = vpack.c.b16 %v5609, %v5605
        %v5654 = vpack.c.b16 %v5614, %v5610
        %v5655 = vpack.c.b16 %v5615, %v5611
        %v5656 = vpack.c.b16 %v5616, %v5612
        %v5657 = vpack.c.b16 %v5617, %v5613
        %v5658 = vpack.c.b16 %v5622, %v5618
        %v5659 = vpack.c.b16 %v5623, %v5619
        %v5660 = vpack.c.b16 %v5624, %v5620
        %v5661 = vpack.c.b16 %v5625, %v5621
        %v5699 = vsel %vm4664, %v5481, 0
        %5701 = vmatprep.subr.bf16.mxu0 %v5627
        %5702 = vmatpush1.bf16.msra.mxu0 %v5626
        %5703 = vmatprep.subr.bf16.mxu0 %v5631
        %5704 = vmatpush1.bf16.msra.mxu0 %v5630
        %5705 = vmatprep.subr.bf16.mxu0 %v5635
        %5706 = vmatpush1.bf16.msra.mxu0 %v5634
        %5707 = vmatprep.subr.bf16.mxu0 %v5639
        %5708 = vmatpush1.bf16.msra.mxu0 %v5638
        %5709 = vmatprep.subr.bf16.mxu0 %v5643
        %5710 = vmatpush1.bf16.msra.mxu0 %v5642
        %5711 = vmatprep.subr.bf16.mxu0 %v5647
        %5712 = vmatpush1.bf16.msra.mxu0 %v5646
        %5713 = vmatprep.subr.bf16.mxu0 %v5651
        %5714 = vmatpush1.bf16.msra.mxu0 %v5650
        %5715 = vmatprep.subr.bf16.mxu0 %v5655
        %5716 = vmatpush1.bf16.msra.mxu0 %v5654
        %5717 = vmatprep.subr.bf16.mxu0 %v5659
        %5718 = vmatpush1.bf16.msra.mxu0 %v5658
        %5719 = vmatprep.subr.bf16.mxu0 0
        %5720 = vmatpush1.bf16.msra.mxu0 0
        %5721 = vmatprep.subr.bf16.mxu0 0
        %5722 = vmatpush1.bf16.msra.mxu0 0
        %5723 = vmatprep.subr.bf16.mxu0 0
        %5724 = vmatpush1.bf16.msra.mxu0 0
        %5725 = vmatprep.subr.bf16.mxu0 0
        %5726 = vmatpush1.bf16.msra.mxu0 0
        %5727 = vmatprep.subr.bf16.mxu0 0
        %5728 = vmatpush1.bf16.msra.mxu0 0
        %5729 = vmatprep.subr.bf16.mxu0 0
        %5730 = vmatpush1.bf16.msra.mxu0 0
        %5731 = vmatprep.subr.bf16.mxu0 0
        %5732 = vmatpush1.bf16.msra.mxu0 0
        %5733 = vmatprep.mubr.bf16.mxu0 %v5699
        %5734 = vmatmul.mubr.bf16.gmra.mrb[0].mxu0 %v5480
        %v5735 = vpop.f32.mrb[0].mxu0
        %v5736 = vadd.f32 0.0, %v5735
        %v5737 = vpop.f32.mrb[0].mxu0
        %v5738 = vadd.f32 0.0, %v5737
        %v5739 = vpop.f32.mrb[0].mxu0
        %v5740 = vadd.f32 0.0, %v5739
        %v5741 = vpop.f32.mrb[0].mxu0
        %v5742 = vadd.f32 0.0, %v5741
        %5743 = vdwg.mxu0
        %5744 = vmatprep.subr.bf16.mxu0 %v5629
        %5745 = vmatpush1.bf16.msra.mxu0 %v5628
        %5746 = vmatprep.subr.bf16.mxu0 %v5633
        %5747 = vmatpush1.bf16.msra.mxu0 %v5632
        %5748 = vmatprep.subr.bf16.mxu0 %v5637
        %5749 = vmatpush1.bf16.msra.mxu0 %v5636
        %5750 = vmatprep.subr.bf16.mxu0 %v5641
        %5751 = vmatpush1.bf16.msra.mxu0 %v5640
        %5752 = vmatprep.subr.bf16.mxu0 %v5645
        %5753 = vmatpush1.bf16.msra.mxu0 %v5644
        %5754 = vmatprep.subr.bf16.mxu0 %v5649
        %5755 = vmatpush1.bf16.msra.mxu0 %v5648
        %5756 = vmatprep.subr.bf16.mxu0 %v5653
        %5757 = vmatpush1.bf16.msra.mxu0 %v5652
        %5758 = vmatprep.subr.bf16.mxu0 %v5657
        %5759 = vmatpush1.bf16.msra.mxu0 %v5656
        %5760 = vmatprep.subr.bf16.mxu0 %v5661
        %5761 = vmatpush1.bf16.msra.mxu0 %v5660
        %5762 = vmatprep.subr.bf16.mxu0 0
        %5763 = vmatpush1.bf16.msra.mxu0 0
        %5764 = vmatprep.subr.bf16.mxu0 0
        %5765 = vmatpush1.bf16.msra.mxu0 0
        %5766 = vmatprep.subr.bf16.mxu0 0
        %5767 = vmatpush1.bf16.msra.mxu0 0
        %5768 = vmatprep.subr.bf16.mxu0 0
        %5769 = vmatpush1.bf16.msra.mxu0 0
        %5770 = vmatprep.subr.bf16.mxu0 0
        %5771 = vmatpush1.bf16.msra.mxu0 0
        %5772 = vmatprep.subr.bf16.mxu0 0
        %5773 = vmatpush1.bf16.msra.mxu0 0
        %5774 = vmatprep.subr.bf16.mxu0 0
        %5775 = vmatpush1.bf16.msra.mxu0 0
        %5776 = vmatprep.mubr.bf16.mxu0 %v5699
        %5777 = vmatmul.mubr.bf16.gmra.mrb[0].mxu0 %v5480
        %v5778 = vpop.f32.mrb[0].mxu0
        %v5779 = vadd.f32 0.0, %v5778
        %v5780 = vpop.f32.mrb[0].mxu0
        %v5781 = vadd.f32 0.0, %v5780
        %v5782 = vpop.f32.mrb[0].mxu0
        %v5783 = vadd.f32 0.0, %v5782
        %v5784 = vpop.f32.mrb[0].mxu0
        %v5785 = vadd.f32 0.0, %v5784
        %5786 = vdwg.mxu0
        %v5787 = vld [vmem:[%s10] sm:$0xf]
        %v5789 = vlaneseq
        %v5790 = vshrl.u32 %v5789, 7
        %v5791 = vsub.s32 0, %v5790
        %v5792 = vrot.slane %v5787, %v5791
        %v5793 = vlaneseq
        %v5794 = vshrl.u32 %v5793, 7
        %v5795 = vsub.s32 1, %v5794
        %v5796 = vrot.slane %v5787, %v5795
        %v5797 = vlaneseq
        %v5798 = vshrl.u32 %v5797, 7
        %v5799 = vsub.s32 2, %v5798
        %v5800 = vrot.slane %v5787, %v5799
        %v5801 = vlaneseq
        %v5802 = vshrl.u32 %v5801, 7
        %v5803 = vsub.s32 3, %v5802
        %v5804 = vrot.slane %v5787, %v5803
        %v5809 = vmul.f32 %v5736, %v5792
        %v5810 = vmul.f32 %v5738, %v5796
        %v5811 = vmul.f32 %v5779, %v5800
        %v5812 = vmul.f32 %v5781, %v5804
        %v5813 = vmul.f32 %v5740, %v5792
        %v5814 = vmul.f32 %v5742, %v5796
        %v5815 = vmul.f32 %v5783, %v5800
        %v5816 = vmul.f32 %v5785, %v5804
        %v5817 = vld [vmem:[%s11] sm:$0xf]
        %v5819 = vlaneseq
        %v5820 = vshrl.u32 %v5819, 7
        %v5821 = vsub.s32 0, %v5820
        %v5822 = vrot.slane %v5817, %v5821
        %v5823 = vlaneseq
        %v5824 = vshrl.u32 %v5823, 7
        %v5825 = vsub.s32 1, %v5824
        %v5826 = vrot.slane %v5817, %v5825
        %v5827 = vlaneseq
        %v5828 = vshrl.u32 %v5827, 7
        %v5829 = vsub.s32 2, %v5828
        %v5830 = vrot.slane %v5817, %v5829
        %v5831 = vlaneseq
        %v5832 = vshrl.u32 %v5831, 7
        %v5833 = vsub.s32 3, %v5832
        %v5834 = vrot.slane %v5817, %v5833
        %v5839 = vadd.f32 %v5809, %v5822
        %v5840 = vadd.f32 %v5810, %v5826
        %v5841 = vadd.f32 %v5811, %v5830
        %v5842 = vadd.f32 %v5812, %v5834
        %v5843 = vadd.f32 %v5813, %v5822
        %v5844 = vadd.f32 %v5814, %v5826
        %v5845 = vadd.f32 %v5815, %v5830
        %v5846 = vadd.f32 %v5816, %v5834
        %v5847 = vmax.f32 %v5839, 0.0
        %v5848 = vmax.f32 %v5840, 0.0
        %v5849 = vmax.f32 %v5841, 0.0
        %v5850 = vmax.f32 %v5842, 0.0
        %v5851 = vmax.f32 %v5843, 0.0
        %v5852 = vmax.f32 %v5844, 0.0
        %v5853 = vmax.f32 %v5845, 0.0
        %v5854 = vmax.f32 %v5846, 0.0
        %v5863 = vcombine.low %v5847, %v5848
        %v5864 = vcombine.high %v5847, %v5848
        %v5865 = vcombine.low %v5849, %v5850
        %v5866 = vcombine.high %v5849, %v5850
        %v5868 = vunpack.c.l.s4 1983009808
        %v5869 = vunpack.c.0.s8 %v5868
        %v5870 = vlaneseq
        %v5871 = vshrl.u32 %v5870, 7
        %v5872 = vsub.s32 %v5869, %v5871
        %v5873 = vrot.slane %v5863, %v5872
        %v5875 = vunpack.c.l.s4 1983009808
        %v5876 = vunpack.c.0.s8 %v5875
        %v5877 = vlaneseq
        %v5878 = vshrl.u32 %v5877, 7
        %v5879 = vsub.s32 %v5876, %v5878
        %v5880 = vrot.slane %v5864, %v5879
        %v5882 = vunpack.c.l.s4 1983009808
        %v5883 = vunpack.c.0.s8 %v5882
        %v5884 = vlaneseq
        %v5885 = vshrl.u32 %v5884, 7
        %v5886 = vsub.s32 %v5883, %v5885
        %v5887 = vrot.slane %v5865, %v5886
        %v5889 = vunpack.c.l.s4 1983009808
        %v5890 = vunpack.c.0.s8 %v5889
        %v5891 = vlaneseq
        %v5892 = vshrl.u32 %v5891, 7
        %v5893 = vsub.s32 %v5890, %v5892
        %v5894 = vrot.slane %v5866, %v5893
        %v5895 = vcombine.low %v5873, %v5887
        %v5896 = vcombine.high %v5873, %v5887
        %v5897 = vcombine.low %v5880, %v5894
        %v5898 = vcombine.high %v5880, %v5894
        %v5899 = vcombine.low %v5851, %v5852
        %v5900 = vcombine.high %v5851, %v5852
        %v5901 = vcombine.low %v5853, %v5854
        %v5902 = vcombine.high %v5853, %v5854
        %v5904 = vunpack.c.l.s4 1983009808
        %v5905 = vunpack.c.0.s8 %v5904
        %v5906 = vlaneseq
        %v5907 = vshrl.u32 %v5906, 7
        %v5908 = vsub.s32 %v5905, %v5907
        %v5909 = vrot.slane %v5899, %v5908
        %v5911 = vunpack.c.l.s4 1983009808
        %v5912 = vunpack.c.0.s8 %v5911
        %v5913 = vlaneseq
        %v5914 = vshrl.u32 %v5913, 7
        %v5915 = vsub.s32 %v5912, %v5914
        %v5916 = vrot.slane %v5900, %v5915
        %v5918 = vunpack.c.l.s4 1983009808
        %v5919 = vunpack.c.0.s8 %v5918
        %v5920 = vlaneseq
        %v5921 = vshrl.u32 %v5920, 7
        %v5922 = vsub.s32 %v5919, %v5921
        %v5923 = vrot.slane %v5901, %v5922
        %v5925 = vunpack.c.l.s4 1983009808
        %v5926 = vunpack.c.0.s8 %v5925
        %v5927 = vlaneseq
        %v5928 = vshrl.u32 %v5927, 7
        %v5929 = vsub.s32 %v5926, %v5928
        %v5930 = vrot.slane %v5902, %v5929
        %v5931 = vcombine.low %v5909, %v5923
        %v5932 = vcombine.high %v5909, %v5923
        %v5933 = vcombine.low %v5916, %v5930
        %v5934 = vcombine.high %v5916, %v5930
        %v5943 = vrot.slane %v5895, 7
        %v5944 = vrot.slane %v5943, 2
        %v5945 = vrot.slane %v5896, 7
        %v5946 = vrot.slane %v5945, 2
        %v5947 = vrot.slane %v5931, 7
        %v5948 = vrot.slane %v5947, 2
        %v5949 = vrot.slane %v5932, 7
        %v5950 = vrot.slane %v5949, 2
        %v5955 = vmax.f32 %v5895, %v5944
        %v5956 = vmax.f32 %v5896, %v5946
        %v5957 = vmax.f32 %v5931, %v5948
        %v5958 = vmax.f32 %v5932, %v5950
        %v5959 = vrot.slane %v5897, 7
        %v5960 = vrot.slane %v5959, 2
        %v5961 = vrot.slane %v5898, 7
        %v5962 = vrot.slane %v5961, 2
        %v5963 = vrot.slane %v5933, 7
        %v5964 = vrot.slane %v5963, 2
        %v5965 = vrot.slane %v5934, 7
        %v5966 = vrot.slane %v5965, 2
        %v5971 = vmax.f32 %v5897, %v5960
        %v5972 = vmax.f32 %v5898, %v5962
        %v5973 = vmax.f32 %v5933, %v5964
        %v5974 = vmax.f32 %v5934, %v5966
        %v5975 = vmax.f32 %v5955, %v5971
        %v5976 = vmax.f32 %v5956, %v5972
        %v5977 = vmax.f32 %v5957, %v5973
        %v5978 = vmax.f32 %v5958, %v5974
        %v5983 = vlaneseq
        %v5984 = vshrl.u32 %v5983, 7
        %v5985 = vsub.s32 0, %v5984
        %v5986 = vrot.slane %v5975, %v5985
        %v5987 = vlaneseq
        %v5988 = vshrl.u32 %v5987, 7
        %v5989 = vsub.s32 2, %v5988
        %v5990 = vrot.slane %v5975, %v5989
        %v5991 = vlaneseq
        %v5992 = vshrl.u32 %v5991, 7
        %v5993 = vsub.s32 4, %v5992
        %v5994 = vrot.slane %v5975, %v5993
        %v5995 = vlaneseq
        %v5996 = vshrl.u32 %v5995, 7
        %v5997 = vsub.s32 6, %v5996
        %v5998 = vrot.slane %v5975, %v5997
        %v5999 = vlaneseq
        %v6000 = vshrl.u32 %v5999, 7
        %v6001 = vsub.s32 0, %v6000
        %v6002 = vrot.slane %v5976, %v6001
        %v6003 = vlaneseq
        %v6004 = vshrl.u32 %v6003, 7
        %v6005 = vsub.s32 2, %v6004
        %v6006 = vrot.slane %v5976, %v6005
        %v6007 = vlaneseq
        %v6008 = vshrl.u32 %v6007, 7
        %v6009 = vsub.s32 4, %v6008
        %v6010 = vrot.slane %v5976, %v6009
        %v6011 = vlaneseq
        %v6012 = vshrl.u32 %v6011, 7
        %v6013 = vsub.s32 6, %v6012
        %v6014 = vrot.slane %v5976, %v6013
        %v6015 = vlaneseq
        %v6016 = vshrl.u32 %v6015, 7
        %v6017 = vsub.s32 0, %v6016
        %v6018 = vrot.slane %v5977, %v6017
        %v6019 = vlaneseq
        %v6020 = vshrl.u32 %v6019, 7
        %v6021 = vsub.s32 2, %v6020
        %v6022 = vrot.slane %v5977, %v6021
        %v6023 = vlaneseq
        %v6024 = vshrl.u32 %v6023, 7
        %v6025 = vsub.s32 4, %v6024
        %v6026 = vrot.slane %v5977, %v6025
        %v6027 = vlaneseq
        %v6028 = vshrl.u32 %v6027, 7
        %v6029 = vsub.s32 6, %v6028
        %v6030 = vrot.slane %v5977, %v6029
        %v6031 = vlaneseq
        %v6032 = vshrl.u32 %v6031, 7
        %v6033 = vsub.s32 0, %v6032
        %v6034 = vrot.slane %v5978, %v6033
        %v6035 = vlaneseq
        %v6036 = vshrl.u32 %v6035, 7
        %v6037 = vsub.s32 2, %v6036
        %v6038 = vrot.slane %v5978, %v6037
        %v6039 = vlaneseq
        %v6040 = vshrl.u32 %v6039, 7
        %v6041 = vsub.s32 4, %v6040
        %v6042 = vrot.slane %v5978, %v6041
        %v6043 = vlaneseq
        %v6044 = vshrl.u32 %v6043, 7
        %v6045 = vsub.s32 6, %v6044
        %v6046 = vrot.slane %v5978, %v6045
        %v6047 = vsel %vm4247, %v6002, %v5986
        %v6048 = vsel %vm4249, %v6018, %v6047
        %v6049 = vsel %vm4251, %v6034, %v6048
        %v6050 = vsel %vm4247, %v6006, %v5990
        %v6051 = vsel %vm4249, %v6022, %v6050
        %v6052 = vsel %vm4251, %v6038, %v6051
        %v6053 = vsel %vm4247, %v6010, %v5994
        %v6054 = vsel %vm4249, %v6026, %v6053
        %v6055 = vsel %vm4251, %v6042, %v6054
        %v6056 = vsel %vm4247, %v6014, %v5998
        %v6057 = vsel %vm4249, %v6030, %v6056
        %v6058 = vsel %vm4251, %v6046, %v6057
        %v6063 = vsel %vm4779, %v6049, 0.0
        %v6064 = vrot.slane %v6063, 4
        %v6065 = vadd.f32 %v6063, %v6064
        %v6066 = vrot.slane %v6065, 2
        %v6067 = vadd.f32 %v6065, %v6066
        %v6068 = vrot.slane %v6067, 1
        %v6069 = vadd.f32 %v6067, %v6068
        %v6070 = vsel %vm4779, %v6052, 0.0
        %v6071 = vrot.slane %v6070, 4
        %v6072 = vadd.f32 %v6070, %v6071
        %v6073 = vrot.slane %v6072, 2
        %v6074 = vadd.f32 %v6072, %v6073
        %v6075 = vrot.slane %v6074, 1
        %v6076 = vadd.f32 %v6074, %v6075
        %v6077 = vsel %vm4779, %v6055, 0.0
        %v6078 = vrot.slane %v6077, 4
        %v6079 = vadd.f32 %v6077, %v6078
        %v6080 = vrot.slane %v6079, 2
        %v6081 = vadd.f32 %v6079, %v6080
        %v6082 = vrot.slane %v6081, 1
        %v6083 = vadd.f32 %v6081, %v6082
        %v6084 = vsel %vm4779, %v6058, 0.0
        %v6085 = vrot.slane %v6084, 4
        %v6086 = vadd.f32 %v6084, %v6085
        %v6087 = vrot.slane %v6086, 2
        %v6088 = vadd.f32 %v6086, %v6087
        %v6089 = vrot.slane %v6088, 1
        %v6090 = vadd.f32 %v6088, %v6089
        %v6091 = vmul.f32 %v6069, 0.25
        %v6092 = vmul.f32 %v6076, 0.25
        %v6093 = vmul.f32 %v6083, 0.25
        %v6094 = vmul.f32 %v6090, 0.25
        %v6095 = vld [vmem:[%s12] sm:$0xff]
        %v6096 = vld [vmem:[%s12 + $0x8] sm:$0xff]
        %v6097 = vld [vmem:[%s12 + $0x10] sm:$0xff]
        %v6098 = vld [vmem:[%s12 + $0x18] sm:$0xff]
        %v6099 = vld [vmem:[%s12 + $0x20] sm:$0xff]
        %v6100 = vld [vmem:[%s12 + $0x28] sm:$0xff]
        %v6101 = vld [vmem:[%s12 + $0x30] sm:$0xff]
        %v6102 = vld [vmem:[%s12 + $0x38] sm:$0xff]
        %v6103 = vld [vmem:[%s12 + $0x40] sm:$0xff]
        %v6104 = vld [vmem:[%s12 + $0x48] sm:$0xff]
        %v6105 = vld [vmem:[%s12 + $0x50] sm:$0xff]
        %v6106 = vld [vmem:[%s12 + $0x58] sm:$0xff]
        %v6107 = vld [vmem:[%s12 + $0x60] sm:$0xff]
        %v6108 = vld [vmem:[%s12 + $0x68] sm:$0xff]
        %v6109 = vld [vmem:[%s12 + $0x70] sm:$0xff]
        %v6110 = vld [vmem:[%s12 + $0x78] sm:$0xff]
        %v6111 = vld [vmem:[%s12 + $0x80] sm:$0xff]
        %v6112 = vld [vmem:[%s12 + $0x88] sm:$0xff]
        %v6113 = vld [vmem:[%s12 + $0x90] sm:$0xff]
        %v6114 = vld [vmem:[%s12 + $0x98] sm:$0xff]
        %v6115 = vld [vmem:[%s12 + $0xa0] sm:$0xff]
        %v6116 = vld [vmem:[%s12 + $0xa8] sm:$0xff]
        %v6117 = vld [vmem:[%s12 + $0xb0] sm:$0xff]
        %v6118 = vld [vmem:[%s12 + $0xb8] sm:$0xff]
        %v6119 = vld [vmem:[%s12 + $0xc0] sm:$0xff]
        %v6120 = vld [vmem:[%s12 + $0xc8] sm:$0xff]
        %v6121 = vld [vmem:[%s12 + $0xd0] sm:$0xff]
        %v6122 = vld [vmem:[%s12 + $0xd8] sm:$0xff]
        %v6123 = vld [vmem:[%s12 + $0xe0] sm:$0xff]
        %v6124 = vld [vmem:[%s12 + $0xe8] sm:$0xff]
        %v6125 = vld [vmem:[%s12 + $0xf0] sm:$0xff]
        %v6126 = vld [vmem:[%s12 + $0xf8] sm:$0xff]
        %v6127 = vld [vmem:[%s12 + $0x100] sm:$0xff]
        %v6128 = vld [vmem:[%s12 + $0x108] sm:$0xff]
        %v6129 = vld [vmem:[%s12 + $0x110] sm:$0xff]
        %v6130 = vld [vmem:[%s12 + $0x118] sm:$0xff]
        %v6131 = vld [vmem:[%s12 + $0x120] sm:$0xff]
        %v6132 = vld [vmem:[%s12 + $0x128] sm:$0xff]
        %v6133 = vld [vmem:[%s12 + $0x130] sm:$0xff]
        %v6134 = vld [vmem:[%s12 + $0x138] sm:$0xff]
        %v6135 = vld [vmem:[%s12 + $0x140] sm:$0xff]
        %v6136 = vld [vmem:[%s12 + $0x148] sm:$0xff]
        %v6137 = vld [vmem:[%s12 + $0x150] sm:$0xff]
        %v6138 = vld [vmem:[%s12 + $0x158] sm:$0xff]
        %v6139 = vld [vmem:[%s12 + $0x160] sm:$0xff]
        %v6140 = vld [vmem:[%s12 + $0x168] sm:$0xff]
        %v6141 = vld [vmem:[%s12 + $0x170] sm:$0xff]
        %v6142 = vld [vmem:[%s12 + $0x178] sm:$0xff]
        %v6143 = vld [vmem:[%s12 + $0x180] sm:$0xff]
        %v6144 = vld [vmem:[%s12 + $0x188] sm:$0xff]
        %v6145 = vld [vmem:[%s12 + $0x190] sm:$0xff]
        %v6146 = vld [vmem:[%s12 + $0x198] sm:$0xff]
        %v6147 = vld [vmem:[%s12 + $0x1a0] sm:$0xff]
        %v6148 = vld [vmem:[%s12 + $0x1a8] sm:$0xff]
        %v6149 = vld [vmem:[%s12 + $0x1b0] sm:$0xff]
        %v6150 = vld [vmem:[%s12 + $0x1b8] sm:$0xff]
        %v6151 = vld [vmem:[%s12 + $0x1c0] sm:$0xff]
        %v6152 = vld [vmem:[%s12 + $0x1c8] sm:$0xff]
        %v6153 = vld [vmem:[%s12 + $0x1d0] sm:$0xff]
        %v6154 = vld [vmem:[%s12 + $0x1d8] sm:$0xff]
        %v6155 = vld [vmem:[%s12 + $0x1e0] sm:$0xff]
        %v6156 = vld [vmem:[%s12 + $0x1e8] sm:$0xff]
        %v6157 = vld [vmem:[%s12 + $0x1f0] sm:$0xff]
        %v6158 = vld [vmem:[%s12 + $0x1f8] sm:$0xff]
        %v6159 = vld [vmem:[%s13] sm:$0x1]
        %6160 = vmatprep.subr.mxu0 0.0
        %6161 = vmatpush1.msra.mxu0 %v6095
        %6162 = vmatprep.subr.mxu0 0.0
        %6163 = vmatpush1.msra.mxu0 %v6096
        %6164 = vmatprep.subr.mxu0 0.0
        %6165 = vmatpush1.msra.mxu0 %v6097
        %6166 = vmatprep.subr.mxu0 0.0
        %6167 = vmatpush1.msra.mxu0 %v6098
        %6168 = vmatprep.subr.mxu0 0.0
        %6169 = vmatpush1.msra.mxu0 %v6099
        %6170 = vmatprep.subr.mxu0 0.0
        %6171 = vmatpush1.msra.mxu0 %v6100
        %6172 = vmatprep.subr.mxu0 0.0
        %6173 = vmatpush1.msra.mxu0 %v6101
        %6174 = vmatprep.subr.mxu0 0.0
        %6175 = vmatpush1.msra.mxu0 %v6102
        %6176 = vmatprep.subr.mxu0 0.0
        %6177 = vmatpush1.msra.mxu0 %v6103
        %6178 = vmatprep.subr.mxu0 0.0
        %6179 = vmatpush1.msra.mxu0 %v6104
        %6180 = vmatprep.subr.mxu0 0.0
        %6181 = vmatpush1.msra.mxu0 %v6105
        %6182 = vmatprep.subr.mxu0 0.0
        %6183 = vmatpush1.msra.mxu0 %v6106
        %6184 = vmatprep.subr.mxu0 0.0
        %6185 = vmatpush1.msra.mxu0 %v6107
        %6186 = vmatprep.subr.mxu0 0.0
        %6187 = vmatpush1.msra.mxu0 %v6108
        %6188 = vmatprep.subr.mxu0 0.0
        %6189 = vmatpush1.msra.mxu0 %v6109
        %6190 = vmatprep.subr.mxu0 0.0
        %6191 = vmatpush1.msra.mxu0 %v6110
        %6192 = vmatprep.subr.mxu0 0.0
        %6193 = vmatpush1.msra.mxu0 %v6111
        %6194 = vmatprep.subr.mxu0 0.0
        %6195 = vmatpush1.msra.mxu0 %v6112
        %6196 = vmatprep.subr.mxu0 0.0
        %6197 = vmatpush1.msra.mxu0 %v6113
        %6198 = vmatprep.subr.mxu0 0.0
        %6199 = vmatpush1.msra.mxu0 %v6114
        %6200 = vmatprep.subr.mxu0 0.0
        %6201 = vmatpush1.msra.mxu0 %v6115
        %6202 = vmatprep.subr.mxu0 0.0
        %6203 = vmatpush1.msra.mxu0 %v6116
        %6204 = vmatprep.subr.mxu0 0.0
        %6205 = vmatpush1.msra.mxu0 %v6117
        %6206 = vmatprep.subr.mxu0 0.0
        %6207 = vmatpush1.msra.mxu0 %v6118
        %6208 = vmatprep.subr.mxu0 0.0
        %6209 = vmatpush1.msra.mxu0 %v6119
        %6210 = vmatprep.subr.mxu0 0.0
        %6211 = vmatpush1.msra.mxu0 %v6120
        %6212 = vmatprep.subr.mxu0 0.0
        %6213 = vmatpush1.msra.mxu0 %v6121
        %6214 = vmatprep.subr.mxu0 0.0
        %6215 = vmatpush1.msra.mxu0 %v6122
        %6216 = vmatprep.subr.mxu0 0.0
        %6217 = vmatpush1.msra.mxu0 %v6123
        %6218 = vmatprep.subr.mxu0 0.0
        %6219 = vmatpush1.msra.mxu0 %v6124
        %6220 = vmatprep.subr.mxu0 0.0
        %6221 = vmatpush1.msra.mxu0 %v6125
        %6222 = vmatprep.subr.mxu0 0.0
        %6223 = vmatpush1.msra.mxu0 %v6126
        %6224 = vmatprep.mubr.f32.mxu0 %v6092
        %6225 = vmatmul.mubr.f32.gmra.mrb[0].mxu0 %v6091
        %v6226 = vpop.f32.mrb[0].mxu0
        %v6227 = vadd.f32 %v6159, %v6226
        %v6228 = vpop.f32.mrb[0].mxu0
        %6229 = vdwg.mxu0
        %6230 = vmatprep.subr.mxu0 0.0
        %6231 = vmatpush1.msra.mxu0 %v6127
        %6232 = vmatprep.subr.mxu0 0.0
        %6233 = vmatpush1.msra.mxu0 %v6128
        %6234 = vmatprep.subr.mxu0 0.0
        %6235 = vmatpush1.msra.mxu0 %v6129
        %6236 = vmatprep.subr.mxu0 0.0
        %6237 = vmatpush1.msra.mxu0 %v6130
        %6238 = vmatprep.subr.mxu0 0.0
        %6239 = vmatpush1.msra.mxu0 %v6131
        %6240 = vmatprep.subr.mxu0 0.0
        %6241 = vmatpush1.msra.mxu0 %v6132
        %6242 = vmatprep.subr.mxu0 0.0
        %6243 = vmatpush1.msra.mxu0 %v6133
        %6244 = vmatprep.subr.mxu0 0.0
        %6245 = vmatpush1.msra.mxu0 %v6134
        %6246 = vmatprep.subr.mxu0 0.0
        %6247 = vmatpush1.msra.mxu0 %v6135
        %6248 = vmatprep.subr.mxu0 0.0
        %6249 = vmatpush1.msra.mxu0 %v6136
        %6250 = vmatprep.subr.mxu0 0.0
        %6251 = vmatpush1.msra.mxu0 %v6137
        %6252 = vmatprep.subr.mxu0 0.0
        %6253 = vmatpush1.msra.mxu0 %v6138
        %6254 = vmatprep.subr.mxu0 0.0
        %6255 = vmatpush1.msra.mxu0 %v6139
        %6256 = vmatprep.subr.mxu0 0.0
        %6257 = vmatpush1.msra.mxu0 %v6140
        %6258 = vmatprep.subr.mxu0 0.0
        %6259 = vmatpush1.msra.mxu0 %v6141
        %6260 = vmatprep.subr.mxu0 0.0
        %6261 = vmatpush1.msra.mxu0 %v6142
        %6262 = vmatprep.subr.mxu0 0.0
        %6263 = vmatpush1.msra.mxu0 %v6143
        %6264 = vmatprep.subr.mxu0 0.0
        %6265 = vmatpush1.msra.mxu0 %v6144
        %6266 = vmatprep.subr.mxu0 0.0
        %6267 = vmatpush1.msra.mxu0 %v6145
        %6268 = vmatprep.subr.mxu0 0.0
        %6269 = vmatpush1.msra.mxu0 %v6146
        %6270 = vmatprep.subr.mxu0 0.0
        %6271 = vmatpush1.msra.mxu0 %v6147
        %6272 = vmatprep.subr.mxu0 0.0
        %6273 = vmatpush1.msra.mxu0 %v6148
        %6274 = vmatprep.subr.mxu0 0.0
        %6275 = vmatpush1.msra.mxu0 %v6149
        %6276 = vmatprep.subr.mxu0 0.0
        %6277 = vmatpush1.msra.mxu0 %v6150
        %6278 = vmatprep.subr.mxu0 0.0
        %6279 = vmatpush1.msra.mxu0 %v6151
        %6280 = vmatprep.subr.mxu0 0.0
        %6281 = vmatpush1.msra.mxu0 %v6152
        %6282 = vmatprep.subr.mxu0 0.0
        %6283 = vmatpush1.msra.mxu0 %v6153
        %6284 = vmatprep.subr.mxu0 0.0
        %6285 = vmatpush1.msra.mxu0 %v6154
        %6286 = vmatprep.subr.mxu0 0.0
        %6287 = vmatpush1.msra.mxu0 %v6155
        %6288 = vmatprep.subr.mxu0 0.0
        %6289 = vmatpush1.msra.mxu0 %v6156
        %6290 = vmatprep.subr.mxu0 0.0
        %6291 = vmatpush1.msra.mxu0 %v6157
        %6292 = vmatprep.subr.mxu0 0.0
        %6293 = vmatpush1.msra.mxu0 %v6158
        %6294 = vmatprep.mubr.f32.mxu0 %v6094
        %6295 = vmatmul.mubr.f32.gmra.mrb[0].mxu0 %v6093
        %v6296 = vpop.f32.mrb[0].mxu0
        %v6297 = vadd.f32 %v6227, %v6296
        %v6298 = vpop.f32.mrb[0].mxu0
        %6299 = vdwg.mxu0
        %vm6300 = vcmask 73728
        %6301 = vst.msk [vmem:[%s459] sm:$0x1] %vm6300, %v6297
        %s6302 = sand.u32 %s335, 1
        %s6303 = scalar_lea.sflag [#allocation6], %s6302
        %s6304 = sand.u32 %s335, 1
        %s6305 = scalar_lea.vmem [#allocation5], %s6304
        // Predicated region
        $region77: #{forward.1} parent=75 // pred_check
          %p6306 = pneg %p345
        $region78: #{forward.1} parent=75 // pred_check_branch
          %6308 = sbr.rel (%p6306) target = $region80
        $region79: #{forward.1} parent=75 // pred_region
          %s6310 = ssub.s32 16, 16
          %6311 = vsyncadd %s6303, %s6310
          %s6312 = smul.addr %s28, 16
          %s6313 = scalar_lea.hbm %s14, %s6312
          %s6315 = sshll.u32 %s6305, 4
          %s6316 = int_to_ptr.vmem [resolvable:$true] %s6315
          %6318 = dma.vmem_to_hbm [thread:$0]  %s6316, 16, %s6313, %s6303
        $region80: #{forward.1} parent=75 // pred_fallthru
          _
      $region76: #{forward.1} parent=5 // pred_fallthru
        _
      %p6319 = scmp.le.s32.totalorder 2, %s23
      // Predicated region
      $region81: #{forward.1} parent=5 // pred_check
        %p6320 = pneg %p6319
      $region82: #{forward.1} parent=5 // pred_check_branch
        %6322 = sbr.rel (%p6320) target = $region84
      $region83: #{forward.1} parent=5 // pred_region
        %s6323 = ssub.s32 %s23, 2
        // Predicated region
        $region85: #{forward.1} parent=83 // pred_check
          %p6324 = pneg %p351
        $region86: #{forward.1} parent=83 // pred_check_branch
          %6326 = sbr.rel (%p6324) target = $region88
        $region87: #{forward.1} parent=83 // pred_region
          %s6327 = sand.u32 %s336, 1
          %s6328 = scalar_lea.sflag [#allocation6], %s6327
          %s6329 = sand.u32 %s336, 1
          %s6330 = scalar_lea.vmem [#allocation5], %s6329
          %6331 = dma.done %s6328, 16
        $region88: #{forward.1} parent=83 // pred_fallthru
          _
      $region84: #{forward.1} parent=5 // pred_fallthru
        _
    $region6: #{forward.1} parent=1 // loop_footer
      %s27 = sadd.s32 1, %s23
    $region7: #{forward.1} parent=1 // loop_footer_branch
      %22 = sbr.rel target = $region3
    $region8: #{forward.1} parent=1 // loop_exit
      _
    %6332 = vsyncpa [#allocation6], 1
    %s6333 = scalar_lea.sflag [#allocation6], 1
    %6334 = vsyncpa %s6333, 1

</llo_original>
